<compile_context>
chip_gen: v5e
topology: v5e:2x2
jax: 0.10.0
libtpu: 0.0.40
codegen_flags: <defaults>
</compile_context>

<pallas_src>
import jax
import jax.numpy as jnp
from jax.experimental import pallas as pl
from jax.experimental.pallas import tpu as pltpu


# ------------------------------------------------------------------ helpers --

def _round_up(x, m):
    return ((x + m - 1) // m) * m


def _gelu(x):
    # tanh-approximate GELU computed in f32 (EUP tanh -> cheap).
    # TODO(synk): PyTorch nn.GELU defaults to the exact erf form; the tanh
    # approximation is used here for a guaranteed Mosaic lowering (|diff| < ~1e-3).
    c = 0.7978845608028654  # sqrt(2/pi)
    return 0.5 * x * (1.0 + jnp.tanh(c * (x + 0.044715 * x * x * x)))


def fold_conv_bn(w_oc_ic, b_oc, gamma, beta, mean, var, eps=1e-5):
    """Fold eval-mode BatchNorm1d into the preceding 1x1 conv.

    w_oc_ic: torch-layout weight [C_out, C_in]; returns ([C_in, C_out], [1, C_out]).
    TODO(synk): training-mode BN (batch statistics over all N points) would need a
    separate global-reduction pass and is not implemented here.
    """
    scale = gamma / jnp.sqrt(var + eps)
    w = (w_oc_ic * scale[:, None]).T             # [C_in, C_out], BN scale folded in
    b = ((b_oc - mean) * scale + beta)[None, :]  # [1, C_out]
    return w, b


# ------------------------------------------------------------------- kernel --

def _make_kernel(r, c2, fuse_rearrange):
    """Kernel processing one point-tile through all R convsets.

    fuse_rearrange=True  -> weights come column-permuted; the kernel scatters each
                            convset's output into its column slab of the R output
                            row-blocks, fully realising the einops rearrange.
    fuse_rearrange=False -> per-convset dense output (generic c2 % R != 0 fallback).
    """
    c2_r = c2 // r  # only meaningful when fuse_rearrange

    def kernel(x_ref, w1_ref, b1_ref, w2_ref, b2_ref, o_ref):
        x = x_ref[...].astype(jnp.bfloat16)
        for i in range(r):                       # static unroll over convsets
            h = jnp.dot(x, w1_ref[i], preferred_element_type=jnp.float32) + b1_ref[i]
            h = _gelu(h)
            y = jnp.dot(h.astype(jnp.bfloat16), w2_ref[i],
                        preferred_element_type=jnp.float32) + b2_ref[i]
            y = _gelu(y).astype(o_ref.dtype)
            if fuse_rearrange:
                # Permuted column p = r_idx*c2_r + q corresponds to final output
                # row-block r_idx, column i*c2_r + q.
                for r_idx in range(r):
                    o_ref[r_idx, :, i * c2_r:(i + 1) * c2_r] = (
                        y[:, r_idx * c2_r:(r_idx + 1) * c2_r])
            else:
                o_ref[i, :, :] = y

    return kernel


# ------------------------------------------------------------------ wrapper --

def feature_expanding_forward(feat, params, *, tile_rows=1024):
    """FeatureExpending.forward: feat [N, C_in] -> [R*N, c2].

    params: dict with BN-folded, stacked-per-convset weights
      w1: [R, C_in, c1], b1: [R, 1, c1], w2: [R, c1, c2], b2: [R, 1, c2]

    tile_rows: per-tile point count; larger tiles amortize the ~0.35us/step pipeline
    overhead (weights stay resident in VMEM across steps since their block index never
    changes).
    """
    n, c_in = feat.shape
    w1, b1, w2, b2 = params["w1"], params["b1"], params["w2"], params["b2"]
    r, _, c1 = w1.shape
    c2 = w2.shape[2]
    fuse = (c2 % r == 0)

    if fuse:
        c2_r = c2 // r
        # Permuted column p = r_idx*c2_r + q  <-  original convset channel j = q*r + r_idx
        perm = (jnp.arange(c2) % c2_r) * r + (jnp.arange(c2) // c2_r)
        w2 = w2[:, :, perm]
        b2 = b2[:, :, perm]

    # MXU operands in bf16 (f32 accumulation in-kernel); biases stay f32.
    w1 = w1.astype(jnp.bfloat16)
    w2 = w2.astype(jnp.bfloat16)
    b1 = b1.astype(jnp.float32)
    b2 = b2.astype(jnp.float32)

    # cdiv-clean grid over points: pad, then slice the padding off afterwards.
    tile = min(tile_rows, _round_up(n, 8))
    n_pad = _round_up(n, tile)
    if n_pad != n:
        feat = jnp.pad(feat, ((0, n_pad - n), (0, 0)))
    n_tiles = n_pad // tile

    kernel = _make_kernel(r, c2, fuse)

    ys = pl.pallas_call(
        kernel,
        out_shape=jax.ShapeDtypeStruct((r, n_pad, c2), feat.dtype),
        grid_spec=pltpu.PrefetchScalarGridSpec(
            num_scalar_prefetch=0,
            grid=(n_tiles,),
            in_specs=[
                pl.BlockSpec((tile, c_in), lambda t: (t, 0)),
                # Weights/biases: constant block index -> DMA'd once, resident in VMEM.
                pl.BlockSpec((r, c_in, c1), lambda t: (0, 0, 0)),
                pl.BlockSpec((r, 1, c1), lambda t: (0, 0, 0)),
                pl.BlockSpec((r, c1, c2), lambda t: (0, 0, 0)),
                pl.BlockSpec((r, 1, c2), lambda t: (0, 0, 0)),
            ],
            # Lane-dense output block (last dim = full c2).
            out_specs=pl.BlockSpec((r, tile, c2), lambda t: (0, t, 0)),
        ),
        compiler_params=pltpu.CompilerParams(
            dimension_semantics=("parallel",),
        ),
    )(feat, w1, b1, w2, b2)

    ys = ys[:, :n, :]                       # drop row padding
    if fuse:
        # ys[r_idx, n, c] already holds out[r_idx*N + n, c]; reshape is free.
        return ys.reshape(r * n, c2)

    # Generic fallback (c2 % R != 0): torch.cat(dim=1) + einops rearrange as XLA layout ops.
    concated = jnp.transpose(ys, (0, 2, 1)).reshape(r * c2, n)       # channel k = i*c2 + j
    return concated.reshape(c2, r, n).transpose(1, 2, 0).reshape(r * n, c2)


# ---------------------------------------------------------------- reference --

def _reference(feat, params):
    """Pure-JAX reference following the torch graph (same bf16-operand MXU policy)."""
    r = params["w1"].shape[0]
    c2 = params["w2"].shape[2]
    n = feat.shape[0]
    ys = []
    for i in range(r):
        h = jnp.dot(feat.astype(jnp.bfloat16), params["w1"][i].astype(jnp.bfloat16),
                    preferred_element_type=jnp.float32) + params["b1"][i]
        h = _gelu(h)
        y = jnp.dot(h.astype(jnp.bfloat16), params["w2"][i].astype(jnp.bfloat16),
                    preferred_element_type=jnp.float32) + params["b2"][i]
        ys.append(_gelu(y))
    ys = jnp.stack(ys)                                               # [R, N, c2]
    # torch.cat(dim=1): channel k = i*c2 + j ; then rearrange('1 (c r) n -> (r n) c')
    concated = jnp.transpose(ys, (0, 2, 1)).reshape(r * c2, n)
    return concated.reshape(c2, r, n).transpose(1, 2, 0).reshape(r * n, c2)


def _build_params(key, r, c_in, c1, c2):
    keys = jax.random.split(key, 12 * r)
    w1s, b1s, w2s, b2s = [], [], [], []
    for i in range(r):
        k = keys[12 * i: 12 * (i + 1)]
        # Conv1d(c_in -> c1) + BatchNorm1d(c1)   (torch weight layout [out, in])
        cw1 = jax.random.normal(k[0], (c1, c_in), jnp.float32) * 0.05
        cb1 = jax.random.normal(k[1], (c1,), jnp.float32) * 0.05
        g1 = 1.0 + 0.1 * jax.random.normal(k[2], (c1,), jnp.float32)
        be1 = 0.1 * jax.random.normal(k[3], (c1,), jnp.float32)
        m1 = 0.1 * jax.random.normal(k[4], (c1,), jnp.float32)
        v1 = 1.0 + 0.1 * jax.random.uniform(k[5], (c1,), jnp.float32)
        # Conv1d(c1 -> c2) + BatchNorm1d(c2)
        cw2 = jax.random.normal(k[6], (c2, c1), jnp.float32) * 0.05
        cb2 = jax.random.normal(k[7], (c2,), jnp.float32) * 0.05
        g2 = 1.0 + 0.1 * jax.random.normal(k[8], (c2,), jnp.float32)
        be2 = 0.1 * jax.random.normal(k[9], (c2,), jnp.float32)
        m2 = 0.1 * jax.random.normal(k[10], (c2,), jnp.float32)
        v2 = 1.0 + 0.1 * jax.random.uniform(k[11], (c2,), jnp.float32)

        w1, b1 = fold_conv_bn(cw1, cb1, g1, be1, m1, v1)
        w2, b2 = fold_conv_bn(cw2, cb2, g2, be2, m2, v2)
        w1s.append(w1); b1s.append(b1); w2s.append(w2); b2s.append(b2)
    return dict(w1=jnp.stack(w1s), b1=jnp.stack(b1s),
                w2=jnp.stack(w2s), b2=jnp.stack(b2s))


# --------------------------------------------------------------------- main --

if __name__ == "__main__":
    key = jax.random.PRNGKey(0)

    # Config 1: c2 % R == 0 -> fully fused rearrange (primary fast path).
    k_feat, k_par, key = jax.random.split(key, 3)
    N, IN_CH, C1, C2, R = 384, 64, 128, 128, 2
    feat = jax.random.normal(k_feat, (N, IN_CH), jnp.float32)
    params = _build_params(k_par, R, IN_CH, C1, C2)
    out = jax.block_until_ready(feature_expanding_forward(feat, params))
    ref = _reference(feat, params)
    assert out.shape == (R * N, C2)
    assert jnp.allclose(out, ref, atol=2e-3, rtol=2e-3), "fused path mismatch vs reference"

    # Config 2: c2 % R != 0 -> generic fallback (rearrange as XLA layout ops).
    k_feat, k_par, key = jax.random.split(key, 3)
    N, IN_CH, C1, C2, R = 200, 32, 64, 128, 3
    feat = jax.random.normal(k_feat, (N, IN_CH), jnp.float32)
    params = _build_params(k_par, R, IN_CH, C1, C2)
    out = jax.block_until_ready(feature_expanding_forward(feat, params))
    ref = _reference(feat, params)
    assert out.shape == (R * N, C2)
    assert jnp.allclose(out, ref, atol=2e-3, rtol=2e-3), "fallback path mismatch vs reference"

    print("KERNEL_OK")
</pallas_src>

<mosaic_0001>
module attributes {stable_mosaic.version = 11 : i64} {
  func.func @kernel(%arg0: i32, %arg1: memref<384x64xf32, #tpu.memory_space<vmem>>, %arg2: memref<2x64x128xbf16, #tpu.memory_space<vmem>>, %arg3: memref<2x1x128xf32, #tpu.memory_space<vmem>>, %arg4: memref<2x128x128xbf16, #tpu.memory_space<vmem>>, %arg5: memref<2x1x128xf32, #tpu.memory_space<vmem>>, %arg6: memref<2x384x128xf32, #tpu.memory_space<vmem>>) attributes {dimension_semantics = [#tpu.dimension_semantics<parallel>], iteration_bounds = array<i64: 1>, scalar_prefetch = 0 : i64, scratch_operands = 0 : i64, tpu.core_type = #tpu.core_type<tc>, window_params = [{transform_indices = @transform_0, window_bounds = array<i64: 384, 64>}, {pipeline_mode = #tpu.pipeline_mode<synchronous>, transform_indices = @transform_1, window_bounds = array<i64: 2, 64, 128>}, {pipeline_mode = #tpu.pipeline_mode<synchronous>, transform_indices = @transform_2, window_bounds = array<i64: 2, 1, 128>}, {pipeline_mode = #tpu.pipeline_mode<synchronous>, transform_indices = @transform_3, window_bounds = array<i64: 2, 128, 128>}, {pipeline_mode = #tpu.pipeline_mode<synchronous>, transform_indices = @transform_4, window_bounds = array<i64: 2, 1, 128>}, {transform_indices = @transform_5, window_bounds = array<i64: 2, 384, 128>}]} {
    %c0 = arith.constant 0 : index
    %c0_0 = arith.constant 0 : index
    %0 = vector.load %arg1[%c0, %c0_0] : memref<384x64xf32, #tpu.memory_space<vmem>>, vector<384x64xf32>
    %1 = arith.truncf %0 : vector<384x64xf32> to vector<384x64xbf16>
    %c0_1 = arith.constant 0 : index
    %c0_2 = arith.constant 0 : index
    %c0_3 = arith.constant 0 : index
    %2 = vector.load %arg2[%c0_1, %c0_2, %c0_3] : memref<2x64x128xbf16, #tpu.memory_space<vmem>>, vector<1x64x128xbf16>
    %3 = vector.shape_cast %2 : vector<1x64x128xbf16> to vector<64x128xbf16>
    %cst = arith.constant dense<0.000000e+00> : vector<384x128xf32>
    %4 = tpu.matmul %1, %3, %cst {dimension_numbers = #tpu.dot_dimension_numbers<[1], [0], [0], [1], [0, 0, 1, 1], [], []>} : vector<384x64xbf16>, vector<64x128xbf16>, vector<384x128xf32> -> vector<384x128xf32>
    %c0_4 = arith.constant 0 : index
    %c0_5 = arith.constant 0 : index
    %c0_6 = arith.constant 0 : index
    %5 = vector.load %arg3[%c0_4, %c0_5, %c0_6] : memref<2x1x128xf32, #tpu.memory_space<vmem>>, vector<1x1x128xf32>
    %6 = vector.shape_cast %5 : vector<1x1x128xf32> to vector<1x128xf32>
    %7 = vector.broadcast %6 : vector<1x128xf32> to vector<384x128xf32>
    %8 = arith.addf %4, %7 : vector<384x128xf32>
    %cst_7 = arith.constant 5.000000e-01 : f32
    %9 = vector.broadcast %cst_7 : f32 to vector<384x128xf32>
    %10 = arith.mulf %9, %8 : vector<384x128xf32>
    %cst_8 = arith.constant 4.471500e-02 : f32
    %11 = vector.broadcast %cst_8 : f32 to vector<384x128xf32>
    %12 = arith.mulf %11, %8 : vector<384x128xf32>
    %13 = arith.mulf %12, %8 : vector<384x128xf32>
    %14 = arith.mulf %13, %8 : vector<384x128xf32>
    %15 = arith.addf %8, %14 : vector<384x128xf32>
    %cst_9 = arith.constant 0.797884583 : f32
    %16 = vector.broadcast %cst_9 : f32 to vector<384x128xf32>
    %17 = arith.mulf %16, %15 : vector<384x128xf32>
    %18 = math.tanh %17 : vector<384x128xf32>
    %cst_10 = arith.constant 1.000000e+00 : f32
    %19 = vector.broadcast %cst_10 : f32 to vector<384x128xf32>
    %20 = arith.addf %19, %18 : vector<384x128xf32>
    %21 = arith.mulf %10, %20 : vector<384x128xf32>
    %22 = arith.truncf %21 : vector<384x128xf32> to vector<384x128xbf16>
    %c0_11 = arith.constant 0 : index
    %c0_12 = arith.constant 0 : index
    %c0_13 = arith.constant 0 : index
    %23 = vector.load %arg4[%c0_11, %c0_12, %c0_13] : memref<2x128x128xbf16, #tpu.memory_space<vmem>>, vector<1x128x128xbf16>
    %24 = vector.shape_cast %23 : vector<1x128x128xbf16> to vector<128x128xbf16>
    %cst_14 = arith.constant dense<0.000000e+00> : vector<384x128xf32>
    %25 = tpu.matmul %22, %24, %cst_14 {dimension_numbers = #tpu.dot_dimension_numbers<[1], [0], [0], [1], [0, 0, 1, 1], [], []>} : vector<384x128xbf16>, vector<128x128xbf16>, vector<384x128xf32> -> vector<384x128xf32>
    %c0_15 = arith.constant 0 : index
    %c0_16 = arith.constant 0 : index
    %c0_17 = arith.constant 0 : index
    %26 = vector.load %arg5[%c0_15, %c0_16, %c0_17] : memref<2x1x128xf32, #tpu.memory_space<vmem>>, vector<1x1x128xf32>
    %27 = vector.shape_cast %26 : vector<1x1x128xf32> to vector<1x128xf32>
    %28 = vector.broadcast %27 : vector<1x128xf32> to vector<384x128xf32>
    %29 = arith.addf %25, %28 : vector<384x128xf32>
    %cst_18 = arith.constant 5.000000e-01 : f32
    %30 = vector.broadcast %cst_18 : f32 to vector<384x128xf32>
    %31 = arith.mulf %30, %29 : vector<384x128xf32>
    %cst_19 = arith.constant 4.471500e-02 : f32
    %32 = vector.broadcast %cst_19 : f32 to vector<384x128xf32>
    %33 = arith.mulf %32, %29 : vector<384x128xf32>
    %34 = arith.mulf %33, %29 : vector<384x128xf32>
    %35 = arith.mulf %34, %29 : vector<384x128xf32>
    %36 = arith.addf %29, %35 : vector<384x128xf32>
    %cst_20 = arith.constant 0.797884583 : f32
    %37 = vector.broadcast %cst_20 : f32 to vector<384x128xf32>
    %38 = arith.mulf %37, %36 : vector<384x128xf32>
    %39 = math.tanh %38 : vector<384x128xf32>
    %cst_21 = arith.constant 1.000000e+00 : f32
    %40 = vector.broadcast %cst_21 : f32 to vector<384x128xf32>
    %41 = arith.addf %40, %39 : vector<384x128xf32>
    %42 = arith.mulf %31, %41 : vector<384x128xf32>
    %43 = vector.extract_strided_slice %42 {offsets = [0, 0], sizes = [384, 64], strides = [1, 1]} : vector<384x128xf32> to vector<384x64xf32>
    %c0_22 = arith.constant 0 : index
    %c0_23 = arith.constant 0 : index
    %c0_24 = arith.constant 0 : index
    %44 = vector.load %arg6[%c0_22, %c0_23, %c0_24] : memref<2x384x128xf32, #tpu.memory_space<vmem>>, vector<1x384x64xf32>
    %45 = vector.shape_cast %44 : vector<1x384x64xf32> to vector<384x64xf32>
    %46 = vector.shape_cast %43 : vector<384x64xf32> to vector<1x384x64xf32>
    tpu.vector_store %arg6[%c0_22, %c0_23, %c0_24], %46 {strides = array<i32>} : memref<2x384x128xf32, #tpu.memory_space<vmem>>, vector<1x384x64xf32>,
    %47 = vector.extract_strided_slice %42 {offsets = [0, 64], sizes = [384, 64], strides = [1, 1]} : vector<384x128xf32> to vector<384x64xf32>
    %c1 = arith.constant 1 : index
    %c0_25 = arith.constant 0 : index
    %c0_26 = arith.constant 0 : index
    %48 = vector.load %arg6[%c1, %c0_25, %c0_26] : memref<2x384x128xf32, #tpu.memory_space<vmem>>, vector<1x384x64xf32>
    %49 = vector.shape_cast %48 : vector<1x384x64xf32> to vector<384x64xf32>
    %50 = vector.shape_cast %47 : vector<384x64xf32> to vector<1x384x64xf32>
    tpu.vector_store %arg6[%c1, %c0_25, %c0_26], %50 {strides = array<i32>} : memref<2x384x128xf32, #tpu.memory_space<vmem>>, vector<1x384x64xf32>,
    %c1_27 = arith.constant 1 : index
    %c0_28 = arith.constant 0 : index
    %c0_29 = arith.constant 0 : index
    %51 = vector.load %arg2[%c1_27, %c0_28, %c0_29] : memref<2x64x128xbf16, #tpu.memory_space<vmem>>, vector<1x64x128xbf16>
    %52 = vector.shape_cast %51 : vector<1x64x128xbf16> to vector<64x128xbf16>
    %cst_30 = arith.constant dense<0.000000e+00> : vector<384x128xf32>
    %53 = tpu.matmul %1, %52, %cst_30 {dimension_numbers = #tpu.dot_dimension_numbers<[1], [0], [0], [1], [0, 0, 1, 1], [], []>} : vector<384x64xbf16>, vector<64x128xbf16>, vector<384x128xf32> -> vector<384x128xf32>
    %c1_31 = arith.constant 1 : index
    %c0_32 = arith.constant 0 : index
    %c0_33 = arith.constant 0 : index
    %54 = vector.load %arg3[%c1_31, %c0_32, %c0_33] : memref<2x1x128xf32, #tpu.memory_space<vmem>>, vector<1x1x128xf32>
    %55 = vector.shape_cast %54 : vector<1x1x128xf32> to vector<1x128xf32>
    %56 = vector.broadcast %55 : vector<1x128xf32> to vector<384x128xf32>
    %57 = arith.addf %53, %56 : vector<384x128xf32>
    %cst_34 = arith.constant 5.000000e-01 : f32
    %58 = vector.broadcast %cst_34 : f32 to vector<384x128xf32>
    %59 = arith.mulf %58, %57 : vector<384x128xf32>
    %cst_35 = arith.constant 4.471500e-02 : f32
    %60 = vector.broadcast %cst_35 : f32 to vector<384x128xf32>
    %61 = arith.mulf %60, %57 : vector<384x128xf32>
    %62 = arith.mulf %61, %57 : vector<384x128xf32>
    %63 = arith.mulf %62, %57 : vector<384x128xf32>
    %64 = arith.addf %57, %63 : vector<384x128xf32>
    %cst_36 = arith.constant 0.797884583 : f32
    %65 = vector.broadcast %cst_36 : f32 to vector<384x128xf32>
    %66 = arith.mulf %65, %64 : vector<384x128xf32>
    %67 = math.tanh %66 : vector<384x128xf32>
    %cst_37 = arith.constant 1.000000e+00 : f32
    %68 = vector.broadcast %cst_37 : f32 to vector<384x128xf32>
    %69 = arith.addf %68, %67 : vector<384x128xf32>
    %70 = arith.mulf %59, %69 : vector<384x128xf32>
    %71 = arith.truncf %70 : vector<384x128xf32> to vector<384x128xbf16>
    %c1_38 = arith.constant 1 : index
    %c0_39 = arith.constant 0 : index
    %c0_40 = arith.constant 0 : index
    %72 = vector.load %arg4[%c1_38, %c0_39, %c0_40] : memref<2x128x128xbf16, #tpu.memory_space<vmem>>, vector<1x128x128xbf16>
    %73 = vector.shape_cast %72 : vector<1x128x128xbf16> to vector<128x128xbf16>
    %cst_41 = arith.constant dense<0.000000e+00> : vector<384x128xf32>
    %74 = tpu.matmul %71, %73, %cst_41 {dimension_numbers = #tpu.dot_dimension_numbers<[1], [0], [0], [1], [0, 0, 1, 1], [], []>} : vector<384x128xbf16>, vector<128x128xbf16>, vector<384x128xf32> -> vector<384x128xf32>
    %c1_42 = arith.constant 1 : index
    %c0_43 = arith.constant 0 : index
    %c0_44 = arith.constant 0 : index
    %75 = vector.load %arg5[%c1_42, %c0_43, %c0_44] : memref<2x1x128xf32, #tpu.memory_space<vmem>>, vector<1x1x128xf32>
    %76 = vector.shape_cast %75 : vector<1x1x128xf32> to vector<1x128xf32>
    %77 = vector.broadcast %76 : vector<1x128xf32> to vector<384x128xf32>
    %78 = arith.addf %74, %77 : vector<384x128xf32>
    %cst_45 = arith.constant 5.000000e-01 : f32
    %79 = vector.broadcast %cst_45 : f32 to vector<384x128xf32>
    %80 = arith.mulf %79, %78 : vector<384x128xf32>
    %cst_46 = arith.constant 4.471500e-02 : f32
    %81 = vector.broadcast %cst_46 : f32 to vector<384x128xf32>
    %82 = arith.mulf %81, %78 : vector<384x128xf32>
    %83 = arith.mulf %82, %78 : vector<384x128xf32>
    %84 = arith.mulf %83, %78 : vector<384x128xf32>
    %85 = arith.addf %78, %84 : vector<384x128xf32>
    %cst_47 = arith.constant 0.797884583 : f32
    %86 = vector.broadcast %cst_47 : f32 to vector<384x128xf32>
    %87 = arith.mulf %86, %85 : vector<384x128xf32>
    %88 = math.tanh %87 : vector<384x128xf32>
    %cst_48 = arith.constant 1.000000e+00 : f32
    %89 = vector.broadcast %cst_48 : f32 to vector<384x128xf32>
    %90 = arith.addf %89, %88 : vector<384x128xf32>
    %91 = arith.mulf %80, %90 : vector<384x128xf32>
    %92 = vector.extract_strided_slice %91 {offsets = [0, 0], sizes = [384, 64], strides = [1, 1]} : vector<384x128xf32> to vector<384x64xf32>
    %c0_49 = arith.constant 0 : index
    %c0_50 = arith.constant 0 : index
    %c64 = arith.constant 64 : index
    %93 = vector.load %arg6[%c0_49, %c0_50, %c64] : memref<2x384x128xf32, #tpu.memory_space<vmem>>, vector<1x384x64xf32>
    %94 = vector.shape_cast %93 : vector<1x384x64xf32> to vector<384x64xf32>
    %95 = vector.shape_cast %92 : vector<384x64xf32> to vector<1x384x64xf32>
    tpu.vector_store %arg6[%c0_49, %c0_50, %c64], %95 {strides = array<i32>} : memref<2x384x128xf32, #tpu.memory_space<vmem>>, vector<1x384x64xf32>,
    %96 = vector.extract_strided_slice %91 {offsets = [0, 64], sizes = [384, 64], strides = [1, 1]} : vector<384x128xf32> to vector<384x64xf32>
    %c1_51 = arith.constant 1 : index
    %c0_52 = arith.constant 0 : index
    %c64_53 = arith.constant 64 : index
    %97 = vector.load %arg6[%c1_51, %c0_52, %c64_53] : memref<2x384x128xf32, #tpu.memory_space<vmem>>, vector<1x384x64xf32>
    %98 = vector.shape_cast %97 : vector<1x384x64xf32> to vector<384x64xf32>
    %99 = vector.shape_cast %96 : vector<384x64xf32> to vector<1x384x64xf32>
    tpu.vector_store %arg6[%c1_51, %c0_52, %c64_53], %99 {strides = array<i32>} : memref<2x384x128xf32, #tpu.memory_space<vmem>>, vector<1x384x64xf32>,
    return
  }
  func.func @transform_0(%arg0: i32) -> (i32, i32) {
    %c0_i32 = arith.constant 0 : i32
    %c0_i32_0 = arith.constant 0 : i32
    return %arg0, %c0_i32 : i32, i32
  }
  func.func @transform_1(%arg0: i32) -> (i32, i32, i32) {
    %c0_i32 = arith.constant 0 : i32
    %c0_i32_0 = arith.constant 0 : i32
    %c0_i32_1 = arith.constant 0 : i32
    %c0_i32_2 = arith.constant 0 : i32
    return %c0_i32, %c0_i32_0, %c0_i32_1 : i32, i32, i32
  }
  func.func @transform_2(%arg0: i32) -> (i32, i32, i32) {
    %c0_i32 = arith.constant 0 : i32
    %c0_i32_0 = arith.constant 0 : i32
    %c0_i32_1 = arith.constant 0 : i32
    %c0_i32_2 = arith.constant 0 : i32
    return %c0_i32, %c0_i32_0, %c0_i32_1 : i32, i32, i32
  }
  func.func @transform_3(%arg0: i32) -> (i32, i32, i32) {
    %c0_i32 = arith.constant 0 : i32
    %c0_i32_0 = arith.constant 0 : i32
    %c0_i32_1 = arith.constant 0 : i32
    %c0_i32_2 = arith.constant 0 : i32
    return %c0_i32, %c0_i32_0, %c0_i32_1 : i32, i32, i32
  }
  func.func @transform_4(%arg0: i32) -> (i32, i32, i32) {
    %c0_i32 = arith.constant 0 : i32
    %c0_i32_0 = arith.constant 0 : i32
    %c0_i32_1 = arith.constant 0 : i32
    %c0_i32_2 = arith.constant 0 : i32
    return %c0_i32, %c0_i32_0, %c0_i32_1 : i32, i32, i32
  }
  func.func @transform_5(%arg0: i32) -> (i32, i32, i32) {
    %c0_i32 = arith.constant 0 : i32
    %c0_i32_0 = arith.constant 0 : i32
    %c0_i32_1 = arith.constant 0 : i32
    return %c0_i32, %arg0, %c0_i32_0 : i32, i32, i32
  }
}

</mosaic_0001>

<llo_original>
// kernel: tpu_custom_call.1
$region0: #{tpu_custom_call.1}
  #allocation0 [shape = 'u32[]', space=smem, size = 0x4, offset = 0x4, fixed_abs, tag = 'smem constant byte address 0x4 - core index']
  #allocation1 [shape = 'u32[72,128]{1,0:T(1,128)}', space=vmem, size = 0x9000, scoped, tag = 'internal scratch']
  %s0 = inlined_call_operand.vmem [shape: f32[384,64], index: 0, kind: input, shape index: {}]
  %s1 = inlined_call_operand.vmem [shape: bf16[2,64,128], index: 1, kind: input, shape index: {}]
  %s2 = inlined_call_operand.vmem [shape: f32[2,1,128], index: 2, kind: input, shape index: {}]
  %s3 = inlined_call_operand.vmem [shape: bf16[2,128,128], index: 3, kind: input, shape index: {}]
  %s4 = inlined_call_operand.vmem [shape: f32[2,1,128], index: 4, kind: input, shape index: {}]
  %s5 = inlined_call_operand.hbm [shape: f32[2,384,128], index: 5, kind: output, shape index: {}]
  %s6 = sld [smem:[#allocation0]]
  $region30: #{tpu_custom_call.1} parent=0
    _
  %s8 = ssub.s32 1, %s6
  %s9 = scalar_select 0, %s8, %s6
  $region1: #{tpu_custom_call.1} parent=0
    #allocation2 [shape = 'u8[393216]{0}', space=vmem, size = 0x60000, scoped, tag = 'output window, operand 0, single buffered']
    #allocation3 [shape = 's32[1]{0}', space=sflag, size = 0x4, scoped, tag = 'scoped memory for tpu_custom_call.1']
    %10 = vsyncpa [#allocation3], 0
    // Predicated region
    $region2: #{tpu_custom_call.1} parent=1 // pred_check
      _
    $region3: #{tpu_custom_call.1} parent=1 // pred_check_branch
      %12 = sbr.rel (0) target = $region5
    $region4: #{tpu_custom_call.1} parent=1 // pred_region
      _
    $region5: #{tpu_custom_call.1} parent=1 // pred_fallthru
      _
    // Predicated region
    $region6: #{tpu_custom_call.1} parent=1 // pred_check
      _
    $region7: #{tpu_custom_call.1} parent=1 // pred_check_branch
      %14 = sbr.rel (0) target = $region9
    $region8: #{tpu_custom_call.1} parent=1 // pred_region
      _
    $region9: #{tpu_custom_call.1} parent=1 // pred_fallthru
      _
    // Predicated region
    $region10: #{tpu_custom_call.1} parent=1 // pred_check
      _
    $region11: #{tpu_custom_call.1} parent=1 // pred_check_branch
      %16 = sbr.rel (0) target = $region13
    $region12: #{tpu_custom_call.1} parent=1 // pred_region
      _
    $region13: #{tpu_custom_call.1} parent=1 // pred_fallthru
      _
    // Predicated region
    $region14: #{tpu_custom_call.1} parent=1 // pred_check
      _
    $region15: #{tpu_custom_call.1} parent=1 // pred_check_branch
      %18 = sbr.rel (0) target = $region17
    $region16: #{tpu_custom_call.1} parent=1 // pred_region
      _
    $region17: #{tpu_custom_call.1} parent=1 // pred_fallthru
      _
    // Predicated region
    $region18: #{tpu_custom_call.1} parent=1 // pred_check
      _
    $region19: #{tpu_custom_call.1} parent=1 // pred_check_branch
      %20 = sbr.rel (0) target = $region21
    $region20: #{tpu_custom_call.1} parent=1 // pred_region
      _
    $region21: #{tpu_custom_call.1} parent=1 // pred_fallthru
      _
    %v22 = vld [vmem:[%s0] sm:$0xff]
    %v23 = vld [vmem:[%s0 + $0x8] sm:$0xff]
    %v24 = vld [vmem:[%s0 + $0x10] sm:$0xff]
    %v25 = vld [vmem:[%s0 + $0x18] sm:$0xff]
    %v26 = vld [vmem:[%s0 + $0x20] sm:$0xff]
    %v27 = vld [vmem:[%s0 + $0x28] sm:$0xff]
    %v28 = vld [vmem:[%s0 + $0x30] sm:$0xff]
    %v29 = vld [vmem:[%s0 + $0x38] sm:$0xff]
    %v30 = vld [vmem:[%s0 + $0x40] sm:$0xff]
    %v31 = vld [vmem:[%s0 + $0x48] sm:$0xff]
    %v32 = vld [vmem:[%s0 + $0x50] sm:$0xff]
    %v33 = vld [vmem:[%s0 + $0x58] sm:$0xff]
    %v34 = vld [vmem:[%s0 + $0x60] sm:$0xff]
    %v35 = vld [vmem:[%s0 + $0x68] sm:$0xff]
    %v36 = vld [vmem:[%s0 + $0x70] sm:$0xff]
    %v37 = vld [vmem:[%s0 + $0x78] sm:$0xff]
    %v38 = vld [vmem:[%s0 + $0x80] sm:$0xff]
    %v39 = vld [vmem:[%s0 + $0x88] sm:$0xff]
    %v40 = vld [vmem:[%s0 + $0x90] sm:$0xff]
    %v41 = vld [vmem:[%s0 + $0x98] sm:$0xff]
    %v42 = vld [vmem:[%s0 + $0xa0] sm:$0xff]
    %v43 = vld [vmem:[%s0 + $0xa8] sm:$0xff]
    %v44 = vld [vmem:[%s0 + $0xb0] sm:$0xff]
    %v45 = vld [vmem:[%s0 + $0xb8] sm:$0xff]
    %v46 = vld [vmem:[%s0 + $0xc0] sm:$0xff]
    %v47 = vld [vmem:[%s0 + $0xc8] sm:$0xff]
    %v48 = vld [vmem:[%s0 + $0xd0] sm:$0xff]
    %v49 = vld [vmem:[%s0 + $0xd8] sm:$0xff]
    %v50 = vld [vmem:[%s0 + $0xe0] sm:$0xff]
    %v51 = vld [vmem:[%s0 + $0xe8] sm:$0xff]
    %v52 = vld [vmem:[%s0 + $0xf0] sm:$0xff]
    %v53 = vld [vmem:[%s0 + $0xf8] sm:$0xff]
    %v54 = vld [vmem:[%s0 + $0x100] sm:$0xff]
    %v55 = vld [vmem:[%s0 + $0x108] sm:$0xff]
    %v56 = vld [vmem:[%s0 + $0x110] sm:$0xff]
    %v57 = vld [vmem:[%s0 + $0x118] sm:$0xff]
    %v58 = vld [vmem:[%s0 + $0x120] sm:$0xff]
    %v59 = vld [vmem:[%s0 + $0x128] sm:$0xff]
    %v60 = vld [vmem:[%s0 + $0x130] sm:$0xff]
    %v61 = vld [vmem:[%s0 + $0x138] sm:$0xff]
    %v62 = vld [vmem:[%s0 + $0x140] sm:$0xff]
    %v63 = vld [vmem:[%s0 + $0x148] sm:$0xff]
    %v64 = vld [vmem:[%s0 + $0x150] sm:$0xff]
    %v65 = vld [vmem:[%s0 + $0x158] sm:$0xff]
    %v66 = vld [vmem:[%s0 + $0x160] sm:$0xff]
    %v67 = vld [vmem:[%s0 + $0x168] sm:$0xff]
    %v68 = vld [vmem:[%s0 + $0x170] sm:$0xff]
    %v69 = vld [vmem:[%s0 + $0x178] sm:$0xff]
    %v70 = vpack.c.bf16 %v23, %v22
    %v71 = vpack.c.bf16 %v25, %v24
    %v72 = vpack.c.bf16 %v27, %v26
    %v73 = vpack.c.bf16 %v29, %v28
    %v74 = vpack.c.bf16 %v31, %v30
    %v75 = vpack.c.bf16 %v33, %v32
    %v76 = vpack.c.bf16 %v35, %v34
    %v77 = vpack.c.bf16 %v37, %v36
    %v78 = vpack.c.bf16 %v39, %v38
    %v79 = vpack.c.bf16 %v41, %v40
    %v80 = vpack.c.bf16 %v43, %v42
    %v81 = vpack.c.bf16 %v45, %v44
    %v82 = vpack.c.bf16 %v47, %v46
    %v83 = vpack.c.bf16 %v49, %v48
    %v84 = vpack.c.bf16 %v51, %v50
    %v85 = vpack.c.bf16 %v53, %v52
    %v86 = vpack.c.bf16 %v55, %v54
    %v87 = vpack.c.bf16 %v57, %v56
    %v88 = vpack.c.bf16 %v59, %v58
    %v89 = vpack.c.bf16 %v61, %v60
    %v90 = vpack.c.bf16 %v63, %v62
    %v91 = vpack.c.bf16 %v65, %v64
    %v92 = vpack.c.bf16 %v67, %v66
    %v93 = vpack.c.bf16 %v69, %v68
    %v94 = vld [vmem:[%s1] sm:$0xf]
    %v95 = vld [vmem:[%s1 + $0x4] sm:$0xf]
    %v96 = vld [vmem:[%s1 + $0x8] sm:$0xf]
    %v97 = vld [vmem:[%s1 + $0xc] sm:$0xf]
    %v98 = vld [vmem:[%s1 + $0x10] sm:$0xf]
    %v99 = vld [vmem:[%s1 + $0x14] sm:$0xf]
    %v100 = vld [vmem:[%s1 + $0x18] sm:$0xf]
    %v101 = vld [vmem:[%s1 + $0x1c] sm:$0xf]
    %v102 = vld [vmem:[%s2] sm:$0x1]
    %v104 = vperm.slane %v102, 0
    %v114 = vunpack.c.l.b16 %v94
    %v115 = vunpack.c.l.b16 %v95
    %v116 = vunpack.c.l.b16 %v96
    %v117 = vunpack.c.l.b16 %v97
    %v118 = vunpack.c.l.b16 %v98
    %v119 = vunpack.c.l.b16 %v99
    %v120 = vunpack.c.l.b16 %v100
    %v121 = vunpack.c.l.b16 %v101
    %v122 = vpack.c.b16 %v115, %v114
    %v123 = vpack.c.b16 %v117, %v116
    %v124 = vpack.c.b16 %v119, %v118
    %v125 = vpack.c.b16 %v121, %v120
    %vm130 = vcmask 523264
    %v132 = vsel %vm130, %v70, 0
    %v135 = vsel %vm130, %v71, 0
    %v138 = vsel %vm130, %v72, 0
    %v141 = vsel %vm130, %v73, 0
    %v144 = vsel %vm130, %v74, 0
    %v147 = vsel %vm130, %v75, 0
    %v150 = vsel %vm130, %v76, 0
    %v153 = vsel %vm130, %v77, 0
    %v156 = vsel %vm130, %v78, 0
    %v159 = vsel %vm130, %v79, 0
    %v162 = vsel %vm130, %v80, 0
    %v165 = vsel %vm130, %v81, 0
    %v168 = vsel %vm130, %v82, 0
    %v171 = vsel %vm130, %v83, 0
    %v174 = vsel %vm130, %v84, 0
    %v177 = vsel %vm130, %v85, 0
    %v180 = vsel %vm130, %v86, 0
    %v183 = vsel %vm130, %v87, 0
    %v186 = vsel %vm130, %v88, 0
    %v189 = vsel %vm130, %v89, 0
    %v192 = vsel %vm130, %v90, 0
    %v195 = vsel %vm130, %v91, 0
    %v198 = vsel %vm130, %v92, 0
    %v201 = vsel %vm130, %v93, 0
    %203 = vmatpush.bf16.msra.mxu0 0
    %204 = vmatpush.bf16.msra.mxu0 0
    %205 = vmatpush.bf16.msra.mxu0 0
    %206 = vmatpush.bf16.msra.mxu0 0
    %207 = vmatpush.bf16.msra.mxu0 %v125
    %208 = vmatpush.bf16.msra.mxu0 %v124
    %209 = vmatpush.bf16.msra.mxu0 %v123
    %210 = vmatpush.bf16.msra.mxu0 %v122
    %211 = vmatmul.bf16.gmra.mxu0 %v132
    %v212 = vpop.f32.mrf.mxu0
    %v213 = vadd.f32 %v104, %v212
    %v214 = vpop.f32.mrf.mxu0
    %v215 = vadd.f32 %v104, %v214
    %216 = vmatmul.bf16.gmra.mxu0 %v135
    %v217 = vpop.f32.mrf.mxu0
    %v218 = vadd.f32 %v104, %v217
    %v219 = vpop.f32.mrf.mxu0
    %v220 = vadd.f32 %v104, %v219
    %221 = vmatmul.bf16.gmra.mxu0 %v138
    %v222 = vpop.f32.mrf.mxu0
    %v223 = vadd.f32 %v104, %v222
    %v224 = vpop.f32.mrf.mxu0
    %v225 = vadd.f32 %v104, %v224
    %226 = vmatmul.bf16.gmra.mxu0 %v141
    %v227 = vpop.f32.mrf.mxu0
    %v228 = vadd.f32 %v104, %v227
    %v229 = vpop.f32.mrf.mxu0
    %v230 = vadd.f32 %v104, %v229
    %231 = vmatmul.bf16.gmra.mxu0 %v144
    %v232 = vpop.f32.mrf.mxu0
    %v233 = vadd.f32 %v104, %v232
    %v234 = vpop.f32.mrf.mxu0
    %v235 = vadd.f32 %v104, %v234
    %236 = vmatmul.bf16.gmra.mxu0 %v147
    %v237 = vpop.f32.mrf.mxu0
    %v238 = vadd.f32 %v104, %v237
    %v239 = vpop.f32.mrf.mxu0
    %v240 = vadd.f32 %v104, %v239
    %241 = vmatmul.bf16.gmra.mxu0 %v150
    %v242 = vpop.f32.mrf.mxu0
    %v243 = vadd.f32 %v104, %v242
    %v244 = vpop.f32.mrf.mxu0
    %v245 = vadd.f32 %v104, %v244
    %246 = vmatmul.bf16.gmra.mxu0 %v153
    %v247 = vpop.f32.mrf.mxu0
    %v248 = vadd.f32 %v104, %v247
    %v249 = vpop.f32.mrf.mxu0
    %v250 = vadd.f32 %v104, %v249
    %251 = vmatmul.bf16.gmra.mxu0 %v156
    %v252 = vpop.f32.mrf.mxu0
    %v253 = vadd.f32 %v104, %v252
    %v254 = vpop.f32.mrf.mxu0
    %v255 = vadd.f32 %v104, %v254
    %256 = vmatmul.bf16.gmra.mxu0 %v159
    %v257 = vpop.f32.mrf.mxu0
    %v258 = vadd.f32 %v104, %v257
    %v259 = vpop.f32.mrf.mxu0
    %v260 = vadd.f32 %v104, %v259
    %261 = vmatmul.bf16.gmra.mxu0 %v162
    %v262 = vpop.f32.mrf.mxu0
    %v263 = vadd.f32 %v104, %v262
    %v264 = vpop.f32.mrf.mxu0
    %v265 = vadd.f32 %v104, %v264
    %266 = vmatmul.bf16.gmra.mxu0 %v165
    %v267 = vpop.f32.mrf.mxu0
    %v268 = vadd.f32 %v104, %v267
    %v269 = vpop.f32.mrf.mxu0
    %v270 = vadd.f32 %v104, %v269
    %271 = vmatmul.bf16.gmra.mxu0 %v168
    %v272 = vpop.f32.mrf.mxu0
    %v273 = vadd.f32 %v104, %v272
    %v274 = vpop.f32.mrf.mxu0
    %v275 = vadd.f32 %v104, %v274
    %276 = vmatmul.bf16.gmra.mxu0 %v171
    %v277 = vpop.f32.mrf.mxu0
    %v278 = vadd.f32 %v104, %v277
    %v279 = vpop.f32.mrf.mxu0
    %v280 = vadd.f32 %v104, %v279
    %281 = vmatmul.bf16.gmra.mxu0 %v174
    %v282 = vpop.f32.mrf.mxu0
    %v283 = vadd.f32 %v104, %v282
    %v284 = vpop.f32.mrf.mxu0
    %v285 = vadd.f32 %v104, %v284
    %286 = vmatmul.bf16.gmra.mxu0 %v177
    %v287 = vpop.f32.mrf.mxu0
    %v288 = vadd.f32 %v104, %v287
    %v289 = vpop.f32.mrf.mxu0
    %v290 = vadd.f32 %v104, %v289
    %291 = vmatmul.bf16.gmra.mxu0 %v180
    %v292 = vpop.f32.mrf.mxu0
    %v293 = vadd.f32 %v104, %v292
    %v294 = vpop.f32.mrf.mxu0
    %v295 = vadd.f32 %v104, %v294
    %296 = vmatmul.bf16.gmra.mxu0 %v183
    %v297 = vpop.f32.mrf.mxu0
    %v298 = vadd.f32 %v104, %v297
    %v299 = vpop.f32.mrf.mxu0
    %v300 = vadd.f32 %v104, %v299
    %301 = vmatmul.bf16.gmra.mxu0 %v186
    %v302 = vpop.f32.mrf.mxu0
    %v303 = vadd.f32 %v104, %v302
    %v304 = vpop.f32.mrf.mxu0
    %v305 = vadd.f32 %v104, %v304
    %306 = vmatmul.bf16.gmra.mxu0 %v189
    %v307 = vpop.f32.mrf.mxu0
    %v308 = vadd.f32 %v104, %v307
    %v309 = vpop.f32.mrf.mxu0
    %v310 = vadd.f32 %v104, %v309
    %311 = vmatmul.bf16.gmra.mxu0 %v192
    %v312 = vpop.f32.mrf.mxu0
    %v313 = vadd.f32 %v104, %v312
    %v314 = vpop.f32.mrf.mxu0
    %v315 = vadd.f32 %v104, %v314
    %316 = vmatmul.bf16.gmra.mxu0 %v195
    %v317 = vpop.f32.mrf.mxu0
    %v318 = vadd.f32 %v104, %v317
    %v319 = vpop.f32.mrf.mxu0
    %v320 = vadd.f32 %v104, %v319
    %321 = vmatmul.bf16.gmra.mxu0 %v198
    %v322 = vpop.f32.mrf.mxu0
    %v323 = vadd.f32 %v104, %v322
    %v324 = vpop.f32.mrf.mxu0
    %v325 = vadd.f32 %v104, %v324
    %326 = vmatmul.bf16.gmra.mxu0 %v201
    %v327 = vpop.f32.mrf.mxu0
    %v328 = vadd.f32 %v104, %v327
    %v329 = vpop.f32.mrf.mxu0
    %v330 = vadd.f32 %v104, %v329
    %331 = vdwg.mxu0
    %v332 = vmul.f32 %v213, 0.5
    %v333 = vmul.f32 %v215, 0.5
    %v334 = vmul.f32 %v218, 0.5
    %v335 = vmul.f32 %v220, 0.5
    %v336 = vmul.f32 %v223, 0.5
    %v337 = vmul.f32 %v225, 0.5
    %v338 = vmul.f32 %v228, 0.5
    %v339 = vmul.f32 %v230, 0.5
    %v340 = vmul.f32 %v233, 0.5
    %v341 = vmul.f32 %v235, 0.5
    %v342 = vmul.f32 %v238, 0.5
    %v343 = vmul.f32 %v240, 0.5
    %v344 = vmul.f32 %v243, 0.5
    %v345 = vmul.f32 %v245, 0.5
    %v346 = vmul.f32 %v248, 0.5
    %v347 = vmul.f32 %v250, 0.5
    %v348 = vmul.f32 %v253, 0.5
    %v349 = vmul.f32 %v255, 0.5
    %v350 = vmul.f32 %v258, 0.5
    %v351 = vmul.f32 %v260, 0.5
    %v352 = vmul.f32 %v263, 0.5
    %v353 = vmul.f32 %v265, 0.5
    %v354 = vmul.f32 %v268, 0.5
    %v355 = vmul.f32 %v270, 0.5
    %v356 = vmul.f32 %v273, 0.5
    %v357 = vmul.f32 %v275, 0.5
    %v358 = vmul.f32 %v278, 0.5
    %v359 = vmul.f32 %v280, 0.5
    %v360 = vmul.f32 %v283, 0.5
    %v361 = vmul.f32 %v285, 0.5
    %v362 = vmul.f32 %v288, 0.5
    %v363 = vmul.f32 %v290, 0.5
    %v364 = vmul.f32 %v293, 0.5
    %v365 = vmul.f32 %v295, 0.5
    %v366 = vmul.f32 %v298, 0.5
    %v367 = vmul.f32 %v300, 0.5
    %v368 = vmul.f32 %v303, 0.5
    %v369 = vmul.f32 %v305, 0.5
    %v370 = vmul.f32 %v308, 0.5
    %v371 = vmul.f32 %v310, 0.5
    %v372 = vmul.f32 %v313, 0.5
    %v373 = vmul.f32 %v315, 0.5
    %v374 = vmul.f32 %v318, 0.5
    %v375 = vmul.f32 %v320, 0.5
    %v376 = vmul.f32 %v323, 0.5
    %v377 = vmul.f32 %v325, 0.5
    %v378 = vmul.f32 %v328, 0.5
    %v379 = vmul.f32 %v330, 0.5
    %v380 = vmul.f32 %v213, 0.044715
    %v381 = vmul.f32 %v215, 0.044715
    %v382 = vmul.f32 %v218, 0.044715
    %v383 = vmul.f32 %v220, 0.044715
    %v384 = vmul.f32 %v223, 0.044715
    %v385 = vmul.f32 %v225, 0.044715
    %v386 = vmul.f32 %v228, 0.044715
    %v387 = vmul.f32 %v230, 0.044715
    %v388 = vmul.f32 %v233, 0.044715
    %v389 = vmul.f32 %v235, 0.044715
    %v390 = vmul.f32 %v238, 0.044715
    %v391 = vmul.f32 %v240, 0.044715
    %v392 = vmul.f32 %v243, 0.044715
    %v393 = vmul.f32 %v245, 0.044715
    %v394 = vmul.f32 %v248, 0.044715
    %v395 = vmul.f32 %v250, 0.044715
    %v396 = vmul.f32 %v253, 0.044715
    %v397 = vmul.f32 %v255, 0.044715
    %v398 = vmul.f32 %v258, 0.044715
    %v399 = vmul.f32 %v260, 0.044715
    %v400 = vmul.f32 %v263, 0.044715
    %v401 = vmul.f32 %v265, 0.044715
    %v402 = vmul.f32 %v268, 0.044715
    %v403 = vmul.f32 %v270, 0.044715
    %v404 = vmul.f32 %v273, 0.044715
    %v405 = vmul.f32 %v275, 0.044715
    %v406 = vmul.f32 %v278, 0.044715
    %v407 = vmul.f32 %v280, 0.044715
    %v408 = vmul.f32 %v283, 0.044715
    %v409 = vmul.f32 %v285, 0.044715
    %v410 = vmul.f32 %v288, 0.044715
    %v411 = vmul.f32 %v290, 0.044715
    %v412 = vmul.f32 %v293, 0.044715
    %v413 = vmul.f32 %v295, 0.044715
    %v414 = vmul.f32 %v298, 0.044715
    %v415 = vmul.f32 %v300, 0.044715
    %v416 = vmul.f32 %v303, 0.044715
    %v417 = vmul.f32 %v305, 0.044715
    %v418 = vmul.f32 %v308, 0.044715
    %v419 = vmul.f32 %v310, 0.044715
    %v420 = vmul.f32 %v313, 0.044715
    %v421 = vmul.f32 %v315, 0.044715
    %v422 = vmul.f32 %v318, 0.044715
    %v423 = vmul.f32 %v320, 0.044715
    %v424 = vmul.f32 %v323, 0.044715
    %v425 = vmul.f32 %v325, 0.044715
    %v426 = vmul.f32 %v328, 0.044715
    %v427 = vmul.f32 %v330, 0.044715
    %v428 = vmul.f32 %v380, %v213
    %v429 = vmul.f32 %v381, %v215
    %v430 = vmul.f32 %v382, %v218
    %v431 = vmul.f32 %v383, %v220
    %v432 = vmul.f32 %v384, %v223
    %v433 = vmul.f32 %v385, %v225
    %v434 = vmul.f32 %v386, %v228
    %v435 = vmul.f32 %v387, %v230
    %v436 = vmul.f32 %v388, %v233
    %v437 = vmul.f32 %v389, %v235
    %v438 = vmul.f32 %v390, %v238
    %v439 = vmul.f32 %v391, %v240
    %v440 = vmul.f32 %v392, %v243
    %v441 = vmul.f32 %v393, %v245
    %v442 = vmul.f32 %v394, %v248
    %v443 = vmul.f32 %v395, %v250
    %v444 = vmul.f32 %v396, %v253
    %v445 = vmul.f32 %v397, %v255
    %v446 = vmul.f32 %v398, %v258
    %v447 = vmul.f32 %v399, %v260
    %v448 = vmul.f32 %v400, %v263
    %v449 = vmul.f32 %v401, %v265
    %v450 = vmul.f32 %v402, %v268
    %v451 = vmul.f32 %v403, %v270
    %v452 = vmul.f32 %v404, %v273
    %v453 = vmul.f32 %v405, %v275
    %v454 = vmul.f32 %v406, %v278
    %v455 = vmul.f32 %v407, %v280
    %v456 = vmul.f32 %v408, %v283
    %v457 = vmul.f32 %v409, %v285
    %v458 = vmul.f32 %v410, %v288
    %v459 = vmul.f32 %v411, %v290
    %v460 = vmul.f32 %v412, %v293
    %v461 = vmul.f32 %v413, %v295
    %v462 = vmul.f32 %v414, %v298
    %v463 = vmul.f32 %v415, %v300
    %v464 = vmul.f32 %v416, %v303
    %v465 = vmul.f32 %v417, %v305
    %v466 = vmul.f32 %v418, %v308
    %v467 = vmul.f32 %v419, %v310
    %v468 = vmul.f32 %v420, %v313
    %v469 = vmul.f32 %v421, %v315
    %v470 = vmul.f32 %v422, %v318
    %v471 = vmul.f32 %v423, %v320
    %v472 = vmul.f32 %v424, %v323
    %v473 = vmul.f32 %v425, %v325
    %v474 = vmul.f32 %v426, %v328
    %v475 = vmul.f32 %v427, %v330
    %v476 = vmul.f32 %v428, %v213
    %v477 = vmul.f32 %v429, %v215
    %v478 = vmul.f32 %v430, %v218
    %v479 = vmul.f32 %v431, %v220
    %v480 = vmul.f32 %v432, %v223
    %v481 = vmul.f32 %v433, %v225
    %v482 = vmul.f32 %v434, %v228
    %v483 = vmul.f32 %v435, %v230
    %v484 = vmul.f32 %v436, %v233
    %v485 = vmul.f32 %v437, %v235
    %v486 = vmul.f32 %v438, %v238
    %v487 = vmul.f32 %v439, %v240
    %v488 = vmul.f32 %v440, %v243
    %v489 = vmul.f32 %v441, %v245
    %v490 = vmul.f32 %v442, %v248
    %v491 = vmul.f32 %v443, %v250
    %v492 = vmul.f32 %v444, %v253
    %v493 = vmul.f32 %v445, %v255
    %v494 = vmul.f32 %v446, %v258
    %v495 = vmul.f32 %v447, %v260
    %v496 = vmul.f32 %v448, %v263
    %v497 = vmul.f32 %v449, %v265
    %v498 = vmul.f32 %v450, %v268
    %v499 = vmul.f32 %v451, %v270
    %v500 = vmul.f32 %v452, %v273
    %v501 = vmul.f32 %v453, %v275
    %v502 = vmul.f32 %v454, %v278
    %v503 = vmul.f32 %v455, %v280
    %v504 = vmul.f32 %v456, %v283
    %v505 = vmul.f32 %v457, %v285
    %v506 = vmul.f32 %v458, %v288
    %v507 = vmul.f32 %v459, %v290
    %v508 = vmul.f32 %v460, %v293
    %v509 = vmul.f32 %v461, %v295
    %v510 = vmul.f32 %v462, %v298
    %v511 = vmul.f32 %v463, %v300
    %v512 = vmul.f32 %v464, %v303
    %v513 = vmul.f32 %v465, %v305
    %v514 = vmul.f32 %v466, %v308
    %v515 = vmul.f32 %v467, %v310
    %v516 = vmul.f32 %v468, %v313
    %v517 = vmul.f32 %v469, %v315
    %v518 = vmul.f32 %v470, %v318
    %v519 = vmul.f32 %v471, %v320
    %v520 = vmul.f32 %v472, %v323
    %v521 = vmul.f32 %v473, %v325
    %v522 = vmul.f32 %v474, %v328
    %v523 = vmul.f32 %v475, %v330
    %v524 = vadd.f32 %v213, %v476
    %v525 = vadd.f32 %v215, %v477
    %v526 = vadd.f32 %v218, %v478
    %v527 = vadd.f32 %v220, %v479
    %v528 = vadd.f32 %v223, %v480
    %v529 = vadd.f32 %v225, %v481
    %v530 = vadd.f32 %v228, %v482
    %v531 = vadd.f32 %v230, %v483
    %v532 = vadd.f32 %v233, %v484
    %v533 = vadd.f32 %v235, %v485
    %v534 = vadd.f32 %v238, %v486
    %v535 = vadd.f32 %v240, %v487
    %v536 = vadd.f32 %v243, %v488
    %v537 = vadd.f32 %v245, %v489
    %v538 = vadd.f32 %v248, %v490
    %v539 = vadd.f32 %v250, %v491
    %v540 = vadd.f32 %v253, %v492
    %v541 = vadd.f32 %v255, %v493
    %v542 = vadd.f32 %v258, %v494
    %v543 = vadd.f32 %v260, %v495
    %v544 = vadd.f32 %v263, %v496
    %v545 = vadd.f32 %v265, %v497
    %v546 = vadd.f32 %v268, %v498
    %v547 = vadd.f32 %v270, %v499
    %v548 = vadd.f32 %v273, %v500
    %v549 = vadd.f32 %v275, %v501
    %v550 = vadd.f32 %v278, %v502
    %v551 = vadd.f32 %v280, %v503
    %v552 = vadd.f32 %v283, %v504
    %v553 = vadd.f32 %v285, %v505
    %v554 = vadd.f32 %v288, %v506
    %v555 = vadd.f32 %v290, %v507
    %v556 = vadd.f32 %v293, %v508
    %v557 = vadd.f32 %v295, %v509
    %v558 = vadd.f32 %v298, %v510
    %v559 = vadd.f32 %v300, %v511
    %v560 = vadd.f32 %v303, %v512
    %v561 = vadd.f32 %v305, %v513
    %v562 = vadd.f32 %v308, %v514
    %v563 = vadd.f32 %v310, %v515
    %v564 = vadd.f32 %v313, %v516
    %v565 = vadd.f32 %v315, %v517
    %v566 = vadd.f32 %v318, %v518
    %v567 = vadd.f32 %v320, %v519
    %v568 = vadd.f32 %v323, %v520
    %v569 = vadd.f32 %v325, %v521
    %v570 = vadd.f32 %v328, %v522
    %v571 = vadd.f32 %v330, %v523
    %v572 = vmul.f32 %v524, 0.7978846
    %v573 = vmul.f32 %v525, 0.7978846
    %v574 = vmul.f32 %v526, 0.7978846
    %v575 = vmul.f32 %v527, 0.7978846
    %v576 = vmul.f32 %v528, 0.7978846
    %v577 = vmul.f32 %v529, 0.7978846
    %v578 = vmul.f32 %v530, 0.7978846
    %v579 = vmul.f32 %v531, 0.7978846
    %v580 = vmul.f32 %v532, 0.7978846
    %v581 = vmul.f32 %v533, 0.7978846
    %v582 = vmul.f32 %v534, 0.7978846
    %v583 = vmul.f32 %v535, 0.7978846
    %v584 = vmul.f32 %v536, 0.7978846
    %v585 = vmul.f32 %v537, 0.7978846
    %v586 = vmul.f32 %v538, 0.7978846
    %v587 = vmul.f32 %v539, 0.7978846
    %v588 = vmul.f32 %v540, 0.7978846
    %v589 = vmul.f32 %v541, 0.7978846
    %v590 = vmul.f32 %v542, 0.7978846
    %v591 = vmul.f32 %v543, 0.7978846
    %v592 = vmul.f32 %v544, 0.7978846
    %v593 = vmul.f32 %v545, 0.7978846
    %v594 = vmul.f32 %v546, 0.7978846
    %v595 = vmul.f32 %v547, 0.7978846
    %v596 = vmul.f32 %v548, 0.7978846
    %v597 = vmul.f32 %v549, 0.7978846
    %v598 = vmul.f32 %v550, 0.7978846
    %v599 = vmul.f32 %v551, 0.7978846
    %v600 = vmul.f32 %v552, 0.7978846
    %v601 = vmul.f32 %v553, 0.7978846
    %v602 = vmul.f32 %v554, 0.7978846
    %v603 = vmul.f32 %v555, 0.7978846
    %v604 = vmul.f32 %v556, 0.7978846
    %v605 = vmul.f32 %v557, 0.7978846
    %v606 = vmul.f32 %v558, 0.7978846
    %v607 = vmul.f32 %v559, 0.7978846
    %v608 = vmul.f32 %v560, 0.7978846
    %v609 = vmul.f32 %v561, 0.7978846
    %v610 = vmul.f32 %v562, 0.7978846
    %v611 = vmul.f32 %v563, 0.7978846
    %v612 = vmul.f32 %v564, 0.7978846
    %v613 = vmul.f32 %v565, 0.7978846
    %v614 = vmul.f32 %v566, 0.7978846
    %v615 = vmul.f32 %v567, 0.7978846
    %v616 = vmul.f32 %v568, 0.7978846
    %v617 = vmul.f32 %v569, 0.7978846
    %v618 = vmul.f32 %v570, 0.7978846
    %v619 = vmul.f32 %v571, 0.7978846
    %v620 = vtanh.pop %v572
    %v621 = vtanh.pop %v573
    %v622 = vtanh.pop %v574
    %v623 = vtanh.pop %v575
    %v624 = vtanh.pop %v576
    %v625 = vtanh.pop %v577
    %v626 = vtanh.pop %v578
    %v627 = vtanh.pop %v579
    %v628 = vtanh.pop %v580
    %v629 = vtanh.pop %v581
    %v630 = vtanh.pop %v582
    %v631 = vtanh.pop %v583
    %v632 = vtanh.pop %v584
    %v633 = vtanh.pop %v585
    %v634 = vtanh.pop %v586
    %v635 = vtanh.pop %v587
    %v636 = vtanh.pop %v588
    %v637 = vtanh.pop %v589
    %v638 = vtanh.pop %v590
    %v639 = vtanh.pop %v591
    %v640 = vtanh.pop %v592
    %v641 = vtanh.pop %v593
    %v642 = vtanh.pop %v594
    %v643 = vtanh.pop %v595
    %v644 = vtanh.pop %v596
    %v645 = vtanh.pop %v597
    %v646 = vtanh.pop %v598
    %v647 = vtanh.pop %v599
    %v648 = vtanh.pop %v600
    %v649 = vtanh.pop %v601
    %v650 = vtanh.pop %v602
    %v651 = vtanh.pop %v603
    %v652 = vtanh.pop %v604
    %v653 = vtanh.pop %v605
    %v654 = vtanh.pop %v606
    %v655 = vtanh.pop %v607
    %v656 = vtanh.pop %v608
    %v657 = vtanh.pop %v609
    %v658 = vtanh.pop %v610
    %v659 = vtanh.pop %v611
    %v660 = vtanh.pop %v612
    %v661 = vtanh.pop %v613
    %v662 = vtanh.pop %v614
    %v663 = vtanh.pop %v615
    %v664 = vtanh.pop %v616
    %v665 = vtanh.pop %v617
    %v666 = vtanh.pop %v618
    %v667 = vtanh.pop %v619
    %v668 = vadd.f32 %v620, 1.0
    %v669 = vadd.f32 %v621, 1.0
    %v670 = vadd.f32 %v622, 1.0
    %v671 = vadd.f32 %v623, 1.0
    %v672 = vadd.f32 %v624, 1.0
    %v673 = vadd.f32 %v625, 1.0
    %v674 = vadd.f32 %v626, 1.0
    %v675 = vadd.f32 %v627, 1.0
    %v676 = vadd.f32 %v628, 1.0
    %v677 = vadd.f32 %v629, 1.0
    %v678 = vadd.f32 %v630, 1.0
    %v679 = vadd.f32 %v631, 1.0
    %v680 = vadd.f32 %v632, 1.0
    %v681 = vadd.f32 %v633, 1.0
    %v682 = vadd.f32 %v634, 1.0
    %v683 = vadd.f32 %v635, 1.0
    %v684 = vadd.f32 %v636, 1.0
    %v685 = vadd.f32 %v637, 1.0
    %v686 = vadd.f32 %v638, 1.0
    %v687 = vadd.f32 %v639, 1.0
    %v688 = vadd.f32 %v640, 1.0
    %v689 = vadd.f32 %v641, 1.0
    %v690 = vadd.f32 %v642, 1.0
    %v691 = vadd.f32 %v643, 1.0
    %v692 = vadd.f32 %v644, 1.0
    %v693 = vadd.f32 %v645, 1.0
    %v694 = vadd.f32 %v646, 1.0
    %v695 = vadd.f32 %v647, 1.0
    %v696 = vadd.f32 %v648, 1.0
    %v697 = vadd.f32 %v649, 1.0
    %v698 = vadd.f32 %v650, 1.0
    %v699 = vadd.f32 %v651, 1.0
    %v700 = vadd.f32 %v652, 1.0
    %v701 = vadd.f32 %v653, 1.0
    %v702 = vadd.f32 %v654, 1.0
    %v703 = vadd.f32 %v655, 1.0
    %v704 = vadd.f32 %v656, 1.0
    %v705 = vadd.f32 %v657, 1.0
    %v706 = vadd.f32 %v658, 1.0
    %v707 = vadd.f32 %v659, 1.0
    %v708 = vadd.f32 %v660, 1.0
    %v709 = vadd.f32 %v661, 1.0
    %v710 = vadd.f32 %v662, 1.0
    %v711 = vadd.f32 %v663, 1.0
    %v712 = vadd.f32 %v664, 1.0
    %v713 = vadd.f32 %v665, 1.0
    %v714 = vadd.f32 %v666, 1.0
    %v715 = vadd.f32 %v667, 1.0
    %v716 = vmul.f32 %v332, %v668
    %v717 = vmul.f32 %v333, %v669
    %v718 = vmul.f32 %v334, %v670
    %v719 = vmul.f32 %v335, %v671
    %v720 = vmul.f32 %v336, %v672
    %v721 = vmul.f32 %v337, %v673
    %v722 = vmul.f32 %v338, %v674
    %v723 = vmul.f32 %v339, %v675
    %v724 = vmul.f32 %v340, %v676
    %v725 = vmul.f32 %v341, %v677
    %v726 = vmul.f32 %v342, %v678
    %v727 = vmul.f32 %v343, %v679
    %v728 = vmul.f32 %v344, %v680
    %v729 = vmul.f32 %v345, %v681
    %v730 = vmul.f32 %v346, %v682
    %v731 = vmul.f32 %v347, %v683
    %v732 = vmul.f32 %v348, %v684
    %v733 = vmul.f32 %v349, %v685
    %v734 = vmul.f32 %v350, %v686
    %v735 = vmul.f32 %v351, %v687
    %v736 = vmul.f32 %v352, %v688
    %v737 = vmul.f32 %v353, %v689
    %v738 = vmul.f32 %v354, %v690
    %v739 = vmul.f32 %v355, %v691
    %v740 = vmul.f32 %v356, %v692
    %v741 = vmul.f32 %v357, %v693
    %v742 = vmul.f32 %v358, %v694
    %v743 = vmul.f32 %v359, %v695
    %v744 = vmul.f32 %v360, %v696
    %v745 = vmul.f32 %v361, %v697
    %v746 = vmul.f32 %v362, %v698
    %v747 = vmul.f32 %v363, %v699
    %v748 = vmul.f32 %v364, %v700
    %v749 = vmul.f32 %v365, %v701
    %v750 = vmul.f32 %v366, %v702
    %v751 = vmul.f32 %v367, %v703
    %v752 = vmul.f32 %v368, %v704
    %v753 = vmul.f32 %v369, %v705
    %v754 = vmul.f32 %v370, %v706
    %v755 = vmul.f32 %v371, %v707
    %v756 = vmul.f32 %v372, %v708
    %v757 = vmul.f32 %v373, %v709
    %v758 = vmul.f32 %v374, %v710
    %v759 = vmul.f32 %v375, %v711
    %v760 = vmul.f32 %v376, %v712
    %v761 = vmul.f32 %v377, %v713
    %v762 = vmul.f32 %v378, %v714
    %v763 = vmul.f32 %v379, %v715
    %v764 = vpack.c.bf16 %v717, %v716
    %v765 = vpack.c.bf16 %v719, %v718
    %v766 = vpack.c.bf16 %v721, %v720
    %v767 = vpack.c.bf16 %v723, %v722
    %v768 = vpack.c.bf16 %v725, %v724
    %v769 = vpack.c.bf16 %v727, %v726
    %v770 = vpack.c.bf16 %v729, %v728
    %v771 = vpack.c.bf16 %v731, %v730
    %v772 = vpack.c.bf16 %v733, %v732
    %v773 = vpack.c.bf16 %v735, %v734
    %v774 = vpack.c.bf16 %v737, %v736
    %v775 = vpack.c.bf16 %v739, %v738
    %v776 = vpack.c.bf16 %v741, %v740
    %v777 = vpack.c.bf16 %v743, %v742
    %v778 = vpack.c.bf16 %v745, %v744
    %v779 = vpack.c.bf16 %v747, %v746
    %v780 = vpack.c.bf16 %v749, %v748
    %v781 = vpack.c.bf16 %v751, %v750
    %v782 = vpack.c.bf16 %v753, %v752
    %v783 = vpack.c.bf16 %v755, %v754
    %v784 = vpack.c.bf16 %v757, %v756
    %v785 = vpack.c.bf16 %v759, %v758
    %v786 = vpack.c.bf16 %v761, %v760
    %v787 = vpack.c.bf16 %v763, %v762
    %v788 = vld [vmem:[%s3] sm:$0xf]
    %v789 = vld [vmem:[%s3 + $0x4] sm:$0xf]
    %v790 = vld [vmem:[%s3 + $0x8] sm:$0xf]
    %v791 = vld [vmem:[%s3 + $0xc] sm:$0xf]
    %v792 = vld [vmem:[%s3 + $0x10] sm:$0xf]
    %v793 = vld [vmem:[%s3 + $0x14] sm:$0xf]
    %v794 = vld [vmem:[%s3 + $0x18] sm:$0xf]
    %v795 = vld [vmem:[%s3 + $0x1c] sm:$0xf]
    %v796 = vld [vmem:[%s3 + $0x20] sm:$0xf]
    %v797 = vld [vmem:[%s3 + $0x24] sm:$0xf]
    %v798 = vld [vmem:[%s3 + $0x28] sm:$0xf]
    %v799 = vld [vmem:[%s3 + $0x2c] sm:$0xf]
    %v800 = vld [vmem:[%s3 + $0x30] sm:$0xf]
    %v801 = vld [vmem:[%s3 + $0x34] sm:$0xf]
    %v802 = vld [vmem:[%s3 + $0x38] sm:$0xf]
    %v803 = vld [vmem:[%s3 + $0x3c] sm:$0xf]
    %v804 = vld [vmem:[%s4] sm:$0x1]
    %v806 = vperm.slane %v804, 0
    %v824 = vunpack.c.l.b16 %v788
    %v825 = vunpack.c.l.b16 %v789
    %v826 = vunpack.c.l.b16 %v790
    %v827 = vunpack.c.l.b16 %v791
    %v828 = vunpack.c.l.b16 %v792
    %v829 = vunpack.c.l.b16 %v793
    %v830 = vunpack.c.l.b16 %v794
    %v831 = vunpack.c.l.b16 %v795
    %v832 = vunpack.c.l.b16 %v796
    %v833 = vunpack.c.l.b16 %v797
    %v834 = vunpack.c.l.b16 %v798
    %v835 = vunpack.c.l.b16 %v799
    %v836 = vunpack.c.l.b16 %v800
    %v837 = vunpack.c.l.b16 %v801
    %v838 = vunpack.c.l.b16 %v802
    %v839 = vunpack.c.l.b16 %v803
    %v840 = vpack.c.b16 %v825, %v824
    %v841 = vpack.c.b16 %v827, %v826
    %v842 = vpack.c.b16 %v829, %v828
    %v843 = vpack.c.b16 %v831, %v830
    %v844 = vpack.c.b16 %v833, %v832
    %v845 = vpack.c.b16 %v835, %v834
    %v846 = vpack.c.b16 %v837, %v836
    %v847 = vpack.c.b16 %v839, %v838
    %856 = vmatpush.bf16.msra.mxu0 %v847
    %857 = vmatpush.bf16.msra.mxu0 %v846
    %858 = vmatpush.bf16.msra.mxu0 %v845
    %859 = vmatpush.bf16.msra.mxu0 %v844
    %860 = vmatpush.bf16.msra.mxu0 %v843
    %861 = vmatpush.bf16.msra.mxu0 %v842
    %862 = vmatpush.bf16.msra.mxu0 %v841
    %863 = vmatpush.bf16.msra.mxu0 %v840
    %864 = vmatmul.bf16.gmra.mxu0 %v764
    %v865 = vpop.f32.mrf.mxu0
    %v866 = vadd.f32 %v806, %v865
    %v867 = vpop.f32.mrf.mxu0
    %v868 = vadd.f32 %v806, %v867
    %869 = vmatmul.bf16.gmra.mxu0 %v765
    %v870 = vpop.f32.mrf.mxu0
    %v871 = vadd.f32 %v806, %v870
    %v872 = vpop.f32.mrf.mxu0
    %v873 = vadd.f32 %v806, %v872
    %874 = vmatmul.bf16.gmra.mxu0 %v766
    %v875 = vpop.f32.mrf.mxu0
    %v876 = vadd.f32 %v806, %v875
    %v877 = vpop.f32.mrf.mxu0
    %v878 = vadd.f32 %v806, %v877
    %879 = vmatmul.bf16.gmra.mxu0 %v767
    %v880 = vpop.f32.mrf.mxu0
    %v881 = vadd.f32 %v806, %v880
    %v882 = vpop.f32.mrf.mxu0
    %v883 = vadd.f32 %v806, %v882
    %884 = vmatmul.bf16.gmra.mxu0 %v768
    %v885 = vpop.f32.mrf.mxu0
    %v886 = vadd.f32 %v806, %v885
    %v887 = vpop.f32.mrf.mxu0
    %v888 = vadd.f32 %v806, %v887
    %889 = vmatmul.bf16.gmra.mxu0 %v769
    %v890 = vpop.f32.mrf.mxu0
    %v891 = vadd.f32 %v806, %v890
    %v892 = vpop.f32.mrf.mxu0
    %v893 = vadd.f32 %v806, %v892
    %894 = vmatmul.bf16.gmra.mxu0 %v770
    %v895 = vpop.f32.mrf.mxu0
    %v896 = vadd.f32 %v806, %v895
    %v897 = vpop.f32.mrf.mxu0
    %v898 = vadd.f32 %v806, %v897
    %899 = vmatmul.bf16.gmra.mxu0 %v771
    %v900 = vpop.f32.mrf.mxu0
    %v901 = vadd.f32 %v806, %v900
    %v902 = vpop.f32.mrf.mxu0
    %v903 = vadd.f32 %v806, %v902
    %904 = vmatmul.bf16.gmra.mxu0 %v772
    %v905 = vpop.f32.mrf.mxu0
    %v906 = vadd.f32 %v806, %v905
    %v907 = vpop.f32.mrf.mxu0
    %v908 = vadd.f32 %v806, %v907
    %909 = vmatmul.bf16.gmra.mxu0 %v773
    %v910 = vpop.f32.mrf.mxu0
    %v911 = vadd.f32 %v806, %v910
    %v912 = vpop.f32.mrf.mxu0
    %v913 = vadd.f32 %v806, %v912
    %914 = vmatmul.bf16.gmra.mxu0 %v774
    %v915 = vpop.f32.mrf.mxu0
    %v916 = vadd.f32 %v806, %v915
    %v917 = vpop.f32.mrf.mxu0
    %v918 = vadd.f32 %v806, %v917
    %919 = vmatmul.bf16.gmra.mxu0 %v775
    %v920 = vpop.f32.mrf.mxu0
    %v921 = vadd.f32 %v806, %v920
    %v922 = vpop.f32.mrf.mxu0
    %v923 = vadd.f32 %v806, %v922
    %924 = vmatmul.bf16.gmra.mxu0 %v776
    %v925 = vpop.f32.mrf.mxu0
    %v926 = vadd.f32 %v806, %v925
    %v927 = vpop.f32.mrf.mxu0
    %v928 = vadd.f32 %v806, %v927
    %929 = vmatmul.bf16.gmra.mxu0 %v777
    %v930 = vpop.f32.mrf.mxu0
    %v931 = vadd.f32 %v806, %v930
    %v932 = vpop.f32.mrf.mxu0
    %v933 = vadd.f32 %v806, %v932
    %934 = vmatmul.bf16.gmra.mxu0 %v778
    %v935 = vpop.f32.mrf.mxu0
    %v936 = vadd.f32 %v806, %v935
    %v937 = vpop.f32.mrf.mxu0
    %v938 = vadd.f32 %v806, %v937
    %939 = vmatmul.bf16.gmra.mxu0 %v779
    %v940 = vpop.f32.mrf.mxu0
    %v941 = vadd.f32 %v806, %v940
    %v942 = vpop.f32.mrf.mxu0
    %v943 = vadd.f32 %v806, %v942
    %944 = vmatmul.bf16.gmra.mxu0 %v780
    %v945 = vpop.f32.mrf.mxu0
    %v946 = vadd.f32 %v806, %v945
    %v947 = vpop.f32.mrf.mxu0
    %v948 = vadd.f32 %v806, %v947
    %949 = vmatmul.bf16.gmra.mxu0 %v781
    %v950 = vpop.f32.mrf.mxu0
    %v951 = vadd.f32 %v806, %v950
    %v952 = vpop.f32.mrf.mxu0
    %v953 = vadd.f32 %v806, %v952
    %954 = vmatmul.bf16.gmra.mxu0 %v782
    %v955 = vpop.f32.mrf.mxu0
    %v956 = vadd.f32 %v806, %v955
    %v957 = vpop.f32.mrf.mxu0
    %v958 = vadd.f32 %v806, %v957
    %959 = vmatmul.bf16.gmra.mxu0 %v783
    %v960 = vpop.f32.mrf.mxu0
    %v961 = vadd.f32 %v806, %v960
    %v962 = vpop.f32.mrf.mxu0
    %v963 = vadd.f32 %v806, %v962
    %964 = vmatmul.bf16.gmra.mxu0 %v784
    %v965 = vpop.f32.mrf.mxu0
    %v966 = vadd.f32 %v806, %v965
    %v967 = vpop.f32.mrf.mxu0
    %v968 = vadd.f32 %v806, %v967
    %969 = vmatmul.bf16.gmra.mxu0 %v785
    %v970 = vpop.f32.mrf.mxu0
    %v971 = vadd.f32 %v806, %v970
    %v972 = vpop.f32.mrf.mxu0
    %v973 = vadd.f32 %v806, %v972
    %974 = vmatmul.bf16.gmra.mxu0 %v786
    %v975 = vpop.f32.mrf.mxu0
    %v976 = vadd.f32 %v806, %v975
    %v977 = vpop.f32.mrf.mxu0
    %v978 = vadd.f32 %v806, %v977
    %979 = vmatmul.bf16.gmra.mxu0 %v787
    %v980 = vpop.f32.mrf.mxu0
    %v981 = vadd.f32 %v806, %v980
    %v982 = vpop.f32.mrf.mxu0
    %v983 = vadd.f32 %v806, %v982
    %984 = vdwg.mxu0
    %v985 = vmul.f32 %v866, 0.5
    %v986 = vmul.f32 %v868, 0.5
    %v987 = vmul.f32 %v871, 0.5
    %v988 = vmul.f32 %v873, 0.5
    %v989 = vmul.f32 %v876, 0.5
    %v990 = vmul.f32 %v878, 0.5
    %v991 = vmul.f32 %v881, 0.5
    %v992 = vmul.f32 %v883, 0.5
    %v993 = vmul.f32 %v886, 0.5
    %v994 = vmul.f32 %v888, 0.5
    %v995 = vmul.f32 %v891, 0.5
    %v996 = vmul.f32 %v893, 0.5
    %v997 = vmul.f32 %v896, 0.5
    %v998 = vmul.f32 %v898, 0.5
    %v999 = vmul.f32 %v901, 0.5
    %v1000 = vmul.f32 %v903, 0.5
    %v1001 = vmul.f32 %v906, 0.5
    %v1002 = vmul.f32 %v908, 0.5
    %v1003 = vmul.f32 %v911, 0.5
    %v1004 = vmul.f32 %v913, 0.5
    %v1005 = vmul.f32 %v916, 0.5
    %v1006 = vmul.f32 %v918, 0.5
    %v1007 = vmul.f32 %v921, 0.5
    %v1008 = vmul.f32 %v923, 0.5
    %v1009 = vmul.f32 %v926, 0.5
    %v1010 = vmul.f32 %v928, 0.5
    %v1011 = vmul.f32 %v931, 0.5
    %v1012 = vmul.f32 %v933, 0.5
    %v1013 = vmul.f32 %v936, 0.5
    %v1014 = vmul.f32 %v938, 0.5
    %v1015 = vmul.f32 %v941, 0.5
    %v1016 = vmul.f32 %v943, 0.5
    %v1017 = vmul.f32 %v946, 0.5
    %v1018 = vmul.f32 %v948, 0.5
    %v1019 = vmul.f32 %v951, 0.5
    %v1020 = vmul.f32 %v953, 0.5
    %v1021 = vmul.f32 %v956, 0.5
    %v1022 = vmul.f32 %v958, 0.5
    %v1023 = vmul.f32 %v961, 0.5
    %v1024 = vmul.f32 %v963, 0.5
    %v1025 = vmul.f32 %v966, 0.5
    %v1026 = vmul.f32 %v968, 0.5
    %v1027 = vmul.f32 %v971, 0.5
    %v1028 = vmul.f32 %v973, 0.5
    %v1029 = vmul.f32 %v976, 0.5
    %v1030 = vmul.f32 %v978, 0.5
    %v1031 = vmul.f32 %v981, 0.5
    %v1032 = vmul.f32 %v983, 0.5
    %v1033 = vmul.f32 %v866, 0.044715
    %v1034 = vmul.f32 %v868, 0.044715
    %v1035 = vmul.f32 %v871, 0.044715
    %v1036 = vmul.f32 %v873, 0.044715
    %v1037 = vmul.f32 %v876, 0.044715
    %v1038 = vmul.f32 %v878, 0.044715
    %v1039 = vmul.f32 %v881, 0.044715
    %v1040 = vmul.f32 %v883, 0.044715
    %v1041 = vmul.f32 %v886, 0.044715
    %v1042 = vmul.f32 %v888, 0.044715
    %v1043 = vmul.f32 %v891, 0.044715
    %v1044 = vmul.f32 %v893, 0.044715
    %v1045 = vmul.f32 %v896, 0.044715
    %v1046 = vmul.f32 %v898, 0.044715
    %v1047 = vmul.f32 %v901, 0.044715
    %v1048 = vmul.f32 %v903, 0.044715
    %v1049 = vmul.f32 %v906, 0.044715
    %v1050 = vmul.f32 %v908, 0.044715
    %v1051 = vmul.f32 %v911, 0.044715
    %v1052 = vmul.f32 %v913, 0.044715
    %v1053 = vmul.f32 %v916, 0.044715
    %v1054 = vmul.f32 %v918, 0.044715
    %v1055 = vmul.f32 %v921, 0.044715
    %v1056 = vmul.f32 %v923, 0.044715
    %v1057 = vmul.f32 %v926, 0.044715
    %v1058 = vmul.f32 %v928, 0.044715
    %v1059 = vmul.f32 %v931, 0.044715
    %v1060 = vmul.f32 %v933, 0.044715
    %v1061 = vmul.f32 %v936, 0.044715
    %v1062 = vmul.f32 %v938, 0.044715
    %v1063 = vmul.f32 %v941, 0.044715
    %v1064 = vmul.f32 %v943, 0.044715
    %v1065 = vmul.f32 %v946, 0.044715
    %v1066 = vmul.f32 %v948, 0.044715
    %v1067 = vmul.f32 %v951, 0.044715
    %v1068 = vmul.f32 %v953, 0.044715
    %v1069 = vmul.f32 %v956, 0.044715
    %v1070 = vmul.f32 %v958, 0.044715
    %v1071 = vmul.f32 %v961, 0.044715
    %v1072 = vmul.f32 %v963, 0.044715
    %v1073 = vmul.f32 %v966, 0.044715
    %v1074 = vmul.f32 %v968, 0.044715
    %v1075 = vmul.f32 %v971, 0.044715
    %v1076 = vmul.f32 %v973, 0.044715
    %v1077 = vmul.f32 %v976, 0.044715
    %v1078 = vmul.f32 %v978, 0.044715
    %v1079 = vmul.f32 %v981, 0.044715
    %v1080 = vmul.f32 %v983, 0.044715
    %v1081 = vmul.f32 %v1033, %v866
    %v1082 = vmul.f32 %v1034, %v868
    %v1083 = vmul.f32 %v1035, %v871
    %v1084 = vmul.f32 %v1036, %v873
    %v1085 = vmul.f32 %v1037, %v876
    %v1086 = vmul.f32 %v1038, %v878
    %v1087 = vmul.f32 %v1039, %v881
    %v1088 = vmul.f32 %v1040, %v883
    %v1089 = vmul.f32 %v1041, %v886
    %v1090 = vmul.f32 %v1042, %v888
    %v1091 = vmul.f32 %v1043, %v891
    %v1092 = vmul.f32 %v1044, %v893
    %v1093 = vmul.f32 %v1045, %v896
    %v1094 = vmul.f32 %v1046, %v898
    %v1095 = vmul.f32 %v1047, %v901
    %v1096 = vmul.f32 %v1048, %v903
    %v1097 = vmul.f32 %v1049, %v906
    %v1098 = vmul.f32 %v1050, %v908
    %v1099 = vmul.f32 %v1051, %v911
    %v1100 = vmul.f32 %v1052, %v913
    %v1101 = vmul.f32 %v1053, %v916
    %v1102 = vmul.f32 %v1054, %v918
    %v1103 = vmul.f32 %v1055, %v921
    %v1104 = vmul.f32 %v1056, %v923
    %v1105 = vmul.f32 %v1057, %v926
    %v1106 = vmul.f32 %v1058, %v928
    %v1107 = vmul.f32 %v1059, %v931
    %v1108 = vmul.f32 %v1060, %v933
    %v1109 = vmul.f32 %v1061, %v936
    %v1110 = vmul.f32 %v1062, %v938
    %v1111 = vmul.f32 %v1063, %v941
    %v1112 = vmul.f32 %v1064, %v943
    %v1113 = vmul.f32 %v1065, %v946
    %v1114 = vmul.f32 %v1066, %v948
    %v1115 = vmul.f32 %v1067, %v951
    %v1116 = vmul.f32 %v1068, %v953
    %v1117 = vmul.f32 %v1069, %v956
    %v1118 = vmul.f32 %v1070, %v958
    %v1119 = vmul.f32 %v1071, %v961
    %v1120 = vmul.f32 %v1072, %v963
    %v1121 = vmul.f32 %v1073, %v966
    %v1122 = vmul.f32 %v1074, %v968
    %v1123 = vmul.f32 %v1075, %v971
    %v1124 = vmul.f32 %v1076, %v973
    %v1125 = vmul.f32 %v1077, %v976
    %v1126 = vmul.f32 %v1078, %v978
    %v1127 = vmul.f32 %v1079, %v981
    %v1128 = vmul.f32 %v1080, %v983
    %v1129 = vmul.f32 %v1081, %v866
    %v1130 = vmul.f32 %v1082, %v868
    %v1131 = vmul.f32 %v1083, %v871
    %v1132 = vmul.f32 %v1084, %v873
    %v1133 = vmul.f32 %v1085, %v876
    %v1134 = vmul.f32 %v1086, %v878
    %v1135 = vmul.f32 %v1087, %v881
    %v1136 = vmul.f32 %v1088, %v883
    %v1137 = vmul.f32 %v1089, %v886
    %v1138 = vmul.f32 %v1090, %v888
    %v1139 = vmul.f32 %v1091, %v891
    %v1140 = vmul.f32 %v1092, %v893
    %v1141 = vmul.f32 %v1093, %v896
    %v1142 = vmul.f32 %v1094, %v898
    %v1143 = vmul.f32 %v1095, %v901
    %v1144 = vmul.f32 %v1096, %v903
    %v1145 = vmul.f32 %v1097, %v906
    %v1146 = vmul.f32 %v1098, %v908
    %v1147 = vmul.f32 %v1099, %v911
    %v1148 = vmul.f32 %v1100, %v913
    %v1149 = vmul.f32 %v1101, %v916
    %v1150 = vmul.f32 %v1102, %v918
    %v1151 = vmul.f32 %v1103, %v921
    %v1152 = vmul.f32 %v1104, %v923
    %v1153 = vmul.f32 %v1105, %v926
    %v1154 = vmul.f32 %v1106, %v928
    %v1155 = vmul.f32 %v1107, %v931
    %v1156 = vmul.f32 %v1108, %v933
    %v1157 = vmul.f32 %v1109, %v936
    %v1158 = vmul.f32 %v1110, %v938
    %v1159 = vmul.f32 %v1111, %v941
    %v1160 = vmul.f32 %v1112, %v943
    %v1161 = vmul.f32 %v1113, %v946
    %v1162 = vmul.f32 %v1114, %v948
    %v1163 = vmul.f32 %v1115, %v951
    %v1164 = vmul.f32 %v1116, %v953
    %v1165 = vmul.f32 %v1117, %v956
    %v1166 = vmul.f32 %v1118, %v958
    %v1167 = vmul.f32 %v1119, %v961
    %v1168 = vmul.f32 %v1120, %v963
    %v1169 = vmul.f32 %v1121, %v966
    %v1170 = vmul.f32 %v1122, %v968
    %v1171 = vmul.f32 %v1123, %v971
    %v1172 = vmul.f32 %v1124, %v973
    %v1173 = vmul.f32 %v1125, %v976
    %v1174 = vmul.f32 %v1126, %v978
    %v1175 = vmul.f32 %v1127, %v981
    %v1176 = vmul.f32 %v1128, %v983
    %v1177 = vadd.f32 %v866, %v1129
    %v1178 = vadd.f32 %v868, %v1130
    %v1179 = vadd.f32 %v871, %v1131
    %v1180 = vadd.f32 %v873, %v1132
    %v1181 = vadd.f32 %v876, %v1133
    %v1182 = vadd.f32 %v878, %v1134
    %v1183 = vadd.f32 %v881, %v1135
    %v1184 = vadd.f32 %v883, %v1136
    %v1185 = vadd.f32 %v886, %v1137
    %v1186 = vadd.f32 %v888, %v1138
    %v1187 = vadd.f32 %v891, %v1139
    %v1188 = vadd.f32 %v893, %v1140
    %v1189 = vadd.f32 %v896, %v1141
    %v1190 = vadd.f32 %v898, %v1142
    %v1191 = vadd.f32 %v901, %v1143
    %v1192 = vadd.f32 %v903, %v1144
    %v1193 = vadd.f32 %v906, %v1145
    %v1194 = vadd.f32 %v908, %v1146
    %v1195 = vadd.f32 %v911, %v1147
    %v1196 = vadd.f32 %v913, %v1148
    %v1197 = vadd.f32 %v916, %v1149
    %v1198 = vadd.f32 %v918, %v1150
    %v1199 = vadd.f32 %v921, %v1151
    %v1200 = vadd.f32 %v923, %v1152
    %v1201 = vadd.f32 %v926, %v1153
    %v1202 = vadd.f32 %v928, %v1154
    %v1203 = vadd.f32 %v931, %v1155
    %v1204 = vadd.f32 %v933, %v1156
    %v1205 = vadd.f32 %v936, %v1157
    %v1206 = vadd.f32 %v938, %v1158
    %v1207 = vadd.f32 %v941, %v1159
    %v1208 = vadd.f32 %v943, %v1160
    %v1209 = vadd.f32 %v946, %v1161
    %v1210 = vadd.f32 %v948, %v1162
    %v1211 = vadd.f32 %v951, %v1163
    %v1212 = vadd.f32 %v953, %v1164
    %v1213 = vadd.f32 %v956, %v1165
    %v1214 = vadd.f32 %v958, %v1166
    %v1215 = vadd.f32 %v961, %v1167
    %v1216 = vadd.f32 %v963, %v1168
    %v1217 = vadd.f32 %v966, %v1169
    %v1218 = vadd.f32 %v968, %v1170
    %v1219 = vadd.f32 %v971, %v1171
    %v1220 = vadd.f32 %v973, %v1172
    %v1221 = vadd.f32 %v976, %v1173
    %v1222 = vadd.f32 %v978, %v1174
    %v1223 = vadd.f32 %v981, %v1175
    %v1224 = vadd.f32 %v983, %v1176
    %v1225 = vmul.f32 %v1177, 0.7978846
    %v1226 = vmul.f32 %v1178, 0.7978846
    %v1227 = vmul.f32 %v1179, 0.7978846
    %v1228 = vmul.f32 %v1180, 0.7978846
    %v1229 = vmul.f32 %v1181, 0.7978846
    %v1230 = vmul.f32 %v1182, 0.7978846
    %v1231 = vmul.f32 %v1183, 0.7978846
    %v1232 = vmul.f32 %v1184, 0.7978846
    %v1233 = vmul.f32 %v1185, 0.7978846
    %v1234 = vmul.f32 %v1186, 0.7978846
    %v1235 = vmul.f32 %v1187, 0.7978846
    %v1236 = vmul.f32 %v1188, 0.7978846
    %v1237 = vmul.f32 %v1189, 0.7978846
    %v1238 = vmul.f32 %v1190, 0.7978846
    %v1239 = vmul.f32 %v1191, 0.7978846
    %v1240 = vmul.f32 %v1192, 0.7978846
    %v1241 = vmul.f32 %v1193, 0.7978846
    %v1242 = vmul.f32 %v1194, 0.7978846
    %v1243 = vmul.f32 %v1195, 0.7978846
    %v1244 = vmul.f32 %v1196, 0.7978846
    %v1245 = vmul.f32 %v1197, 0.7978846
    %v1246 = vmul.f32 %v1198, 0.7978846
    %v1247 = vmul.f32 %v1199, 0.7978846
    %v1248 = vmul.f32 %v1200, 0.7978846
    %v1249 = vmul.f32 %v1201, 0.7978846
    %v1250 = vmul.f32 %v1202, 0.7978846
    %v1251 = vmul.f32 %v1203, 0.7978846
    %v1252 = vmul.f32 %v1204, 0.7978846
    %v1253 = vmul.f32 %v1205, 0.7978846
    %v1254 = vmul.f32 %v1206, 0.7978846
    %v1255 = vmul.f32 %v1207, 0.7978846
    %v1256 = vmul.f32 %v1208, 0.7978846
    %v1257 = vmul.f32 %v1209, 0.7978846
    %v1258 = vmul.f32 %v1210, 0.7978846
    %v1259 = vmul.f32 %v1211, 0.7978846
    %v1260 = vmul.f32 %v1212, 0.7978846
    %v1261 = vmul.f32 %v1213, 0.7978846
    %v1262 = vmul.f32 %v1214, 0.7978846
    %v1263 = vmul.f32 %v1215, 0.7978846
    %v1264 = vmul.f32 %v1216, 0.7978846
    %v1265 = vmul.f32 %v1217, 0.7978846
    %v1266 = vmul.f32 %v1218, 0.7978846
    %v1267 = vmul.f32 %v1219, 0.7978846
    %v1268 = vmul.f32 %v1220, 0.7978846
    %v1269 = vmul.f32 %v1221, 0.7978846
    %v1270 = vmul.f32 %v1222, 0.7978846
    %v1271 = vmul.f32 %v1223, 0.7978846
    %v1272 = vmul.f32 %v1224, 0.7978846
    %v1273 = vtanh.pop %v1225
    %v1274 = vtanh.pop %v1226
    %v1275 = vtanh.pop %v1227
    %v1276 = vtanh.pop %v1228
    %v1277 = vtanh.pop %v1229
    %v1278 = vtanh.pop %v1230
    %v1279 = vtanh.pop %v1231
    %v1280 = vtanh.pop %v1232
    %v1281 = vtanh.pop %v1233
    %v1282 = vtanh.pop %v1234
    %v1283 = vtanh.pop %v1235
    %v1284 = vtanh.pop %v1236
    %v1285 = vtanh.pop %v1237
    %v1286 = vtanh.pop %v1238
    %v1287 = vtanh.pop %v1239
    %v1288 = vtanh.pop %v1240
    %v1289 = vtanh.pop %v1241
    %v1290 = vtanh.pop %v1242
    %v1291 = vtanh.pop %v1243
    %v1292 = vtanh.pop %v1244
    %v1293 = vtanh.pop %v1245
    %v1294 = vtanh.pop %v1246
    %v1295 = vtanh.pop %v1247
    %v1296 = vtanh.pop %v1248
    %v1297 = vtanh.pop %v1249
    %v1298 = vtanh.pop %v1250
    %v1299 = vtanh.pop %v1251
    %v1300 = vtanh.pop %v1252
    %v1301 = vtanh.pop %v1253
    %v1302 = vtanh.pop %v1254
    %v1303 = vtanh.pop %v1255
    %v1304 = vtanh.pop %v1256
    %v1305 = vtanh.pop %v1257
    %v1306 = vtanh.pop %v1258
    %v1307 = vtanh.pop %v1259
    %v1308 = vtanh.pop %v1260
    %v1309 = vtanh.pop %v1261
    %v1310 = vtanh.pop %v1262
    %v1311 = vtanh.pop %v1263
    %v1312 = vtanh.pop %v1264
    %v1313 = vtanh.pop %v1265
    %v1314 = vtanh.pop %v1266
    %v1315 = vtanh.pop %v1267
    %v1316 = vtanh.pop %v1268
    %v1317 = vtanh.pop %v1269
    %v1318 = vtanh.pop %v1270
    %v1319 = vtanh.pop %v1271
    %v1320 = vtanh.pop %v1272
    %v1321 = vadd.f32 %v1273, 1.0
    %v1322 = vadd.f32 %v1274, 1.0
    %v1323 = vadd.f32 %v1275, 1.0
    %v1324 = vadd.f32 %v1276, 1.0
    %v1325 = vadd.f32 %v1277, 1.0
    %v1326 = vadd.f32 %v1278, 1.0
    %v1327 = vadd.f32 %v1279, 1.0
    %v1328 = vadd.f32 %v1280, 1.0
    %v1329 = vadd.f32 %v1281, 1.0
    %v1330 = vadd.f32 %v1282, 1.0
    %v1331 = vadd.f32 %v1283, 1.0
    %v1332 = vadd.f32 %v1284, 1.0
    %v1333 = vadd.f32 %v1285, 1.0
    %v1334 = vadd.f32 %v1286, 1.0
    %v1335 = vadd.f32 %v1287, 1.0
    %v1336 = vadd.f32 %v1288, 1.0
    %v1337 = vadd.f32 %v1289, 1.0
    %v1338 = vadd.f32 %v1290, 1.0
    %v1339 = vadd.f32 %v1291, 1.0
    %v1340 = vadd.f32 %v1292, 1.0
    %v1341 = vadd.f32 %v1293, 1.0
    %v1342 = vadd.f32 %v1294, 1.0
    %v1343 = vadd.f32 %v1295, 1.0
    %v1344 = vadd.f32 %v1296, 1.0
    %v1345 = vadd.f32 %v1297, 1.0
    %v1346 = vadd.f32 %v1298, 1.0
    %v1347 = vadd.f32 %v1299, 1.0
    %v1348 = vadd.f32 %v1300, 1.0
    %v1349 = vadd.f32 %v1301, 1.0
    %v1350 = vadd.f32 %v1302, 1.0
    %v1351 = vadd.f32 %v1303, 1.0
    %v1352 = vadd.f32 %v1304, 1.0
    %v1353 = vadd.f32 %v1305, 1.0
    %v1354 = vadd.f32 %v1306, 1.0
    %v1355 = vadd.f32 %v1307, 1.0
    %v1356 = vadd.f32 %v1308, 1.0
    %v1357 = vadd.f32 %v1309, 1.0
    %v1358 = vadd.f32 %v1310, 1.0
    %v1359 = vadd.f32 %v1311, 1.0
    %v1360 = vadd.f32 %v1312, 1.0
    %v1361 = vadd.f32 %v1313, 1.0
    %v1362 = vadd.f32 %v1314, 1.0
    %v1363 = vadd.f32 %v1315, 1.0
    %v1364 = vadd.f32 %v1316, 1.0
    %v1365 = vadd.f32 %v1317, 1.0
    %v1366 = vadd.f32 %v1318, 1.0
    %v1367 = vadd.f32 %v1319, 1.0
    %v1368 = vadd.f32 %v1320, 1.0
    %v1369 = vmul.f32 %v985, %v1321
    %v1370 = vmul.f32 %v986, %v1322
    %v1371 = vmul.f32 %v987, %v1323
    %v1372 = vmul.f32 %v988, %v1324
    %v1373 = vmul.f32 %v989, %v1325
    %v1374 = vmul.f32 %v990, %v1326
    %v1375 = vmul.f32 %v991, %v1327
    %v1376 = vmul.f32 %v992, %v1328
    %v1377 = vmul.f32 %v993, %v1329
    %v1378 = vmul.f32 %v994, %v1330
    %v1379 = vmul.f32 %v995, %v1331
    %v1380 = vmul.f32 %v996, %v1332
    %v1381 = vmul.f32 %v997, %v1333
    %v1382 = vmul.f32 %v998, %v1334
    %v1383 = vmul.f32 %v999, %v1335
    %v1384 = vmul.f32 %v1000, %v1336
    %v1385 = vmul.f32 %v1001, %v1337
    %v1386 = vmul.f32 %v1002, %v1338
    %v1387 = vmul.f32 %v1003, %v1339
    %v1388 = vmul.f32 %v1004, %v1340
    %v1389 = vmul.f32 %v1005, %v1341
    %v1390 = vmul.f32 %v1006, %v1342
    %v1391 = vmul.f32 %v1007, %v1343
    %v1392 = vmul.f32 %v1008, %v1344
    %v1393 = vmul.f32 %v1009, %v1345
    %v1394 = vmul.f32 %v1010, %v1346
    %v1395 = vmul.f32 %v1011, %v1347
    %v1396 = vmul.f32 %v1012, %v1348
    %v1397 = vmul.f32 %v1013, %v1349
    %v1398 = vmul.f32 %v1014, %v1350
    %v1399 = vmul.f32 %v1015, %v1351
    %v1400 = vmul.f32 %v1016, %v1352
    %v1401 = vmul.f32 %v1017, %v1353
    %v1402 = vmul.f32 %v1018, %v1354
    %v1403 = vmul.f32 %v1019, %v1355
    %v1404 = vmul.f32 %v1020, %v1356
    %v1405 = vmul.f32 %v1021, %v1357
    %v1406 = vmul.f32 %v1022, %v1358
    %v1407 = vmul.f32 %v1023, %v1359
    %v1408 = vmul.f32 %v1024, %v1360
    %v1409 = vmul.f32 %v1025, %v1361
    %v1410 = vmul.f32 %v1026, %v1362
    %v1411 = vmul.f32 %v1027, %v1363
    %v1412 = vmul.f32 %v1028, %v1364
    %v1413 = vmul.f32 %v1029, %v1365
    %v1414 = vmul.f32 %v1030, %v1366
    %v1415 = vmul.f32 %v1031, %v1367
    %v1416 = vmul.f32 %v1032, %v1368
    %1417 = vst.msk [vmem:[#allocation2] sm:$0xff] %vm130, %v1369
    %1418 = vst.msk [vmem:[#allocation2 + $0x8] sm:$0xff] %vm130, %v1370
    %1419 = vst.msk [vmem:[#allocation2 + $0x10] sm:$0xff] %vm130, %v1371
    %1420 = vst.msk [vmem:[#allocation2 + $0x18] sm:$0xff] %vm130, %v1372
    %1421 = vst.msk [vmem:[#allocation2 + $0x20] sm:$0xff] %vm130, %v1373
    %1422 = vst.msk [vmem:[#allocation2 + $0x28] sm:$0xff] %vm130, %v1374
    %1423 = vst.msk [vmem:[#allocation2 + $0x30] sm:$0xff] %vm130, %v1375
    %1424 = vst.msk [vmem:[#allocation2 + $0x38] sm:$0xff] %vm130, %v1376
    %1425 = vst.msk [vmem:[#allocation2 + $0x40] sm:$0xff] %vm130, %v1377
    %1426 = vst.msk [vmem:[#allocation2 + $0x48] sm:$0xff] %vm130, %v1378
    %1427 = vst.msk [vmem:[#allocation2 + $0x50] sm:$0xff] %vm130, %v1379
    %1428 = vst.msk [vmem:[#allocation2 + $0x58] sm:$0xff] %vm130, %v1380
    %1429 = vst.msk [vmem:[#allocation2 + $0x60] sm:$0xff] %vm130, %v1381
    %1430 = vst.msk [vmem:[#allocation2 + $0x68] sm:$0xff] %vm130, %v1382
    %1431 = vst.msk [vmem:[#allocation2 + $0x70] sm:$0xff] %vm130, %v1383
    %1432 = vst.msk [vmem:[#allocation2 + $0x78] sm:$0xff] %vm130, %v1384
    %1433 = vst.msk [vmem:[#allocation2 + $0x80] sm:$0xff] %vm130, %v1385
    %1434 = vst.msk [vmem:[#allocation2 + $0x88] sm:$0xff] %vm130, %v1386
    %1435 = vst.msk [vmem:[#allocation2 + $0x90] sm:$0xff] %vm130, %v1387
    %1436 = vst.msk [vmem:[#allocation2 + $0x98] sm:$0xff] %vm130, %v1388
    %1437 = vst.msk [vmem:[#allocation2 + $0xa0] sm:$0xff] %vm130, %v1389
    %1438 = vst.msk [vmem:[#allocation2 + $0xa8] sm:$0xff] %vm130, %v1390
    %1439 = vst.msk [vmem:[#allocation2 + $0xb0] sm:$0xff] %vm130, %v1391
    %1440 = vst.msk [vmem:[#allocation2 + $0xb8] sm:$0xff] %vm130, %v1392
    %1441 = vst.msk [vmem:[#allocation2 + $0xc0] sm:$0xff] %vm130, %v1393
    %1442 = vst.msk [vmem:[#allocation2 + $0xc8] sm:$0xff] %vm130, %v1394
    %1443 = vst.msk [vmem:[#allocation2 + $0xd0] sm:$0xff] %vm130, %v1395
    %1444 = vst.msk [vmem:[#allocation2 + $0xd8] sm:$0xff] %vm130, %v1396
    %1445 = vst.msk [vmem:[#allocation2 + $0xe0] sm:$0xff] %vm130, %v1397
    %1446 = vst.msk [vmem:[#allocation2 + $0xe8] sm:$0xff] %vm130, %v1398
    %1447 = vst.msk [vmem:[#allocation2 + $0xf0] sm:$0xff] %vm130, %v1399
    %1448 = vst.msk [vmem:[#allocation2 + $0xf8] sm:$0xff] %vm130, %v1400
    %1449 = vst.msk [vmem:[#allocation2 + $0x100] sm:$0xff] %vm130, %v1401
    %1450 = vst.msk [vmem:[#allocation2 + $0x108] sm:$0xff] %vm130, %v1402
    %1451 = vst.msk [vmem:[#allocation2 + $0x110] sm:$0xff] %vm130, %v1403
    %1452 = vst.msk [vmem:[#allocation2 + $0x118] sm:$0xff] %vm130, %v1404
    %1453 = vst.msk [vmem:[#allocation2 + $0x120] sm:$0xff] %vm130, %v1405
    %1454 = vst.msk [vmem:[#allocation2 + $0x128] sm:$0xff] %vm130, %v1406
    %1455 = vst.msk [vmem:[#allocation2 + $0x130] sm:$0xff] %vm130, %v1407
    %1456 = vst.msk [vmem:[#allocation2 + $0x138] sm:$0xff] %vm130, %v1408
    %1457 = vst.msk [vmem:[#allocation2 + $0x140] sm:$0xff] %vm130, %v1409
    %1458 = vst.msk [vmem:[#allocation2 + $0x148] sm:$0xff] %vm130, %v1410
    %1459 = vst.msk [vmem:[#allocation2 + $0x150] sm:$0xff] %vm130, %v1411
    %1460 = vst.msk [vmem:[#allocation2 + $0x158] sm:$0xff] %vm130, %v1412
    %1461 = vst.msk [vmem:[#allocation2 + $0x160] sm:$0xff] %vm130, %v1413
    %1462 = vst.msk [vmem:[#allocation2 + $0x168] sm:$0xff] %vm130, %v1414
    %1463 = vst.msk [vmem:[#allocation2 + $0x170] sm:$0xff] %vm130, %v1415
    %1464 = vst.msk [vmem:[#allocation2 + $0x178] sm:$0xff] %vm130, %v1416
    %1513 = vrot.lane.b32.xlu0 %v1369, 64
    %v1514 = vpop.permute.xlu0 %1513
    %1515 = vrot.lane.b32.xlu0 %v1370, 64
    %v1516 = vpop.permute.xlu0 %1515
    %1517 = vrot.lane.b32.xlu0 %v1371, 64
    %v1518 = vpop.permute.xlu0 %1517
    %1519 = vrot.lane.b32.xlu0 %v1372, 64
    %v1520 = vpop.permute.xlu0 %1519
    %1521 = vrot.lane.b32.xlu0 %v1373, 64
    %v1522 = vpop.permute.xlu0 %1521
    %1523 = vrot.lane.b32.xlu0 %v1374, 64
    %v1524 = vpop.permute.xlu0 %1523
    %1525 = vrot.lane.b32.xlu0 %v1375, 64
    %v1526 = vpop.permute.xlu0 %1525
    %1527 = vrot.lane.b32.xlu0 %v1376, 64
    %v1528 = vpop.permute.xlu0 %1527
    %1529 = vrot.lane.b32.xlu0 %v1377, 64
    %v1530 = vpop.permute.xlu0 %1529
    %1531 = vrot.lane.b32.xlu0 %v1378, 64
    %v1532 = vpop.permute.xlu0 %1531
    %1533 = vrot.lane.b32.xlu0 %v1379, 64
    %v1534 = vpop.permute.xlu0 %1533
    %1535 = vrot.lane.b32.xlu0 %v1380, 64
    %v1536 = vpop.permute.xlu0 %1535
    %1537 = vrot.lane.b32.xlu0 %v1381, 64
    %v1538 = vpop.permute.xlu0 %1537
    %1539 = vrot.lane.b32.xlu0 %v1382, 64
    %v1540 = vpop.permute.xlu0 %1539
    %1541 = vrot.lane.b32.xlu0 %v1383, 64
    %v1542 = vpop.permute.xlu0 %1541
    %1543 = vrot.lane.b32.xlu0 %v1384, 64
    %v1544 = vpop.permute.xlu0 %1543
    %1545 = vrot.lane.b32.xlu0 %v1385, 64
    %v1546 = vpop.permute.xlu0 %1545
    %1547 = vrot.lane.b32.xlu0 %v1386, 64
    %v1548 = vpop.permute.xlu0 %1547
    %1549 = vrot.lane.b32.xlu0 %v1387, 64
    %v1550 = vpop.permute.xlu0 %1549
    %1551 = vrot.lane.b32.xlu0 %v1388, 64
    %v1552 = vpop.permute.xlu0 %1551
    %1553 = vrot.lane.b32.xlu0 %v1389, 64
    %v1554 = vpop.permute.xlu0 %1553
    %1555 = vrot.lane.b32.xlu0 %v1390, 64
    %v1556 = vpop.permute.xlu0 %1555
    %1557 = vrot.lane.b32.xlu0 %v1391, 64
    %v1558 = vpop.permute.xlu0 %1557
    %1559 = vrot.lane.b32.xlu0 %v1392, 64
    %v1560 = vpop.permute.xlu0 %1559
    %1561 = vrot.lane.b32.xlu0 %v1393, 64
    %v1562 = vpop.permute.xlu0 %1561
    %1563 = vrot.lane.b32.xlu0 %v1394, 64
    %v1564 = vpop.permute.xlu0 %1563
    %1565 = vrot.lane.b32.xlu0 %v1395, 64
    %v1566 = vpop.permute.xlu0 %1565
    %1567 = vrot.lane.b32.xlu0 %v1396, 64
    %v1568 = vpop.permute.xlu0 %1567
    %1569 = vrot.lane.b32.xlu0 %v1397, 64
    %v1570 = vpop.permute.xlu0 %1569
    %1571 = vrot.lane.b32.xlu0 %v1398, 64
    %v1572 = vpop.permute.xlu0 %1571
    %1573 = vrot.lane.b32.xlu0 %v1399, 64
    %v1574 = vpop.permute.xlu0 %1573
    %1575 = vrot.lane.b32.xlu0 %v1400, 64
    %v1576 = vpop.permute.xlu0 %1575
    %1577 = vrot.lane.b32.xlu0 %v1401, 64
    %v1578 = vpop.permute.xlu0 %1577
    %1579 = vrot.lane.b32.xlu0 %v1402, 64
    %v1580 = vpop.permute.xlu0 %1579
    %1581 = vrot.lane.b32.xlu0 %v1403, 64
    %v1582 = vpop.permute.xlu0 %1581
    %1583 = vrot.lane.b32.xlu0 %v1404, 64
    %v1584 = vpop.permute.xlu0 %1583
    %1585 = vrot.lane.b32.xlu0 %v1405, 64
    %v1586 = vpop.permute.xlu0 %1585
    %1587 = vrot.lane.b32.xlu0 %v1406, 64
    %v1588 = vpop.permute.xlu0 %1587
    %1589 = vrot.lane.b32.xlu0 %v1407, 64
    %v1590 = vpop.permute.xlu0 %1589
    %1591 = vrot.lane.b32.xlu0 %v1408, 64
    %v1592 = vpop.permute.xlu0 %1591
    %1593 = vrot.lane.b32.xlu0 %v1409, 64
    %v1594 = vpop.permute.xlu0 %1593
    %1595 = vrot.lane.b32.xlu0 %v1410, 64
    %v1596 = vpop.permute.xlu0 %1595
    %1597 = vrot.lane.b32.xlu0 %v1411, 64
    %v1598 = vpop.permute.xlu0 %1597
    %1599 = vrot.lane.b32.xlu0 %v1412, 64
    %v1600 = vpop.permute.xlu0 %1599
    %1601 = vrot.lane.b32.xlu0 %v1413, 64
    %v1602 = vpop.permute.xlu0 %1601
    %1603 = vrot.lane.b32.xlu0 %v1414, 64
    %v1604 = vpop.permute.xlu0 %1603
    %1605 = vrot.lane.b32.xlu0 %v1415, 64
    %v1606 = vpop.permute.xlu0 %1605
    %1607 = vrot.lane.b32.xlu0 %v1416, 64
    %v1608 = vpop.permute.xlu0 %1607
    %s1657 = scalar_lea.vmem [#allocation2], 384
    %1658 = vst.msk [vmem:[%s1657] sm:$0xff] %vm130, %v1514
    %1659 = vst.msk [vmem:[%s1657 + $0x8] sm:$0xff] %vm130, %v1516
    %1660 = vst.msk [vmem:[%s1657 + $0x10] sm:$0xff] %vm130, %v1518
    %1661 = vst.msk [vmem:[%s1657 + $0x18] sm:$0xff] %vm130, %v1520
    %1662 = vst.msk [vmem:[%s1657 + $0x20] sm:$0xff] %vm130, %v1522
    %1663 = vst.msk [vmem:[%s1657 + $0x28] sm:$0xff] %vm130, %v1524
    %1664 = vst.msk [vmem:[%s1657 + $0x30] sm:$0xff] %vm130, %v1526
    %1665 = vst.msk [vmem:[%s1657 + $0x38] sm:$0xff] %vm130, %v1528
    %1666 = vst.msk [vmem:[%s1657 + $0x40] sm:$0xff] %vm130, %v1530
    %1667 = vst.msk [vmem:[%s1657 + $0x48] sm:$0xff] %vm130, %v1532
    %1668 = vst.msk [vmem:[%s1657 + $0x50] sm:$0xff] %vm130, %v1534
    %1669 = vst.msk [vmem:[%s1657 + $0x58] sm:$0xff] %vm130, %v1536
    %1670 = vst.msk [vmem:[%s1657 + $0x60] sm:$0xff] %vm130, %v1538
    %1671 = vst.msk [vmem:[%s1657 + $0x68] sm:$0xff] %vm130, %v1540
    %1672 = vst.msk [vmem:[%s1657 + $0x70] sm:$0xff] %vm130, %v1542
    %1673 = vst.msk [vmem:[%s1657 + $0x78] sm:$0xff] %vm130, %v1544
    %1674 = vst.msk [vmem:[%s1657 + $0x80] sm:$0xff] %vm130, %v1546
    %1675 = vst.msk [vmem:[%s1657 + $0x88] sm:$0xff] %vm130, %v1548
    %1676 = vst.msk [vmem:[%s1657 + $0x90] sm:$0xff] %vm130, %v1550
    %1677 = vst.msk [vmem:[%s1657 + $0x98] sm:$0xff] %vm130, %v1552
    %1678 = vst.msk [vmem:[%s1657 + $0xa0] sm:$0xff] %vm130, %v1554
    %1679 = vst.msk [vmem:[%s1657 + $0xa8] sm:$0xff] %vm130, %v1556
    %1680 = vst.msk [vmem:[%s1657 + $0xb0] sm:$0xff] %vm130, %v1558
    %1681 = vst.msk [vmem:[%s1657 + $0xb8] sm:$0xff] %vm130, %v1560
    %1682 = vst.msk [vmem:[%s1657 + $0xc0] sm:$0xff] %vm130, %v1562
    %1683 = vst.msk [vmem:[%s1657 + $0xc8] sm:$0xff] %vm130, %v1564
    %1684 = vst.msk [vmem:[%s1657 + $0xd0] sm:$0xff] %vm130, %v1566
    %1685 = vst.msk [vmem:[%s1657 + $0xd8] sm:$0xff] %vm130, %v1568
    %1686 = vst.msk [vmem:[%s1657 + $0xe0] sm:$0xff] %vm130, %v1570
    %1687 = vst.msk [vmem:[%s1657 + $0xe8] sm:$0xff] %vm130, %v1572
    %1688 = vst.msk [vmem:[%s1657 + $0xf0] sm:$0xff] %vm130, %v1574
    %1689 = vst.msk [vmem:[%s1657 + $0xf8] sm:$0xff] %vm130, %v1576
    %1690 = vst.msk [vmem:[%s1657 + $0x100] sm:$0xff] %vm130, %v1578
    %1691 = vst.msk [vmem:[%s1657 + $0x108] sm:$0xff] %vm130, %v1580
    %1692 = vst.msk [vmem:[%s1657 + $0x110] sm:$0xff] %vm130, %v1582
    %1693 = vst.msk [vmem:[%s1657 + $0x118] sm:$0xff] %vm130, %v1584
    %1694 = vst.msk [vmem:[%s1657 + $0x120] sm:$0xff] %vm130, %v1586
    %1695 = vst.msk [vmem:[%s1657 + $0x128] sm:$0xff] %vm130, %v1588
    %1696 = vst.msk [vmem:[%s1657 + $0x130] sm:$0xff] %vm130, %v1590
    %1697 = vst.msk [vmem:[%s1657 + $0x138] sm:$0xff] %vm130, %v1592
    %1698 = vst.msk [vmem:[%s1657 + $0x140] sm:$0xff] %vm130, %v1594
    %1699 = vst.msk [vmem:[%s1657 + $0x148] sm:$0xff] %vm130, %v1596
    %1700 = vst.msk [vmem:[%s1657 + $0x150] sm:$0xff] %vm130, %v1598
    %1701 = vst.msk [vmem:[%s1657 + $0x158] sm:$0xff] %vm130, %v1600
    %1702 = vst.msk [vmem:[%s1657 + $0x160] sm:$0xff] %vm130, %v1602
    %1703 = vst.msk [vmem:[%s1657 + $0x168] sm:$0xff] %vm130, %v1604
    %1704 = vst.msk [vmem:[%s1657 + $0x170] sm:$0xff] %vm130, %v1606
    %1705 = vst.msk [vmem:[%s1657 + $0x178] sm:$0xff] %vm130, %v1608
    %s1706 = scalar_lea.vmem %s1, 32
    %v1707 = vld [vmem:[%s1706] sm:$0xf]
    %v1708 = vld [vmem:[%s1706 + $0x4] sm:$0xf]
    %v1709 = vld [vmem:[%s1706 + $0x8] sm:$0xf]
    %v1710 = vld [vmem:[%s1706 + $0xc] sm:$0xf]
    %v1711 = vld [vmem:[%s1706 + $0x10] sm:$0xf]
    %v1712 = vld [vmem:[%s1706 + $0x14] sm:$0xf]
    %v1713 = vld [vmem:[%s1706 + $0x18] sm:$0xf]
    %v1714 = vld [vmem:[%s1706 + $0x1c] sm:$0xf]
    %s1715 = scalar_lea.vmem %s2, 1
    %v1716 = vld [vmem:[%s1715] sm:$0x1]
    %v1718 = vperm.slane %v1716, 0
    %v1728 = vunpack.c.l.b16 %v1707
    %v1729 = vunpack.c.l.b16 %v1708
    %v1730 = vunpack.c.l.b16 %v1709
    %v1731 = vunpack.c.l.b16 %v1710
    %v1732 = vunpack.c.l.b16 %v1711
    %v1733 = vunpack.c.l.b16 %v1712
    %v1734 = vunpack.c.l.b16 %v1713
    %v1735 = vunpack.c.l.b16 %v1714
    %v1736 = vpack.c.b16 %v1729, %v1728
    %v1737 = vpack.c.b16 %v1731, %v1730
    %v1738 = vpack.c.b16 %v1733, %v1732
    %v1739 = vpack.c.b16 %v1735, %v1734
    %1744 = vmatpush.bf16.msra.mxu0 0
    %1745 = vmatpush.bf16.msra.mxu0 0
    %1746 = vmatpush.bf16.msra.mxu0 0
    %1747 = vmatpush.bf16.msra.mxu0 0
    %1748 = vmatpush.bf16.msra.mxu0 %v1739
    %1749 = vmatpush.bf16.msra.mxu0 %v1738
    %1750 = vmatpush.bf16.msra.mxu0 %v1737
    %1751 = vmatpush.bf16.msra.mxu0 %v1736
    %1752 = vmatmul.bf16.gmra.mxu0 %v132
    %v1753 = vpop.f32.mrf.mxu0
    %v1754 = vadd.f32 %v1718, %v1753
    %v1755 = vpop.f32.mrf.mxu0
    %v1756 = vadd.f32 %v1718, %v1755
    %1757 = vmatmul.bf16.gmra.mxu0 %v135
    %v1758 = vpop.f32.mrf.mxu0
    %v1759 = vadd.f32 %v1718, %v1758
    %v1760 = vpop.f32.mrf.mxu0
    %v1761 = vadd.f32 %v1718, %v1760
    %1762 = vmatmul.bf16.gmra.mxu0 %v138
    %v1763 = vpop.f32.mrf.mxu0
    %v1764 = vadd.f32 %v1718, %v1763
    %v1765 = vpop.f32.mrf.mxu0
    %v1766 = vadd.f32 %v1718, %v1765
    %1767 = vmatmul.bf16.gmra.mxu0 %v141
    %v1768 = vpop.f32.mrf.mxu0
    %v1769 = vadd.f32 %v1718, %v1768
    %v1770 = vpop.f32.mrf.mxu0
    %v1771 = vadd.f32 %v1718, %v1770
    %1772 = vmatmul.bf16.gmra.mxu0 %v144
    %v1773 = vpop.f32.mrf.mxu0
    %v1774 = vadd.f32 %v1718, %v1773
    %v1775 = vpop.f32.mrf.mxu0
    %v1776 = vadd.f32 %v1718, %v1775
    %1777 = vmatmul.bf16.gmra.mxu0 %v147
    %v1778 = vpop.f32.mrf.mxu0
    %v1779 = vadd.f32 %v1718, %v1778
    %v1780 = vpop.f32.mrf.mxu0
    %v1781 = vadd.f32 %v1718, %v1780
    %1782 = vmatmul.bf16.gmra.mxu0 %v150
    %v1783 = vpop.f32.mrf.mxu0
    %v1784 = vadd.f32 %v1718, %v1783
    %v1785 = vpop.f32.mrf.mxu0
    %v1786 = vadd.f32 %v1718, %v1785
    %1787 = vmatmul.bf16.gmra.mxu0 %v153
    %v1788 = vpop.f32.mrf.mxu0
    %v1789 = vadd.f32 %v1718, %v1788
    %v1790 = vpop.f32.mrf.mxu0
    %v1791 = vadd.f32 %v1718, %v1790
    %1792 = vmatmul.bf16.gmra.mxu0 %v156
    %v1793 = vpop.f32.mrf.mxu0
    %v1794 = vadd.f32 %v1718, %v1793
    %v1795 = vpop.f32.mrf.mxu0
    %v1796 = vadd.f32 %v1718, %v1795
    %1797 = vmatmul.bf16.gmra.mxu0 %v159
    %v1798 = vpop.f32.mrf.mxu0
    %v1799 = vadd.f32 %v1718, %v1798
    %v1800 = vpop.f32.mrf.mxu0
    %v1801 = vadd.f32 %v1718, %v1800
    %1802 = vmatmul.bf16.gmra.mxu0 %v162
    %v1803 = vpop.f32.mrf.mxu0
    %v1804 = vadd.f32 %v1718, %v1803
    %v1805 = vpop.f32.mrf.mxu0
    %v1806 = vadd.f32 %v1718, %v1805
    %1807 = vmatmul.bf16.gmra.mxu0 %v165
    %v1808 = vpop.f32.mrf.mxu0
    %v1809 = vadd.f32 %v1718, %v1808
    %v1810 = vpop.f32.mrf.mxu0
    %v1811 = vadd.f32 %v1718, %v1810
    %1812 = vmatmul.bf16.gmra.mxu0 %v168
    %v1813 = vpop.f32.mrf.mxu0
    %v1814 = vadd.f32 %v1718, %v1813
    %v1815 = vpop.f32.mrf.mxu0
    %v1816 = vadd.f32 %v1718, %v1815
    %1817 = vmatmul.bf16.gmra.mxu0 %v171
    %v1818 = vpop.f32.mrf.mxu0
    %v1819 = vadd.f32 %v1718, %v1818
    %v1820 = vpop.f32.mrf.mxu0
    %v1821 = vadd.f32 %v1718, %v1820
    %1822 = vmatmul.bf16.gmra.mxu0 %v174
    %v1823 = vpop.f32.mrf.mxu0
    %v1824 = vadd.f32 %v1718, %v1823
    %v1825 = vpop.f32.mrf.mxu0
    %v1826 = vadd.f32 %v1718, %v1825
    %1827 = vmatmul.bf16.gmra.mxu0 %v177
    %v1828 = vpop.f32.mrf.mxu0
    %v1829 = vadd.f32 %v1718, %v1828
    %v1830 = vpop.f32.mrf.mxu0
    %v1831 = vadd.f32 %v1718, %v1830
    %1832 = vmatmul.bf16.gmra.mxu0 %v180
    %v1833 = vpop.f32.mrf.mxu0
    %v1834 = vadd.f32 %v1718, %v1833
    %v1835 = vpop.f32.mrf.mxu0
    %v1836 = vadd.f32 %v1718, %v1835
    %1837 = vmatmul.bf16.gmra.mxu0 %v183
    %v1838 = vpop.f32.mrf.mxu0
    %v1839 = vadd.f32 %v1718, %v1838
    %v1840 = vpop.f32.mrf.mxu0
    %v1841 = vadd.f32 %v1718, %v1840
    %1842 = vmatmul.bf16.gmra.mxu0 %v186
    %v1843 = vpop.f32.mrf.mxu0
    %v1844 = vadd.f32 %v1718, %v1843
    %v1845 = vpop.f32.mrf.mxu0
    %v1846 = vadd.f32 %v1718, %v1845
    %1847 = vmatmul.bf16.gmra.mxu0 %v189
    %v1848 = vpop.f32.mrf.mxu0
    %v1849 = vadd.f32 %v1718, %v1848
    %v1850 = vpop.f32.mrf.mxu0
    %v1851 = vadd.f32 %v1718, %v1850
    %1852 = vmatmul.bf16.gmra.mxu0 %v192
    %v1853 = vpop.f32.mrf.mxu0
    %v1854 = vadd.f32 %v1718, %v1853
    %v1855 = vpop.f32.mrf.mxu0
    %v1856 = vadd.f32 %v1718, %v1855
    %1857 = vmatmul.bf16.gmra.mxu0 %v195
    %v1858 = vpop.f32.mrf.mxu0
    %v1859 = vadd.f32 %v1718, %v1858
    %v1860 = vpop.f32.mrf.mxu0
    %v1861 = vadd.f32 %v1718, %v1860
    %1862 = vmatmul.bf16.gmra.mxu0 %v198
    %v1863 = vpop.f32.mrf.mxu0
    %v1864 = vadd.f32 %v1718, %v1863
    %v1865 = vpop.f32.mrf.mxu0
    %v1866 = vadd.f32 %v1718, %v1865
    %1867 = vmatmul.bf16.gmra.mxu0 %v201
    %v1868 = vpop.f32.mrf.mxu0
    %v1869 = vadd.f32 %v1718, %v1868
    %v1870 = vpop.f32.mrf.mxu0
    %v1871 = vadd.f32 %v1718, %v1870
    %1872 = vdwg.mxu0
    %v1873 = vmul.f32 %v1754, 0.5
    %v1874 = vmul.f32 %v1756, 0.5
    %v1875 = vmul.f32 %v1759, 0.5
    %v1876 = vmul.f32 %v1761, 0.5
    %v1877 = vmul.f32 %v1764, 0.5
    %v1878 = vmul.f32 %v1766, 0.5
    %v1879 = vmul.f32 %v1769, 0.5
    %v1880 = vmul.f32 %v1771, 0.5
    %v1881 = vmul.f32 %v1774, 0.5
    %v1882 = vmul.f32 %v1776, 0.5
    %v1883 = vmul.f32 %v1779, 0.5
    %v1884 = vmul.f32 %v1781, 0.5
    %v1885 = vmul.f32 %v1784, 0.5
    %v1886 = vmul.f32 %v1786, 0.5
    %v1887 = vmul.f32 %v1789, 0.5
    %v1888 = vmul.f32 %v1791, 0.5
    %v1889 = vmul.f32 %v1794, 0.5
    %v1890 = vmul.f32 %v1796, 0.5
    %v1891 = vmul.f32 %v1799, 0.5
    %v1892 = vmul.f32 %v1801, 0.5
    %v1893 = vmul.f32 %v1804, 0.5
    %v1894 = vmul.f32 %v1806, 0.5
    %v1895 = vmul.f32 %v1809, 0.5
    %v1896 = vmul.f32 %v1811, 0.5
    %v1897 = vmul.f32 %v1814, 0.5
    %v1898 = vmul.f32 %v1816, 0.5
    %v1899 = vmul.f32 %v1819, 0.5
    %v1900 = vmul.f32 %v1821, 0.5
    %v1901 = vmul.f32 %v1824, 0.5
    %v1902 = vmul.f32 %v1826, 0.5
    %v1903 = vmul.f32 %v1829, 0.5
    %v1904 = vmul.f32 %v1831, 0.5
    %v1905 = vmul.f32 %v1834, 0.5
    %v1906 = vmul.f32 %v1836, 0.5
    %v1907 = vmul.f32 %v1839, 0.5
    %v1908 = vmul.f32 %v1841, 0.5
    %v1909 = vmul.f32 %v1844, 0.5
    %v1910 = vmul.f32 %v1846, 0.5
    %v1911 = vmul.f32 %v1849, 0.5
    %v1912 = vmul.f32 %v1851, 0.5
    %v1913 = vmul.f32 %v1854, 0.5
    %v1914 = vmul.f32 %v1856, 0.5
    %v1915 = vmul.f32 %v1859, 0.5
    %v1916 = vmul.f32 %v1861, 0.5
    %v1917 = vmul.f32 %v1864, 0.5
    %v1918 = vmul.f32 %v1866, 0.5
    %v1919 = vmul.f32 %v1869, 0.5
    %v1920 = vmul.f32 %v1871, 0.5
    %v1921 = vmul.f32 %v1754, 0.044715
    %v1922 = vmul.f32 %v1756, 0.044715
    %v1923 = vmul.f32 %v1759, 0.044715
    %v1924 = vmul.f32 %v1761, 0.044715
    %v1925 = vmul.f32 %v1764, 0.044715
    %v1926 = vmul.f32 %v1766, 0.044715
    %v1927 = vmul.f32 %v1769, 0.044715
    %v1928 = vmul.f32 %v1771, 0.044715
    %v1929 = vmul.f32 %v1774, 0.044715
    %v1930 = vmul.f32 %v1776, 0.044715
    %v1931 = vmul.f32 %v1779, 0.044715
    %v1932 = vmul.f32 %v1781, 0.044715
    %v1933 = vmul.f32 %v1784, 0.044715
    %v1934 = vmul.f32 %v1786, 0.044715
    %v1935 = vmul.f32 %v1789, 0.044715
    %v1936 = vmul.f32 %v1791, 0.044715
    %v1937 = vmul.f32 %v1794, 0.044715
    %v1938 = vmul.f32 %v1796, 0.044715
    %v1939 = vmul.f32 %v1799, 0.044715
    %v1940 = vmul.f32 %v1801, 0.044715
    %v1941 = vmul.f32 %v1804, 0.044715
    %v1942 = vmul.f32 %v1806, 0.044715
    %v1943 = vmul.f32 %v1809, 0.044715
    %v1944 = vmul.f32 %v1811, 0.044715
    %v1945 = vmul.f32 %v1814, 0.044715
    %v1946 = vmul.f32 %v1816, 0.044715
    %v1947 = vmul.f32 %v1819, 0.044715
    %v1948 = vmul.f32 %v1821, 0.044715
    %v1949 = vmul.f32 %v1824, 0.044715
    %v1950 = vmul.f32 %v1826, 0.044715
    %v1951 = vmul.f32 %v1829, 0.044715
    %v1952 = vmul.f32 %v1831, 0.044715
    %v1953 = vmul.f32 %v1834, 0.044715
    %v1954 = vmul.f32 %v1836, 0.044715
    %v1955 = vmul.f32 %v1839, 0.044715
    %v1956 = vmul.f32 %v1841, 0.044715
    %v1957 = vmul.f32 %v1844, 0.044715
    %v1958 = vmul.f32 %v1846, 0.044715
    %v1959 = vmul.f32 %v1849, 0.044715
    %v1960 = vmul.f32 %v1851, 0.044715
    %v1961 = vmul.f32 %v1854, 0.044715
    %v1962 = vmul.f32 %v1856, 0.044715
    %v1963 = vmul.f32 %v1859, 0.044715
    %v1964 = vmul.f32 %v1861, 0.044715
    %v1965 = vmul.f32 %v1864, 0.044715
    %v1966 = vmul.f32 %v1866, 0.044715
    %v1967 = vmul.f32 %v1869, 0.044715
    %v1968 = vmul.f32 %v1871, 0.044715
    %v1969 = vmul.f32 %v1921, %v1754
    %v1970 = vmul.f32 %v1922, %v1756
    %v1971 = vmul.f32 %v1923, %v1759
    %v1972 = vmul.f32 %v1924, %v1761
    %v1973 = vmul.f32 %v1925, %v1764
    %v1974 = vmul.f32 %v1926, %v1766
    %v1975 = vmul.f32 %v1927, %v1769
    %v1976 = vmul.f32 %v1928, %v1771
    %v1977 = vmul.f32 %v1929, %v1774
    %v1978 = vmul.f32 %v1930, %v1776
    %v1979 = vmul.f32 %v1931, %v1779
    %v1980 = vmul.f32 %v1932, %v1781
    %v1981 = vmul.f32 %v1933, %v1784
    %v1982 = vmul.f32 %v1934, %v1786
    %v1983 = vmul.f32 %v1935, %v1789
    %v1984 = vmul.f32 %v1936, %v1791
    %v1985 = vmul.f32 %v1937, %v1794
    %v1986 = vmul.f32 %v1938, %v1796
    %v1987 = vmul.f32 %v1939, %v1799
    %v1988 = vmul.f32 %v1940, %v1801
    %v1989 = vmul.f32 %v1941, %v1804
    %v1990 = vmul.f32 %v1942, %v1806
    %v1991 = vmul.f32 %v1943, %v1809
    %v1992 = vmul.f32 %v1944, %v1811
    %v1993 = vmul.f32 %v1945, %v1814
    %v1994 = vmul.f32 %v1946, %v1816
    %v1995 = vmul.f32 %v1947, %v1819
    %v1996 = vmul.f32 %v1948, %v1821
    %v1997 = vmul.f32 %v1949, %v1824
    %v1998 = vmul.f32 %v1950, %v1826
    %v1999 = vmul.f32 %v1951, %v1829
    %v2000 = vmul.f32 %v1952, %v1831
    %v2001 = vmul.f32 %v1953, %v1834
    %v2002 = vmul.f32 %v1954, %v1836
    %v2003 = vmul.f32 %v1955, %v1839
    %v2004 = vmul.f32 %v1956, %v1841
    %v2005 = vmul.f32 %v1957, %v1844
    %v2006 = vmul.f32 %v1958, %v1846
    %v2007 = vmul.f32 %v1959, %v1849
    %v2008 = vmul.f32 %v1960, %v1851
    %v2009 = vmul.f32 %v1961, %v1854
    %v2010 = vmul.f32 %v1962, %v1856
    %v2011 = vmul.f32 %v1963, %v1859
    %v2012 = vmul.f32 %v1964, %v1861
    %v2013 = vmul.f32 %v1965, %v1864
    %v2014 = vmul.f32 %v1966, %v1866
    %v2015 = vmul.f32 %v1967, %v1869
    %v2016 = vmul.f32 %v1968, %v1871
    %v2017 = vmul.f32 %v1969, %v1754
    %v2018 = vmul.f32 %v1970, %v1756
    %v2019 = vmul.f32 %v1971, %v1759
    %v2020 = vmul.f32 %v1972, %v1761
    %v2021 = vmul.f32 %v1973, %v1764
    %v2022 = vmul.f32 %v1974, %v1766
    %v2023 = vmul.f32 %v1975, %v1769
    %v2024 = vmul.f32 %v1976, %v1771
    %v2025 = vmul.f32 %v1977, %v1774
    %v2026 = vmul.f32 %v1978, %v1776
    %v2027 = vmul.f32 %v1979, %v1779
    %v2028 = vmul.f32 %v1980, %v1781
    %v2029 = vmul.f32 %v1981, %v1784
    %v2030 = vmul.f32 %v1982, %v1786
    %v2031 = vmul.f32 %v1983, %v1789
    %v2032 = vmul.f32 %v1984, %v1791
    %v2033 = vmul.f32 %v1985, %v1794
    %v2034 = vmul.f32 %v1986, %v1796
    %v2035 = vmul.f32 %v1987, %v1799
    %v2036 = vmul.f32 %v1988, %v1801
    %v2037 = vmul.f32 %v1989, %v1804
    %v2038 = vmul.f32 %v1990, %v1806
    %v2039 = vmul.f32 %v1991, %v1809
    %v2040 = vmul.f32 %v1992, %v1811
    %v2041 = vmul.f32 %v1993, %v1814
    %v2042 = vmul.f32 %v1994, %v1816
    %v2043 = vmul.f32 %v1995, %v1819
    %v2044 = vmul.f32 %v1996, %v1821
    %v2045 = vmul.f32 %v1997, %v1824
    %v2046 = vmul.f32 %v1998, %v1826
    %v2047 = vmul.f32 %v1999, %v1829
    %v2048 = vmul.f32 %v2000, %v1831
    %v2049 = vmul.f32 %v2001, %v1834
    %v2050 = vmul.f32 %v2002, %v1836
    %v2051 = vmul.f32 %v2003, %v1839
    %v2052 = vmul.f32 %v2004, %v1841
    %v2053 = vmul.f32 %v2005, %v1844
    %v2054 = vmul.f32 %v2006, %v1846
    %v2055 = vmul.f32 %v2007, %v1849
    %v2056 = vmul.f32 %v2008, %v1851
    %v2057 = vmul.f32 %v2009, %v1854
    %v2058 = vmul.f32 %v2010, %v1856
    %v2059 = vmul.f32 %v2011, %v1859
    %v2060 = vmul.f32 %v2012, %v1861
    %v2061 = vmul.f32 %v2013, %v1864
    %v2062 = vmul.f32 %v2014, %v1866
    %v2063 = vmul.f32 %v2015, %v1869
    %v2064 = vmul.f32 %v2016, %v1871
    %v2065 = vadd.f32 %v1754, %v2017
    %v2066 = vadd.f32 %v1756, %v2018
    %v2067 = vadd.f32 %v1759, %v2019
    %v2068 = vadd.f32 %v1761, %v2020
    %v2069 = vadd.f32 %v1764, %v2021
    %v2070 = vadd.f32 %v1766, %v2022
    %v2071 = vadd.f32 %v1769, %v2023
    %v2072 = vadd.f32 %v1771, %v2024
    %v2073 = vadd.f32 %v1774, %v2025
    %v2074 = vadd.f32 %v1776, %v2026
    %v2075 = vadd.f32 %v1779, %v2027
    %v2076 = vadd.f32 %v1781, %v2028
    %v2077 = vadd.f32 %v1784, %v2029
    %v2078 = vadd.f32 %v1786, %v2030
    %v2079 = vadd.f32 %v1789, %v2031
    %v2080 = vadd.f32 %v1791, %v2032
    %v2081 = vadd.f32 %v1794, %v2033
    %v2082 = vadd.f32 %v1796, %v2034
    %v2083 = vadd.f32 %v1799, %v2035
    %v2084 = vadd.f32 %v1801, %v2036
    %v2085 = vadd.f32 %v1804, %v2037
    %v2086 = vadd.f32 %v1806, %v2038
    %v2087 = vadd.f32 %v1809, %v2039
    %v2088 = vadd.f32 %v1811, %v2040
    %v2089 = vadd.f32 %v1814, %v2041
    %v2090 = vadd.f32 %v1816, %v2042
    %v2091 = vadd.f32 %v1819, %v2043
    %v2092 = vadd.f32 %v1821, %v2044
    %v2093 = vadd.f32 %v1824, %v2045
    %v2094 = vadd.f32 %v1826, %v2046
    %v2095 = vadd.f32 %v1829, %v2047
    %v2096 = vadd.f32 %v1831, %v2048
    %v2097 = vadd.f32 %v1834, %v2049
    %v2098 = vadd.f32 %v1836, %v2050
    %v2099 = vadd.f32 %v1839, %v2051
    %v2100 = vadd.f32 %v1841, %v2052
    %v2101 = vadd.f32 %v1844, %v2053
    %v2102 = vadd.f32 %v1846, %v2054
    %v2103 = vadd.f32 %v1849, %v2055
    %v2104 = vadd.f32 %v1851, %v2056
    %v2105 = vadd.f32 %v1854, %v2057
    %v2106 = vadd.f32 %v1856, %v2058
    %v2107 = vadd.f32 %v1859, %v2059
    %v2108 = vadd.f32 %v1861, %v2060
    %v2109 = vadd.f32 %v1864, %v2061
    %v2110 = vadd.f32 %v1866, %v2062
    %v2111 = vadd.f32 %v1869, %v2063
    %v2112 = vadd.f32 %v1871, %v2064
    %v2113 = vmul.f32 %v2065, 0.7978846
    %v2114 = vmul.f32 %v2066, 0.7978846
    %v2115 = vmul.f32 %v2067, 0.7978846
    %v2116 = vmul.f32 %v2068, 0.7978846
    %v2117 = vmul.f32 %v2069, 0.7978846
    %v2118 = vmul.f32 %v2070, 0.7978846
    %v2119 = vmul.f32 %v2071, 0.7978846
    %v2120 = vmul.f32 %v2072, 0.7978846
    %v2121 = vmul.f32 %v2073, 0.7978846
    %v2122 = vmul.f32 %v2074, 0.7978846
    %v2123 = vmul.f32 %v2075, 0.7978846
    %v2124 = vmul.f32 %v2076, 0.7978846
    %v2125 = vmul.f32 %v2077, 0.7978846
    %v2126 = vmul.f32 %v2078, 0.7978846
    %v2127 = vmul.f32 %v2079, 0.7978846
    %v2128 = vmul.f32 %v2080, 0.7978846
    %v2129 = vmul.f32 %v2081, 0.7978846
    %v2130 = vmul.f32 %v2082, 0.7978846
    %v2131 = vmul.f32 %v2083, 0.7978846
    %v2132 = vmul.f32 %v2084, 0.7978846
    %v2133 = vmul.f32 %v2085, 0.7978846
    %v2134 = vmul.f32 %v2086, 0.7978846
    %v2135 = vmul.f32 %v2087, 0.7978846
    %v2136 = vmul.f32 %v2088, 0.7978846
    %v2137 = vmul.f32 %v2089, 0.7978846
    %v2138 = vmul.f32 %v2090, 0.7978846
    %v2139 = vmul.f32 %v2091, 0.7978846
    %v2140 = vmul.f32 %v2092, 0.7978846
    %v2141 = vmul.f32 %v2093, 0.7978846
    %v2142 = vmul.f32 %v2094, 0.7978846
    %v2143 = vmul.f32 %v2095, 0.7978846
    %v2144 = vmul.f32 %v2096, 0.7978846
    %v2145 = vmul.f32 %v2097, 0.7978846
    %v2146 = vmul.f32 %v2098, 0.7978846
    %v2147 = vmul.f32 %v2099, 0.7978846
    %v2148 = vmul.f32 %v2100, 0.7978846
    %v2149 = vmul.f32 %v2101, 0.7978846
    %v2150 = vmul.f32 %v2102, 0.7978846
    %v2151 = vmul.f32 %v2103, 0.7978846
    %v2152 = vmul.f32 %v2104, 0.7978846
    %v2153 = vmul.f32 %v2105, 0.7978846
    %v2154 = vmul.f32 %v2106, 0.7978846
    %v2155 = vmul.f32 %v2107, 0.7978846
    %v2156 = vmul.f32 %v2108, 0.7978846
    %v2157 = vmul.f32 %v2109, 0.7978846
    %v2158 = vmul.f32 %v2110, 0.7978846
    %v2159 = vmul.f32 %v2111, 0.7978846
    %v2160 = vmul.f32 %v2112, 0.7978846
    %v2161 = vtanh.pop %v2113
    %v2162 = vtanh.pop %v2114
    %v2163 = vtanh.pop %v2115
    %v2164 = vtanh.pop %v2116
    %v2165 = vtanh.pop %v2117
    %v2166 = vtanh.pop %v2118
    %v2167 = vtanh.pop %v2119
    %v2168 = vtanh.pop %v2120
    %v2169 = vtanh.pop %v2121
    %v2170 = vtanh.pop %v2122
    %v2171 = vtanh.pop %v2123
    %v2172 = vtanh.pop %v2124
    %v2173 = vtanh.pop %v2125
    %v2174 = vtanh.pop %v2126
    %v2175 = vtanh.pop %v2127
    %v2176 = vtanh.pop %v2128
    %v2177 = vtanh.pop %v2129
    %v2178 = vtanh.pop %v2130
    %v2179 = vtanh.pop %v2131
    %v2180 = vtanh.pop %v2132
    %v2181 = vtanh.pop %v2133
    %v2182 = vtanh.pop %v2134
    %v2183 = vtanh.pop %v2135
    %v2184 = vtanh.pop %v2136
    %v2185 = vtanh.pop %v2137
    %v2186 = vtanh.pop %v2138
    %v2187 = vtanh.pop %v2139
    %v2188 = vtanh.pop %v2140
    %v2189 = vtanh.pop %v2141
    %v2190 = vtanh.pop %v2142
    %v2191 = vtanh.pop %v2143
    %v2192 = vtanh.pop %v2144
    %v2193 = vtanh.pop %v2145
    %v2194 = vtanh.pop %v2146
    %v2195 = vtanh.pop %v2147
    %v2196 = vtanh.pop %v2148
    %v2197 = vtanh.pop %v2149
    %v2198 = vtanh.pop %v2150
    %v2199 = vtanh.pop %v2151
    %v2200 = vtanh.pop %v2152
    %v2201 = vtanh.pop %v2153
    %v2202 = vtanh.pop %v2154
    %v2203 = vtanh.pop %v2155
    %v2204 = vtanh.pop %v2156
    %v2205 = vtanh.pop %v2157
    %v2206 = vtanh.pop %v2158
    %v2207 = vtanh.pop %v2159
    %v2208 = vtanh.pop %v2160
    %v2209 = vadd.f32 %v2161, 1.0
    %v2210 = vadd.f32 %v2162, 1.0
    %v2211 = vadd.f32 %v2163, 1.0
    %v2212 = vadd.f32 %v2164, 1.0
    %v2213 = vadd.f32 %v2165, 1.0
    %v2214 = vadd.f32 %v2166, 1.0
    %v2215 = vadd.f32 %v2167, 1.0
    %v2216 = vadd.f32 %v2168, 1.0
    %v2217 = vadd.f32 %v2169, 1.0
    %v2218 = vadd.f32 %v2170, 1.0
    %v2219 = vadd.f32 %v2171, 1.0
    %v2220 = vadd.f32 %v2172, 1.0
    %v2221 = vadd.f32 %v2173, 1.0
    %v2222 = vadd.f32 %v2174, 1.0
    %v2223 = vadd.f32 %v2175, 1.0
    %v2224 = vadd.f32 %v2176, 1.0
    %v2225 = vadd.f32 %v2177, 1.0
    %v2226 = vadd.f32 %v2178, 1.0
    %v2227 = vadd.f32 %v2179, 1.0
    %v2228 = vadd.f32 %v2180, 1.0
    %v2229 = vadd.f32 %v2181, 1.0
    %v2230 = vadd.f32 %v2182, 1.0
    %v2231 = vadd.f32 %v2183, 1.0
    %v2232 = vadd.f32 %v2184, 1.0
    %v2233 = vadd.f32 %v2185, 1.0
    %v2234 = vadd.f32 %v2186, 1.0
    %v2235 = vadd.f32 %v2187, 1.0
    %v2236 = vadd.f32 %v2188, 1.0
    %v2237 = vadd.f32 %v2189, 1.0
    %v2238 = vadd.f32 %v2190, 1.0
    %v2239 = vadd.f32 %v2191, 1.0
    %v2240 = vadd.f32 %v2192, 1.0
    %v2241 = vadd.f32 %v2193, 1.0
    %v2242 = vadd.f32 %v2194, 1.0
    %v2243 = vadd.f32 %v2195, 1.0
    %v2244 = vadd.f32 %v2196, 1.0
    %v2245 = vadd.f32 %v2197, 1.0
    %v2246 = vadd.f32 %v2198, 1.0
    %v2247 = vadd.f32 %v2199, 1.0
    %v2248 = vadd.f32 %v2200, 1.0
    %v2249 = vadd.f32 %v2201, 1.0
    %v2250 = vadd.f32 %v2202, 1.0
    %v2251 = vadd.f32 %v2203, 1.0
    %v2252 = vadd.f32 %v2204, 1.0
    %v2253 = vadd.f32 %v2205, 1.0
    %v2254 = vadd.f32 %v2206, 1.0
    %v2255 = vadd.f32 %v2207, 1.0
    %v2256 = vadd.f32 %v2208, 1.0
    %v2257 = vmul.f32 %v1873, %v2209
    %v2258 = vmul.f32 %v1874, %v2210
    %v2259 = vmul.f32 %v1875, %v2211
    %v2260 = vmul.f32 %v1876, %v2212
    %v2261 = vmul.f32 %v1877, %v2213
    %v2262 = vmul.f32 %v1878, %v2214
    %v2263 = vmul.f32 %v1879, %v2215
    %v2264 = vmul.f32 %v1880, %v2216
    %v2265 = vmul.f32 %v1881, %v2217
    %v2266 = vmul.f32 %v1882, %v2218
    %v2267 = vmul.f32 %v1883, %v2219
    %v2268 = vmul.f32 %v1884, %v2220
    %v2269 = vmul.f32 %v1885, %v2221
    %v2270 = vmul.f32 %v1886, %v2222
    %v2271 = vmul.f32 %v1887, %v2223
    %v2272 = vmul.f32 %v1888, %v2224
    %v2273 = vmul.f32 %v1889, %v2225
    %v2274 = vmul.f32 %v1890, %v2226
    %v2275 = vmul.f32 %v1891, %v2227
    %v2276 = vmul.f32 %v1892, %v2228
    %v2277 = vmul.f32 %v1893, %v2229
    %v2278 = vmul.f32 %v1894, %v2230
    %v2279 = vmul.f32 %v1895, %v2231
    %v2280 = vmul.f32 %v1896, %v2232
    %v2281 = vmul.f32 %v1897, %v2233
    %v2282 = vmul.f32 %v1898, %v2234
    %v2283 = vmul.f32 %v1899, %v2235
    %v2284 = vmul.f32 %v1900, %v2236
    %v2285 = vmul.f32 %v1901, %v2237
    %v2286 = vmul.f32 %v1902, %v2238
    %v2287 = vmul.f32 %v1903, %v2239
    %v2288 = vmul.f32 %v1904, %v2240
    %v2289 = vmul.f32 %v1905, %v2241
    %v2290 = vmul.f32 %v1906, %v2242
    %v2291 = vmul.f32 %v1907, %v2243
    %v2292 = vmul.f32 %v1908, %v2244
    %v2293 = vmul.f32 %v1909, %v2245
    %v2294 = vmul.f32 %v1910, %v2246
    %v2295 = vmul.f32 %v1911, %v2247
    %v2296 = vmul.f32 %v1912, %v2248
    %v2297 = vmul.f32 %v1913, %v2249
    %v2298 = vmul.f32 %v1914, %v2250
    %v2299 = vmul.f32 %v1915, %v2251
    %v2300 = vmul.f32 %v1916, %v2252
    %v2301 = vmul.f32 %v1917, %v2253
    %v2302 = vmul.f32 %v1918, %v2254
    %v2303 = vmul.f32 %v1919, %v2255
    %v2304 = vmul.f32 %v1920, %v2256
    %v2305 = vpack.c.bf16 %v2258, %v2257
    %v2306 = vpack.c.bf16 %v2260, %v2259
    %v2307 = vpack.c.bf16 %v2262, %v2261
    %v2308 = vpack.c.bf16 %v2264, %v2263
    %v2309 = vpack.c.bf16 %v2266, %v2265
    %v2310 = vpack.c.bf16 %v2268, %v2267
    %v2311 = vpack.c.bf16 %v2270, %v2269
    %v2312 = vpack.c.bf16 %v2272, %v2271
    %v2313 = vpack.c.bf16 %v2274, %v2273
    %v2314 = vpack.c.bf16 %v2276, %v2275
    %v2315 = vpack.c.bf16 %v2278, %v2277
    %v2316 = vpack.c.bf16 %v2280, %v2279
    %v2317 = vpack.c.bf16 %v2282, %v2281
    %v2318 = vpack.c.bf16 %v2284, %v2283
    %v2319 = vpack.c.bf16 %v2286, %v2285
    %v2320 = vpack.c.bf16 %v2288, %v2287
    %v2321 = vpack.c.bf16 %v2290, %v2289
    %v2322 = vpack.c.bf16 %v2292, %v2291
    %v2323 = vpack.c.bf16 %v2294, %v2293
    %v2324 = vpack.c.bf16 %v2296, %v2295
    %v2325 = vpack.c.bf16 %v2298, %v2297
    %v2326 = vpack.c.bf16 %v2300, %v2299
    %v2327 = vpack.c.bf16 %v2302, %v2301
    %v2328 = vpack.c.bf16 %v2304, %v2303
    %s2329 = scalar_lea.vmem %s3, 64
    %v2330 = vld [vmem:[%s2329] sm:$0xf]
    %v2331 = vld [vmem:[%s2329 + $0x4] sm:$0xf]
    %v2332 = vld [vmem:[%s2329 + $0x8] sm:$0xf]
    %v2333 = vld [vmem:[%s2329 + $0xc] sm:$0xf]
    %v2334 = vld [vmem:[%s2329 + $0x10] sm:$0xf]
    %v2335 = vld [vmem:[%s2329 + $0x14] sm:$0xf]
    %v2336 = vld [vmem:[%s2329 + $0x18] sm:$0xf]
    %v2337 = vld [vmem:[%s2329 + $0x1c] sm:$0xf]
    %v2338 = vld [vmem:[%s2329 + $0x20] sm:$0xf]
    %v2339 = vld [vmem:[%s2329 + $0x24] sm:$0xf]
    %v2340 = vld [vmem:[%s2329 + $0x28] sm:$0xf]
    %v2341 = vld [vmem:[%s2329 + $0x2c] sm:$0xf]
    %v2342 = vld [vmem:[%s2329 + $0x30] sm:$0xf]
    %v2343 = vld [vmem:[%s2329 + $0x34] sm:$0xf]
    %v2344 = vld [vmem:[%s2329 + $0x38] sm:$0xf]
    %v2345 = vld [vmem:[%s2329 + $0x3c] sm:$0xf]
    %s2346 = scalar_lea.vmem %s4, 1
    %v2347 = vld [vmem:[%s2346] sm:$0x1]
    %v2349 = vperm.slane %v2347, 0
    %v2367 = vunpack.c.l.b16 %v2330
    %v2368 = vunpack.c.l.b16 %v2331
    %v2369 = vunpack.c.l.b16 %v2332
    %v2370 = vunpack.c.l.b16 %v2333
    %v2371 = vunpack.c.l.b16 %v2334
    %v2372 = vunpack.c.l.b16 %v2335
    %v2373 = vunpack.c.l.b16 %v2336
    %v2374 = vunpack.c.l.b16 %v2337
    %v2375 = vunpack.c.l.b16 %v2338
    %v2376 = vunpack.c.l.b16 %v2339
    %v2377 = vunpack.c.l.b16 %v2340
    %v2378 = vunpack.c.l.b16 %v2341
    %v2379 = vunpack.c.l.b16 %v2342
    %v2380 = vunpack.c.l.b16 %v2343
    %v2381 = vunpack.c.l.b16 %v2344
    %v2382 = vunpack.c.l.b16 %v2345
    %v2383 = vpack.c.b16 %v2368, %v2367
    %v2384 = vpack.c.b16 %v2370, %v2369
    %v2385 = vpack.c.b16 %v2372, %v2371
    %v2386 = vpack.c.b16 %v2374, %v2373
    %v2387 = vpack.c.b16 %v2376, %v2375
    %v2388 = vpack.c.b16 %v2378, %v2377
    %v2389 = vpack.c.b16 %v2380, %v2379
    %v2390 = vpack.c.b16 %v2382, %v2381
    %2399 = vmatpush.bf16.msra.mxu0 %v2390
    %2400 = vmatpush.bf16.msra.mxu0 %v2389
    %2401 = vmatpush.bf16.msra.mxu0 %v2388
    %2402 = vmatpush.bf16.msra.mxu0 %v2387
    %2403 = vmatpush.bf16.msra.mxu0 %v2386
    %2404 = vmatpush.bf16.msra.mxu0 %v2385
    %2405 = vmatpush.bf16.msra.mxu0 %v2384
    %2406 = vmatpush.bf16.msra.mxu0 %v2383
    %2407 = vmatmul.bf16.gmra.mxu0 %v2305
    %v2408 = vpop.f32.mrf.mxu0
    %v2409 = vadd.f32 %v2349, %v2408
    %v2410 = vpop.f32.mrf.mxu0
    %v2411 = vadd.f32 %v2349, %v2410
    %2412 = vmatmul.bf16.gmra.mxu0 %v2306
    %v2413 = vpop.f32.mrf.mxu0
    %v2414 = vadd.f32 %v2349, %v2413
    %v2415 = vpop.f32.mrf.mxu0
    %v2416 = vadd.f32 %v2349, %v2415
    %2417 = vmatmul.bf16.gmra.mxu0 %v2307
    %v2418 = vpop.f32.mrf.mxu0
    %v2419 = vadd.f32 %v2349, %v2418
    %v2420 = vpop.f32.mrf.mxu0
    %v2421 = vadd.f32 %v2349, %v2420
    %2422 = vmatmul.bf16.gmra.mxu0 %v2308
    %v2423 = vpop.f32.mrf.mxu0
    %v2424 = vadd.f32 %v2349, %v2423
    %v2425 = vpop.f32.mrf.mxu0
    %v2426 = vadd.f32 %v2349, %v2425
    %2427 = vmatmul.bf16.gmra.mxu0 %v2309
    %v2428 = vpop.f32.mrf.mxu0
    %v2429 = vadd.f32 %v2349, %v2428
    %v2430 = vpop.f32.mrf.mxu0
    %v2431 = vadd.f32 %v2349, %v2430
    %2432 = vmatmul.bf16.gmra.mxu0 %v2310
    %v2433 = vpop.f32.mrf.mxu0
    %v2434 = vadd.f32 %v2349, %v2433
    %v2435 = vpop.f32.mrf.mxu0
    %v2436 = vadd.f32 %v2349, %v2435
    %2437 = vmatmul.bf16.gmra.mxu0 %v2311
    %v2438 = vpop.f32.mrf.mxu0
    %v2439 = vadd.f32 %v2349, %v2438
    %v2440 = vpop.f32.mrf.mxu0
    %v2441 = vadd.f32 %v2349, %v2440
    %2442 = vmatmul.bf16.gmra.mxu0 %v2312
    %v2443 = vpop.f32.mrf.mxu0
    %v2444 = vadd.f32 %v2349, %v2443
    %v2445 = vpop.f32.mrf.mxu0
    %v2446 = vadd.f32 %v2349, %v2445
    %2447 = vmatmul.bf16.gmra.mxu0 %v2313
    %v2448 = vpop.f32.mrf.mxu0
    %v2449 = vadd.f32 %v2349, %v2448
    %v2450 = vpop.f32.mrf.mxu0
    %v2451 = vadd.f32 %v2349, %v2450
    %2452 = vmatmul.bf16.gmra.mxu0 %v2314
    %v2453 = vpop.f32.mrf.mxu0
    %v2454 = vadd.f32 %v2349, %v2453
    %v2455 = vpop.f32.mrf.mxu0
    %v2456 = vadd.f32 %v2349, %v2455
    %2457 = vmatmul.bf16.gmra.mxu0 %v2315
    %v2458 = vpop.f32.mrf.mxu0
    %v2459 = vadd.f32 %v2349, %v2458
    %v2460 = vpop.f32.mrf.mxu0
    %v2461 = vadd.f32 %v2349, %v2460
    %2462 = vmatmul.bf16.gmra.mxu0 %v2316
    %v2463 = vpop.f32.mrf.mxu0
    %v2464 = vadd.f32 %v2349, %v2463
    %v2465 = vpop.f32.mrf.mxu0
    %v2466 = vadd.f32 %v2349, %v2465
    %2467 = vmatmul.bf16.gmra.mxu0 %v2317
    %v2468 = vpop.f32.mrf.mxu0
    %v2469 = vadd.f32 %v2349, %v2468
    %v2470 = vpop.f32.mrf.mxu0
    %v2471 = vadd.f32 %v2349, %v2470
    %2472 = vmatmul.bf16.gmra.mxu0 %v2318
    %v2473 = vpop.f32.mrf.mxu0
    %v2474 = vadd.f32 %v2349, %v2473
    %v2475 = vpop.f32.mrf.mxu0
    %v2476 = vadd.f32 %v2349, %v2475
    %2477 = vmatmul.bf16.gmra.mxu0 %v2319
    %v2478 = vpop.f32.mrf.mxu0
    %v2479 = vadd.f32 %v2349, %v2478
    %v2480 = vpop.f32.mrf.mxu0
    %v2481 = vadd.f32 %v2349, %v2480
    %2482 = vmatmul.bf16.gmra.mxu0 %v2320
    %v2483 = vpop.f32.mrf.mxu0
    %v2484 = vadd.f32 %v2349, %v2483
    %v2485 = vpop.f32.mrf.mxu0
    %v2486 = vadd.f32 %v2349, %v2485
    %2487 = vmatmul.bf16.gmra.mxu0 %v2321
    %v2488 = vpop.f32.mrf.mxu0
    %v2489 = vadd.f32 %v2349, %v2488
    %v2490 = vpop.f32.mrf.mxu0
    %v2491 = vadd.f32 %v2349, %v2490
    %2492 = vmatmul.bf16.gmra.mxu0 %v2322
    %v2493 = vpop.f32.mrf.mxu0
    %v2494 = vadd.f32 %v2349, %v2493
    %v2495 = vpop.f32.mrf.mxu0
    %v2496 = vadd.f32 %v2349, %v2495
    %2497 = vmatmul.bf16.gmra.mxu0 %v2323
    %v2498 = vpop.f32.mrf.mxu0
    %v2499 = vadd.f32 %v2349, %v2498
    %v2500 = vpop.f32.mrf.mxu0
    %v2501 = vadd.f32 %v2349, %v2500
    %2502 = vmatmul.bf16.gmra.mxu0 %v2324
    %v2503 = vpop.f32.mrf.mxu0
    %v2504 = vadd.f32 %v2349, %v2503
    %v2505 = vpop.f32.mrf.mxu0
    %v2506 = vadd.f32 %v2349, %v2505
    %2507 = vmatmul.bf16.gmra.mxu0 %v2325
    %v2508 = vpop.f32.mrf.mxu0
    %v2509 = vadd.f32 %v2349, %v2508
    %v2510 = vpop.f32.mrf.mxu0
    %v2511 = vadd.f32 %v2349, %v2510
    %2512 = vmatmul.bf16.gmra.mxu0 %v2326
    %v2513 = vpop.f32.mrf.mxu0
    %v2514 = vadd.f32 %v2349, %v2513
    %v2515 = vpop.f32.mrf.mxu0
    %v2516 = vadd.f32 %v2349, %v2515
    %2517 = vmatmul.bf16.gmra.mxu0 %v2327
    %v2518 = vpop.f32.mrf.mxu0
    %v2519 = vadd.f32 %v2349, %v2518
    %v2520 = vpop.f32.mrf.mxu0
    %v2521 = vadd.f32 %v2349, %v2520
    %2522 = vmatmul.bf16.gmra.mxu0 %v2328
    %v2523 = vpop.f32.mrf.mxu0
    %v2524 = vadd.f32 %v2349, %v2523
    %v2525 = vpop.f32.mrf.mxu0
    %v2526 = vadd.f32 %v2349, %v2525
    %2527 = vdwg.mxu0
    %v2528 = vmul.f32 %v2409, 0.5
    %v2529 = vmul.f32 %v2411, 0.5
    %v2530 = vmul.f32 %v2414, 0.5
    %v2531 = vmul.f32 %v2416, 0.5
    %v2532 = vmul.f32 %v2419, 0.5
    %v2533 = vmul.f32 %v2421, 0.5
    %v2534 = vmul.f32 %v2424, 0.5
    %v2535 = vmul.f32 %v2426, 0.5
    %v2536 = vmul.f32 %v2429, 0.5
    %v2537 = vmul.f32 %v2431, 0.5
    %v2538 = vmul.f32 %v2434, 0.5
    %v2539 = vmul.f32 %v2436, 0.5
    %v2540 = vmul.f32 %v2439, 0.5
    %v2541 = vmul.f32 %v2441, 0.5
    %v2542 = vmul.f32 %v2444, 0.5
    %v2543 = vmul.f32 %v2446, 0.5
    %v2544 = vmul.f32 %v2449, 0.5
    %v2545 = vmul.f32 %v2451, 0.5
    %v2546 = vmul.f32 %v2454, 0.5
    %v2547 = vmul.f32 %v2456, 0.5
    %v2548 = vmul.f32 %v2459, 0.5
    %v2549 = vmul.f32 %v2461, 0.5
    %v2550 = vmul.f32 %v2464, 0.5
    %v2551 = vmul.f32 %v2466, 0.5
    %v2552 = vmul.f32 %v2469, 0.5
    %v2553 = vmul.f32 %v2471, 0.5
    %v2554 = vmul.f32 %v2474, 0.5
    %v2555 = vmul.f32 %v2476, 0.5
    %v2556 = vmul.f32 %v2479, 0.5
    %v2557 = vmul.f32 %v2481, 0.5
    %v2558 = vmul.f32 %v2484, 0.5
    %v2559 = vmul.f32 %v2486, 0.5
    %v2560 = vmul.f32 %v2489, 0.5
    %v2561 = vmul.f32 %v2491, 0.5
    %v2562 = vmul.f32 %v2494, 0.5
    %v2563 = vmul.f32 %v2496, 0.5
    %v2564 = vmul.f32 %v2499, 0.5
    %v2565 = vmul.f32 %v2501, 0.5
    %v2566 = vmul.f32 %v2504, 0.5
    %v2567 = vmul.f32 %v2506, 0.5
    %v2568 = vmul.f32 %v2509, 0.5
    %v2569 = vmul.f32 %v2511, 0.5
    %v2570 = vmul.f32 %v2514, 0.5
    %v2571 = vmul.f32 %v2516, 0.5
    %v2572 = vmul.f32 %v2519, 0.5
    %v2573 = vmul.f32 %v2521, 0.5
    %v2574 = vmul.f32 %v2524, 0.5
    %v2575 = vmul.f32 %v2526, 0.5
    %v2576 = vmul.f32 %v2409, 0.044715
    %v2577 = vmul.f32 %v2411, 0.044715
    %v2578 = vmul.f32 %v2414, 0.044715
    %v2579 = vmul.f32 %v2416, 0.044715
    %v2580 = vmul.f32 %v2419, 0.044715
    %v2581 = vmul.f32 %v2421, 0.044715
    %v2582 = vmul.f32 %v2424, 0.044715
    %v2583 = vmul.f32 %v2426, 0.044715
    %v2584 = vmul.f32 %v2429, 0.044715
    %v2585 = vmul.f32 %v2431, 0.044715
    %v2586 = vmul.f32 %v2434, 0.044715
    %v2587 = vmul.f32 %v2436, 0.044715
    %v2588 = vmul.f32 %v2439, 0.044715
    %v2589 = vmul.f32 %v2441, 0.044715
    %v2590 = vmul.f32 %v2444, 0.044715
    %v2591 = vmul.f32 %v2446, 0.044715
    %v2592 = vmul.f32 %v2449, 0.044715
    %v2593 = vmul.f32 %v2451, 0.044715
    %v2594 = vmul.f32 %v2454, 0.044715
    %v2595 = vmul.f32 %v2456, 0.044715
    %v2596 = vmul.f32 %v2459, 0.044715
    %v2597 = vmul.f32 %v2461, 0.044715
    %v2598 = vmul.f32 %v2464, 0.044715
    %v2599 = vmul.f32 %v2466, 0.044715
    %v2600 = vmul.f32 %v2469, 0.044715
    %v2601 = vmul.f32 %v2471, 0.044715
    %v2602 = vmul.f32 %v2474, 0.044715
    %v2603 = vmul.f32 %v2476, 0.044715
    %v2604 = vmul.f32 %v2479, 0.044715
    %v2605 = vmul.f32 %v2481, 0.044715
    %v2606 = vmul.f32 %v2484, 0.044715
    %v2607 = vmul.f32 %v2486, 0.044715
    %v2608 = vmul.f32 %v2489, 0.044715
    %v2609 = vmul.f32 %v2491, 0.044715
    %v2610 = vmul.f32 %v2494, 0.044715
    %v2611 = vmul.f32 %v2496, 0.044715
    %v2612 = vmul.f32 %v2499, 0.044715
    %v2613 = vmul.f32 %v2501, 0.044715
    %v2614 = vmul.f32 %v2504, 0.044715
    %v2615 = vmul.f32 %v2506, 0.044715
    %v2616 = vmul.f32 %v2509, 0.044715
    %v2617 = vmul.f32 %v2511, 0.044715
    %v2618 = vmul.f32 %v2514, 0.044715
    %v2619 = vmul.f32 %v2516, 0.044715
    %v2620 = vmul.f32 %v2519, 0.044715
    %v2621 = vmul.f32 %v2521, 0.044715
    %v2622 = vmul.f32 %v2524, 0.044715
    %v2623 = vmul.f32 %v2526, 0.044715
    %v2624 = vmul.f32 %v2576, %v2409
    %v2625 = vmul.f32 %v2577, %v2411
    %v2626 = vmul.f32 %v2578, %v2414
    %v2627 = vmul.f32 %v2579, %v2416
    %v2628 = vmul.f32 %v2580, %v2419
    %v2629 = vmul.f32 %v2581, %v2421
    %v2630 = vmul.f32 %v2582, %v2424
    %v2631 = vmul.f32 %v2583, %v2426
    %v2632 = vmul.f32 %v2584, %v2429
    %v2633 = vmul.f32 %v2585, %v2431
    %v2634 = vmul.f32 %v2586, %v2434
    %v2635 = vmul.f32 %v2587, %v2436
    %v2636 = vmul.f32 %v2588, %v2439
    %v2637 = vmul.f32 %v2589, %v2441
    %v2638 = vmul.f32 %v2590, %v2444
    %v2639 = vmul.f32 %v2591, %v2446
    %v2640 = vmul.f32 %v2592, %v2449
    %v2641 = vmul.f32 %v2593, %v2451
    %v2642 = vmul.f32 %v2594, %v2454
    %v2643 = vmul.f32 %v2595, %v2456
    %v2644 = vmul.f32 %v2596, %v2459
    %v2645 = vmul.f32 %v2597, %v2461
    %v2646 = vmul.f32 %v2598, %v2464
    %v2647 = vmul.f32 %v2599, %v2466
    %v2648 = vmul.f32 %v2600, %v2469
    %v2649 = vmul.f32 %v2601, %v2471
    %v2650 = vmul.f32 %v2602, %v2474
    %v2651 = vmul.f32 %v2603, %v2476
    %v2652 = vmul.f32 %v2604, %v2479
    %v2653 = vmul.f32 %v2605, %v2481
    %v2654 = vmul.f32 %v2606, %v2484
    %v2655 = vmul.f32 %v2607, %v2486
    %v2656 = vmul.f32 %v2608, %v2489
    %v2657 = vmul.f32 %v2609, %v2491
    %v2658 = vmul.f32 %v2610, %v2494
    %v2659 = vmul.f32 %v2611, %v2496
    %v2660 = vmul.f32 %v2612, %v2499
    %v2661 = vmul.f32 %v2613, %v2501
    %v2662 = vmul.f32 %v2614, %v2504
    %v2663 = vmul.f32 %v2615, %v2506
    %v2664 = vmul.f32 %v2616, %v2509
    %v2665 = vmul.f32 %v2617, %v2511
    %v2666 = vmul.f32 %v2618, %v2514
    %v2667 = vmul.f32 %v2619, %v2516
    %v2668 = vmul.f32 %v2620, %v2519
    %v2669 = vmul.f32 %v2621, %v2521
    %v2670 = vmul.f32 %v2622, %v2524
    %v2671 = vmul.f32 %v2623, %v2526
    %v2672 = vmul.f32 %v2624, %v2409
    %v2673 = vmul.f32 %v2625, %v2411
    %v2674 = vmul.f32 %v2626, %v2414
    %v2675 = vmul.f32 %v2627, %v2416
    %v2676 = vmul.f32 %v2628, %v2419
    %v2677 = vmul.f32 %v2629, %v2421
    %v2678 = vmul.f32 %v2630, %v2424
    %v2679 = vmul.f32 %v2631, %v2426
    %v2680 = vmul.f32 %v2632, %v2429
    %v2681 = vmul.f32 %v2633, %v2431
    %v2682 = vmul.f32 %v2634, %v2434
    %v2683 = vmul.f32 %v2635, %v2436
    %v2684 = vmul.f32 %v2636, %v2439
    %v2685 = vmul.f32 %v2637, %v2441
    %v2686 = vmul.f32 %v2638, %v2444
    %v2687 = vmul.f32 %v2639, %v2446
    %v2688 = vmul.f32 %v2640, %v2449
    %v2689 = vmul.f32 %v2641, %v2451
    %v2690 = vmul.f32 %v2642, %v2454
    %v2691 = vmul.f32 %v2643, %v2456
    %v2692 = vmul.f32 %v2644, %v2459
    %v2693 = vmul.f32 %v2645, %v2461
    %v2694 = vmul.f32 %v2646, %v2464
    %v2695 = vmul.f32 %v2647, %v2466
    %v2696 = vmul.f32 %v2648, %v2469
    %v2697 = vmul.f32 %v2649, %v2471
    %v2698 = vmul.f32 %v2650, %v2474
    %v2699 = vmul.f32 %v2651, %v2476
    %v2700 = vmul.f32 %v2652, %v2479
    %v2701 = vmul.f32 %v2653, %v2481
    %v2702 = vmul.f32 %v2654, %v2484
    %v2703 = vmul.f32 %v2655, %v2486
    %v2704 = vmul.f32 %v2656, %v2489
    %v2705 = vmul.f32 %v2657, %v2491
    %v2706 = vmul.f32 %v2658, %v2494
    %v2707 = vmul.f32 %v2659, %v2496
    %v2708 = vmul.f32 %v2660, %v2499
    %v2709 = vmul.f32 %v2661, %v2501
    %v2710 = vmul.f32 %v2662, %v2504
    %v2711 = vmul.f32 %v2663, %v2506
    %v2712 = vmul.f32 %v2664, %v2509
    %v2713 = vmul.f32 %v2665, %v2511
    %v2714 = vmul.f32 %v2666, %v2514
    %v2715 = vmul.f32 %v2667, %v2516
    %v2716 = vmul.f32 %v2668, %v2519
    %v2717 = vmul.f32 %v2669, %v2521
    %v2718 = vmul.f32 %v2670, %v2524
    %v2719 = vmul.f32 %v2671, %v2526
    %v2720 = vadd.f32 %v2409, %v2672
    %v2721 = vadd.f32 %v2411, %v2673
    %v2722 = vadd.f32 %v2414, %v2674
    %v2723 = vadd.f32 %v2416, %v2675
    %v2724 = vadd.f32 %v2419, %v2676
    %v2725 = vadd.f32 %v2421, %v2677
    %v2726 = vadd.f32 %v2424, %v2678
    %v2727 = vadd.f32 %v2426, %v2679
    %v2728 = vadd.f32 %v2429, %v2680
    %v2729 = vadd.f32 %v2431, %v2681
    %v2730 = vadd.f32 %v2434, %v2682
    %v2731 = vadd.f32 %v2436, %v2683
    %v2732 = vadd.f32 %v2439, %v2684
    %v2733 = vadd.f32 %v2441, %v2685
    %v2734 = vadd.f32 %v2444, %v2686
    %v2735 = vadd.f32 %v2446, %v2687
    %v2736 = vadd.f32 %v2449, %v2688
    %v2737 = vadd.f32 %v2451, %v2689
    %v2738 = vadd.f32 %v2454, %v2690
    %v2739 = vadd.f32 %v2456, %v2691
    %v2740 = vadd.f32 %v2459, %v2692
    %v2741 = vadd.f32 %v2461, %v2693
    %v2742 = vadd.f32 %v2464, %v2694
    %v2743 = vadd.f32 %v2466, %v2695
    %v2744 = vadd.f32 %v2469, %v2696
    %v2745 = vadd.f32 %v2471, %v2697
    %v2746 = vadd.f32 %v2474, %v2698
    %v2747 = vadd.f32 %v2476, %v2699
    %v2748 = vadd.f32 %v2479, %v2700
    %v2749 = vadd.f32 %v2481, %v2701
    %v2750 = vadd.f32 %v2484, %v2702
    %v2751 = vadd.f32 %v2486, %v2703
    %v2752 = vadd.f32 %v2489, %v2704
    %v2753 = vadd.f32 %v2491, %v2705
    %v2754 = vadd.f32 %v2494, %v2706
    %v2755 = vadd.f32 %v2496, %v2707
    %v2756 = vadd.f32 %v2499, %v2708
    %v2757 = vadd.f32 %v2501, %v2709
    %v2758 = vadd.f32 %v2504, %v2710
    %v2759 = vadd.f32 %v2506, %v2711
    %v2760 = vadd.f32 %v2509, %v2712
    %v2761 = vadd.f32 %v2511, %v2713
    %v2762 = vadd.f32 %v2514, %v2714
    %v2763 = vadd.f32 %v2516, %v2715
    %v2764 = vadd.f32 %v2519, %v2716
    %v2765 = vadd.f32 %v2521, %v2717
    %v2766 = vadd.f32 %v2524, %v2718
    %v2767 = vadd.f32 %v2526, %v2719
    %v2768 = vmul.f32 %v2720, 0.7978846
    %v2769 = vmul.f32 %v2721, 0.7978846
    %v2770 = vmul.f32 %v2722, 0.7978846
    %v2771 = vmul.f32 %v2723, 0.7978846
    %v2772 = vmul.f32 %v2724, 0.7978846
    %v2773 = vmul.f32 %v2725, 0.7978846
    %v2774 = vmul.f32 %v2726, 0.7978846
    %v2775 = vmul.f32 %v2727, 0.7978846
    %v2776 = vmul.f32 %v2728, 0.7978846
    %v2777 = vmul.f32 %v2729, 0.7978846
    %v2778 = vmul.f32 %v2730, 0.7978846
    %v2779 = vmul.f32 %v2731, 0.7978846
    %v2780 = vmul.f32 %v2732, 0.7978846
    %v2781 = vmul.f32 %v2733, 0.7978846
    %v2782 = vmul.f32 %v2734, 0.7978846
    %v2783 = vmul.f32 %v2735, 0.7978846
    %v2784 = vmul.f32 %v2736, 0.7978846
    %v2785 = vmul.f32 %v2737, 0.7978846
    %v2786 = vmul.f32 %v2738, 0.7978846
    %v2787 = vmul.f32 %v2739, 0.7978846
    %v2788 = vmul.f32 %v2740, 0.7978846
    %v2789 = vmul.f32 %v2741, 0.7978846
    %v2790 = vmul.f32 %v2742, 0.7978846
    %v2791 = vmul.f32 %v2743, 0.7978846
    %v2792 = vmul.f32 %v2744, 0.7978846
    %v2793 = vmul.f32 %v2745, 0.7978846
    %v2794 = vmul.f32 %v2746, 0.7978846
    %v2795 = vmul.f32 %v2747, 0.7978846
    %v2796 = vmul.f32 %v2748, 0.7978846
    %v2797 = vmul.f32 %v2749, 0.7978846
    %v2798 = vmul.f32 %v2750, 0.7978846
    %v2799 = vmul.f32 %v2751, 0.7978846
    %v2800 = vmul.f32 %v2752, 0.7978846
    %v2801 = vmul.f32 %v2753, 0.7978846
    %v2802 = vmul.f32 %v2754, 0.7978846
    %v2803 = vmul.f32 %v2755, 0.7978846
    %v2804 = vmul.f32 %v2756, 0.7978846
    %v2805 = vmul.f32 %v2757, 0.7978846
    %v2806 = vmul.f32 %v2758, 0.7978846
    %v2807 = vmul.f32 %v2759, 0.7978846
    %v2808 = vmul.f32 %v2760, 0.7978846
    %v2809 = vmul.f32 %v2761, 0.7978846
    %v2810 = vmul.f32 %v2762, 0.7978846
    %v2811 = vmul.f32 %v2763, 0.7978846
    %v2812 = vmul.f32 %v2764, 0.7978846
    %v2813 = vmul.f32 %v2765, 0.7978846
    %v2814 = vmul.f32 %v2766, 0.7978846
    %v2815 = vmul.f32 %v2767, 0.7978846
    %v2816 = vtanh.pop %v2768
    %v2817 = vtanh.pop %v2769
    %v2818 = vtanh.pop %v2770
    %v2819 = vtanh.pop %v2771
    %v2820 = vtanh.pop %v2772
    %v2821 = vtanh.pop %v2773
    %v2822 = vtanh.pop %v2774
    %v2823 = vtanh.pop %v2775
    %v2824 = vtanh.pop %v2776
    %v2825 = vtanh.pop %v2777
    %v2826 = vtanh.pop %v2778
    %v2827 = vtanh.pop %v2779
    %v2828 = vtanh.pop %v2780
    %v2829 = vtanh.pop %v2781
    %v2830 = vtanh.pop %v2782
    %v2831 = vtanh.pop %v2783
    %v2832 = vtanh.pop %v2784
    %v2833 = vtanh.pop %v2785
    %v2834 = vtanh.pop %v2786
    %v2835 = vtanh.pop %v2787
    %v2836 = vtanh.pop %v2788
    %v2837 = vtanh.pop %v2789
    %v2838 = vtanh.pop %v2790
    %v2839 = vtanh.pop %v2791
    %v2840 = vtanh.pop %v2792
    %v2841 = vtanh.pop %v2793
    %v2842 = vtanh.pop %v2794
    %v2843 = vtanh.pop %v2795
    %v2844 = vtanh.pop %v2796
    %v2845 = vtanh.pop %v2797
    %v2846 = vtanh.pop %v2798
    %v2847 = vtanh.pop %v2799
    %v2848 = vtanh.pop %v2800
    %v2849 = vtanh.pop %v2801
    %v2850 = vtanh.pop %v2802
    %v2851 = vtanh.pop %v2803
    %v2852 = vtanh.pop %v2804
    %v2853 = vtanh.pop %v2805
    %v2854 = vtanh.pop %v2806
    %v2855 = vtanh.pop %v2807
    %v2856 = vtanh.pop %v2808
    %v2857 = vtanh.pop %v2809
    %v2858 = vtanh.pop %v2810
    %v2859 = vtanh.pop %v2811
    %v2860 = vtanh.pop %v2812
    %v2861 = vtanh.pop %v2813
    %v2862 = vtanh.pop %v2814
    %v2863 = vtanh.pop %v2815
    %v2864 = vadd.f32 %v2816, 1.0
    %v2865 = vadd.f32 %v2817, 1.0
    %v2866 = vadd.f32 %v2818, 1.0
    %v2867 = vadd.f32 %v2819, 1.0
    %v2868 = vadd.f32 %v2820, 1.0
    %v2869 = vadd.f32 %v2821, 1.0
    %v2870 = vadd.f32 %v2822, 1.0
    %v2871 = vadd.f32 %v2823, 1.0
    %v2872 = vadd.f32 %v2824, 1.0
    %v2873 = vadd.f32 %v2825, 1.0
    %v2874 = vadd.f32 %v2826, 1.0
    %v2875 = vadd.f32 %v2827, 1.0
    %v2876 = vadd.f32 %v2828, 1.0
    %v2877 = vadd.f32 %v2829, 1.0
    %v2878 = vadd.f32 %v2830, 1.0
    %v2879 = vadd.f32 %v2831, 1.0
    %v2880 = vadd.f32 %v2832, 1.0
    %v2881 = vadd.f32 %v2833, 1.0
    %v2882 = vadd.f32 %v2834, 1.0
    %v2883 = vadd.f32 %v2835, 1.0
    %v2884 = vadd.f32 %v2836, 1.0
    %v2885 = vadd.f32 %v2837, 1.0
    %v2886 = vadd.f32 %v2838, 1.0
    %v2887 = vadd.f32 %v2839, 1.0
    %v2888 = vadd.f32 %v2840, 1.0
    %v2889 = vadd.f32 %v2841, 1.0
    %v2890 = vadd.f32 %v2842, 1.0
    %v2891 = vadd.f32 %v2843, 1.0
    %v2892 = vadd.f32 %v2844, 1.0
    %v2893 = vadd.f32 %v2845, 1.0
    %v2894 = vadd.f32 %v2846, 1.0
    %v2895 = vadd.f32 %v2847, 1.0
    %v2896 = vadd.f32 %v2848, 1.0
    %v2897 = vadd.f32 %v2849, 1.0
    %v2898 = vadd.f32 %v2850, 1.0
    %v2899 = vadd.f32 %v2851, 1.0
    %v2900 = vadd.f32 %v2852, 1.0
    %v2901 = vadd.f32 %v2853, 1.0
    %v2902 = vadd.f32 %v2854, 1.0
    %v2903 = vadd.f32 %v2855, 1.0
    %v2904 = vadd.f32 %v2856, 1.0
    %v2905 = vadd.f32 %v2857, 1.0
    %v2906 = vadd.f32 %v2858, 1.0
    %v2907 = vadd.f32 %v2859, 1.0
    %v2908 = vadd.f32 %v2860, 1.0
    %v2909 = vadd.f32 %v2861, 1.0
    %v2910 = vadd.f32 %v2862, 1.0
    %v2911 = vadd.f32 %v2863, 1.0
    %v2912 = vmul.f32 %v2528, %v2864
    %v2913 = vmul.f32 %v2529, %v2865
    %v2914 = vmul.f32 %v2530, %v2866
    %v2915 = vmul.f32 %v2531, %v2867
    %v2916 = vmul.f32 %v2532, %v2868
    %v2917 = vmul.f32 %v2533, %v2869
    %v2918 = vmul.f32 %v2534, %v2870
    %v2919 = vmul.f32 %v2535, %v2871
    %v2920 = vmul.f32 %v2536, %v2872
    %v2921 = vmul.f32 %v2537, %v2873
    %v2922 = vmul.f32 %v2538, %v2874
    %v2923 = vmul.f32 %v2539, %v2875
    %v2924 = vmul.f32 %v2540, %v2876
    %v2925 = vmul.f32 %v2541, %v2877
    %v2926 = vmul.f32 %v2542, %v2878
    %v2927 = vmul.f32 %v2543, %v2879
    %v2928 = vmul.f32 %v2544, %v2880
    %v2929 = vmul.f32 %v2545, %v2881
    %v2930 = vmul.f32 %v2546, %v2882
    %v2931 = vmul.f32 %v2547, %v2883
    %v2932 = vmul.f32 %v2548, %v2884
    %v2933 = vmul.f32 %v2549, %v2885
    %v2934 = vmul.f32 %v2550, %v2886
    %v2935 = vmul.f32 %v2551, %v2887
    %v2936 = vmul.f32 %v2552, %v2888
    %v2937 = vmul.f32 %v2553, %v2889
    %v2938 = vmul.f32 %v2554, %v2890
    %v2939 = vmul.f32 %v2555, %v2891
    %v2940 = vmul.f32 %v2556, %v2892
    %v2941 = vmul.f32 %v2557, %v2893
    %v2942 = vmul.f32 %v2558, %v2894
    %v2943 = vmul.f32 %v2559, %v2895
    %v2944 = vmul.f32 %v2560, %v2896
    %v2945 = vmul.f32 %v2561, %v2897
    %v2946 = vmul.f32 %v2562, %v2898
    %v2947 = vmul.f32 %v2563, %v2899
    %v2948 = vmul.f32 %v2564, %v2900
    %v2949 = vmul.f32 %v2565, %v2901
    %v2950 = vmul.f32 %v2566, %v2902
    %v2951 = vmul.f32 %v2567, %v2903
    %v2952 = vmul.f32 %v2568, %v2904
    %v2953 = vmul.f32 %v2569, %v2905
    %v2954 = vmul.f32 %v2570, %v2906
    %v2955 = vmul.f32 %v2571, %v2907
    %v2956 = vmul.f32 %v2572, %v2908
    %v2957 = vmul.f32 %v2573, %v2909
    %v2958 = vmul.f32 %v2574, %v2910
    %v2959 = vmul.f32 %v2575, %v2911
    %3008 = vrot.lane.b32.xlu0 %v2912, 64
    %v3009 = vpop.permute.xlu0 %3008
    %3010 = vrot.lane.b32.xlu0 %v2913, 64
    %v3011 = vpop.permute.xlu0 %3010
    %3012 = vrot.lane.b32.xlu0 %v2914, 64
    %v3013 = vpop.permute.xlu0 %3012
    %3014 = vrot.lane.b32.xlu0 %v2915, 64
    %v3015 = vpop.permute.xlu0 %3014
    %3016 = vrot.lane.b32.xlu0 %v2916, 64
    %v3017 = vpop.permute.xlu0 %3016
    %3018 = vrot.lane.b32.xlu0 %v2917, 64
    %v3019 = vpop.permute.xlu0 %3018
    %3020 = vrot.lane.b32.xlu0 %v2918, 64
    %v3021 = vpop.permute.xlu0 %3020
    %3022 = vrot.lane.b32.xlu0 %v2919, 64
    %v3023 = vpop.permute.xlu0 %3022
    %3024 = vrot.lane.b32.xlu0 %v2920, 64
    %v3025 = vpop.permute.xlu0 %3024
    %3026 = vrot.lane.b32.xlu0 %v2921, 64
    %v3027 = vpop.permute.xlu0 %3026
    %3028 = vrot.lane.b32.xlu0 %v2922, 64
    %v3029 = vpop.permute.xlu0 %3028
    %3030 = vrot.lane.b32.xlu0 %v2923, 64
    %v3031 = vpop.permute.xlu0 %3030
    %3032 = vrot.lane.b32.xlu0 %v2924, 64
    %v3033 = vpop.permute.xlu0 %3032
    %3034 = vrot.lane.b32.xlu0 %v2925, 64
    %v3035 = vpop.permute.xlu0 %3034
    %3036 = vrot.lane.b32.xlu0 %v2926, 64
    %v3037 = vpop.permute.xlu0 %3036
    %3038 = vrot.lane.b32.xlu0 %v2927, 64
    %v3039 = vpop.permute.xlu0 %3038
    %3040 = vrot.lane.b32.xlu0 %v2928, 64
    %v3041 = vpop.permute.xlu0 %3040
    %3042 = vrot.lane.b32.xlu0 %v2929, 64
    %v3043 = vpop.permute.xlu0 %3042
    %3044 = vrot.lane.b32.xlu0 %v2930, 64
    %v3045 = vpop.permute.xlu0 %3044
    %3046 = vrot.lane.b32.xlu0 %v2931, 64
    %v3047 = vpop.permute.xlu0 %3046
    %3048 = vrot.lane.b32.xlu0 %v2932, 64
    %v3049 = vpop.permute.xlu0 %3048
    %3050 = vrot.lane.b32.xlu0 %v2933, 64
    %v3051 = vpop.permute.xlu0 %3050
    %3052 = vrot.lane.b32.xlu0 %v2934, 64
    %v3053 = vpop.permute.xlu0 %3052
    %3054 = vrot.lane.b32.xlu0 %v2935, 64
    %v3055 = vpop.permute.xlu0 %3054
    %3056 = vrot.lane.b32.xlu0 %v2936, 64
    %v3057 = vpop.permute.xlu0 %3056
    %3058 = vrot.lane.b32.xlu0 %v2937, 64
    %v3059 = vpop.permute.xlu0 %3058
    %3060 = vrot.lane.b32.xlu0 %v2938, 64
    %v3061 = vpop.permute.xlu0 %3060
    %3062 = vrot.lane.b32.xlu0 %v2939, 64
    %v3063 = vpop.permute.xlu0 %3062
    %3064 = vrot.lane.b32.xlu0 %v2940, 64
    %v3065 = vpop.permute.xlu0 %3064
    %3066 = vrot.lane.b32.xlu0 %v2941, 64
    %v3067 = vpop.permute.xlu0 %3066
    %3068 = vrot.lane.b32.xlu0 %v2942, 64
    %v3069 = vpop.permute.xlu0 %3068
    %3070 = vrot.lane.b32.xlu0 %v2943, 64
    %v3071 = vpop.permute.xlu0 %3070
    %3072 = vrot.lane.b32.xlu0 %v2944, 64
    %v3073 = vpop.permute.xlu0 %3072
    %3074 = vrot.lane.b32.xlu0 %v2945, 64
    %v3075 = vpop.permute.xlu0 %3074
    %3076 = vrot.lane.b32.xlu0 %v2946, 64
    %v3077 = vpop.permute.xlu0 %3076
    %3078 = vrot.lane.b32.xlu0 %v2947, 64
    %v3079 = vpop.permute.xlu0 %3078
    %3080 = vrot.lane.b32.xlu0 %v2948, 64
    %v3081 = vpop.permute.xlu0 %3080
    %3082 = vrot.lane.b32.xlu0 %v2949, 64
    %v3083 = vpop.permute.xlu0 %3082
    %3084 = vrot.lane.b32.xlu0 %v2950, 64
    %v3085 = vpop.permute.xlu0 %3084
    %3086 = vrot.lane.b32.xlu0 %v2951, 64
    %v3087 = vpop.permute.xlu0 %3086
    %3088 = vrot.lane.b32.xlu0 %v2952, 64
    %v3089 = vpop.permute.xlu0 %3088
    %3090 = vrot.lane.b32.xlu0 %v2953, 64
    %v3091 = vpop.permute.xlu0 %3090
    %3092 = vrot.lane.b32.xlu0 %v2954, 64
    %v3093 = vpop.permute.xlu0 %3092
    %3094 = vrot.lane.b32.xlu0 %v2955, 64
    %v3095 = vpop.permute.xlu0 %3094
    %3096 = vrot.lane.b32.xlu0 %v2956, 64
    %v3097 = vpop.permute.xlu0 %3096
    %3098 = vrot.lane.b32.xlu0 %v2957, 64
    %v3099 = vpop.permute.xlu0 %3098
    %3100 = vrot.lane.b32.xlu0 %v2958, 64
    %v3101 = vpop.permute.xlu0 %3100
    %3102 = vrot.lane.b32.xlu0 %v2959, 64
    %v3103 = vpop.permute.xlu0 %3102
    %vm3152 = vcmask 1048064
    %3153 = vst.msk [vmem:[#allocation2] sm:$0xff] %vm3152, %v3009
    %3154 = vst.msk [vmem:[#allocation2 + $0x8] sm:$0xff] %vm3152, %v3011
    %3155 = vst.msk [vmem:[#allocation2 + $0x10] sm:$0xff] %vm3152, %v3013
    %3156 = vst.msk [vmem:[#allocation2 + $0x18] sm:$0xff] %vm3152, %v3015
    %3157 = vst.msk [vmem:[#allocation2 + $0x20] sm:$0xff] %vm3152, %v3017
    %3158 = vst.msk [vmem:[#allocation2 + $0x28] sm:$0xff] %vm3152, %v3019
    %3159 = vst.msk [vmem:[#allocation2 + $0x30] sm:$0xff] %vm3152, %v3021
    %3160 = vst.msk [vmem:[#allocation2 + $0x38] sm:$0xff] %vm3152, %v3023
    %3161 = vst.msk [vmem:[#allocation2 + $0x40] sm:$0xff] %vm3152, %v3025
    %3162 = vst.msk [vmem:[#allocation2 + $0x48] sm:$0xff] %vm3152, %v3027
    %3163 = vst.msk [vmem:[#allocation2 + $0x50] sm:$0xff] %vm3152, %v3029
    %3164 = vst.msk [vmem:[#allocation2 + $0x58] sm:$0xff] %vm3152, %v3031
    %3165 = vst.msk [vmem:[#allocation2 + $0x60] sm:$0xff] %vm3152, %v3033
    %3166 = vst.msk [vmem:[#allocation2 + $0x68] sm:$0xff] %vm3152, %v3035
    %3167 = vst.msk [vmem:[#allocation2 + $0x70] sm:$0xff] %vm3152, %v3037
    %3168 = vst.msk [vmem:[#allocation2 + $0x78] sm:$0xff] %vm3152, %v3039
    %3169 = vst.msk [vmem:[#allocation2 + $0x80] sm:$0xff] %vm3152, %v3041
    %3170 = vst.msk [vmem:[#allocation2 + $0x88] sm:$0xff] %vm3152, %v3043
    %3171 = vst.msk [vmem:[#allocation2 + $0x90] sm:$0xff] %vm3152, %v3045
    %3172 = vst.msk [vmem:[#allocation2 + $0x98] sm:$0xff] %vm3152, %v3047
    %3173 = vst.msk [vmem:[#allocation2 + $0xa0] sm:$0xff] %vm3152, %v3049
    %3174 = vst.msk [vmem:[#allocation2 + $0xa8] sm:$0xff] %vm3152, %v3051
    %3175 = vst.msk [vmem:[#allocation2 + $0xb0] sm:$0xff] %vm3152, %v3053
    %3176 = vst.msk [vmem:[#allocation2 + $0xb8] sm:$0xff] %vm3152, %v3055
    %3177 = vst.msk [vmem:[#allocation2 + $0xc0] sm:$0xff] %vm3152, %v3057
    %3178 = vst.msk [vmem:[#allocation2 + $0xc8] sm:$0xff] %vm3152, %v3059
    %3179 = vst.msk [vmem:[#allocation2 + $0xd0] sm:$0xff] %vm3152, %v3061
    %3180 = vst.msk [vmem:[#allocation2 + $0xd8] sm:$0xff] %vm3152, %v3063
    %3181 = vst.msk [vmem:[#allocation2 + $0xe0] sm:$0xff] %vm3152, %v3065
    %3182 = vst.msk [vmem:[#allocation2 + $0xe8] sm:$0xff] %vm3152, %v3067
    %3183 = vst.msk [vmem:[#allocation2 + $0xf0] sm:$0xff] %vm3152, %v3069
    %3184 = vst.msk [vmem:[#allocation2 + $0xf8] sm:$0xff] %vm3152, %v3071
    %3185 = vst.msk [vmem:[#allocation2 + $0x100] sm:$0xff] %vm3152, %v3073
    %3186 = vst.msk [vmem:[#allocation2 + $0x108] sm:$0xff] %vm3152, %v3075
    %3187 = vst.msk [vmem:[#allocation2 + $0x110] sm:$0xff] %vm3152, %v3077
    %3188 = vst.msk [vmem:[#allocation2 + $0x118] sm:$0xff] %vm3152, %v3079
    %3189 = vst.msk [vmem:[#allocation2 + $0x120] sm:$0xff] %vm3152, %v3081
    %3190 = vst.msk [vmem:[#allocation2 + $0x128] sm:$0xff] %vm3152, %v3083
    %3191 = vst.msk [vmem:[#allocation2 + $0x130] sm:$0xff] %vm3152, %v3085
    %3192 = vst.msk [vmem:[#allocation2 + $0x138] sm:$0xff] %vm3152, %v3087
    %3193 = vst.msk [vmem:[#allocation2 + $0x140] sm:$0xff] %vm3152, %v3089
    %3194 = vst.msk [vmem:[#allocation2 + $0x148] sm:$0xff] %vm3152, %v3091
    %3195 = vst.msk [vmem:[#allocation2 + $0x150] sm:$0xff] %vm3152, %v3093
    %3196 = vst.msk [vmem:[#allocation2 + $0x158] sm:$0xff] %vm3152, %v3095
    %3197 = vst.msk [vmem:[#allocation2 + $0x160] sm:$0xff] %vm3152, %v3097
    %3198 = vst.msk [vmem:[#allocation2 + $0x168] sm:$0xff] %vm3152, %v3099
    %3199 = vst.msk [vmem:[#allocation2 + $0x170] sm:$0xff] %vm3152, %v3101
    %3200 = vst.msk [vmem:[#allocation2 + $0x178] sm:$0xff] %vm3152, %v3103
    %3201 = vst.msk [vmem:[%s1657] sm:$0xff] %vm3152, %v2912
    %3202 = vst.msk [vmem:[%s1657 + $0x8] sm:$0xff] %vm3152, %v2913
    %3203 = vst.msk [vmem:[%s1657 + $0x10] sm:$0xff] %vm3152, %v2914
    %3204 = vst.msk [vmem:[%s1657 + $0x18] sm:$0xff] %vm3152, %v2915
    %3205 = vst.msk [vmem:[%s1657 + $0x20] sm:$0xff] %vm3152, %v2916
    %3206 = vst.msk [vmem:[%s1657 + $0x28] sm:$0xff] %vm3152, %v2917
    %3207 = vst.msk [vmem:[%s1657 + $0x30] sm:$0xff] %vm3152, %v2918
    %3208 = vst.msk [vmem:[%s1657 + $0x38] sm:$0xff] %vm3152, %v2919
    %3209 = vst.msk [vmem:[%s1657 + $0x40] sm:$0xff] %vm3152, %v2920
    %3210 = vst.msk [vmem:[%s1657 + $0x48] sm:$0xff] %vm3152, %v2921
    %3211 = vst.msk [vmem:[%s1657 + $0x50] sm:$0xff] %vm3152, %v2922
    %3212 = vst.msk [vmem:[%s1657 + $0x58] sm:$0xff] %vm3152, %v2923
    %3213 = vst.msk [vmem:[%s1657 + $0x60] sm:$0xff] %vm3152, %v2924
    %3214 = vst.msk [vmem:[%s1657 + $0x68] sm:$0xff] %vm3152, %v2925
    %3215 = vst.msk [vmem:[%s1657 + $0x70] sm:$0xff] %vm3152, %v2926
    %3216 = vst.msk [vmem:[%s1657 + $0x78] sm:$0xff] %vm3152, %v2927
    %3217 = vst.msk [vmem:[%s1657 + $0x80] sm:$0xff] %vm3152, %v2928
    %3218 = vst.msk [vmem:[%s1657 + $0x88] sm:$0xff] %vm3152, %v2929
    %3219 = vst.msk [vmem:[%s1657 + $0x90] sm:$0xff] %vm3152, %v2930
    %3220 = vst.msk [vmem:[%s1657 + $0x98] sm:$0xff] %vm3152, %v2931
    %3221 = vst.msk [vmem:[%s1657 + $0xa0] sm:$0xff] %vm3152, %v2932
    %3222 = vst.msk [vmem:[%s1657 + $0xa8] sm:$0xff] %vm3152, %v2933
    %3223 = vst.msk [vmem:[%s1657 + $0xb0] sm:$0xff] %vm3152, %v2934
    %3224 = vst.msk [vmem:[%s1657 + $0xb8] sm:$0xff] %vm3152, %v2935
    %3225 = vst.msk [vmem:[%s1657 + $0xc0] sm:$0xff] %vm3152, %v2936
    %3226 = vst.msk [vmem:[%s1657 + $0xc8] sm:$0xff] %vm3152, %v2937
    %3227 = vst.msk [vmem:[%s1657 + $0xd0] sm:$0xff] %vm3152, %v2938
    %3228 = vst.msk [vmem:[%s1657 + $0xd8] sm:$0xff] %vm3152, %v2939
    %3229 = vst.msk [vmem:[%s1657 + $0xe0] sm:$0xff] %vm3152, %v2940
    %3230 = vst.msk [vmem:[%s1657 + $0xe8] sm:$0xff] %vm3152, %v2941
    %3231 = vst.msk [vmem:[%s1657 + $0xf0] sm:$0xff] %vm3152, %v2942
    %3232 = vst.msk [vmem:[%s1657 + $0xf8] sm:$0xff] %vm3152, %v2943
    %3233 = vst.msk [vmem:[%s1657 + $0x100] sm:$0xff] %vm3152, %v2944
    %3234 = vst.msk [vmem:[%s1657 + $0x108] sm:$0xff] %vm3152, %v2945
    %3235 = vst.msk [vmem:[%s1657 + $0x110] sm:$0xff] %vm3152, %v2946
    %3236 = vst.msk [vmem:[%s1657 + $0x118] sm:$0xff] %vm3152, %v2947
    %3237 = vst.msk [vmem:[%s1657 + $0x120] sm:$0xff] %vm3152, %v2948
    %3238 = vst.msk [vmem:[%s1657 + $0x128] sm:$0xff] %vm3152, %v2949
    %3239 = vst.msk [vmem:[%s1657 + $0x130] sm:$0xff] %vm3152, %v2950
    %3240 = vst.msk [vmem:[%s1657 + $0x138] sm:$0xff] %vm3152, %v2951
    %3241 = vst.msk [vmem:[%s1657 + $0x140] sm:$0xff] %vm3152, %v2952
    %3242 = vst.msk [vmem:[%s1657 + $0x148] sm:$0xff] %vm3152, %v2953
    %3243 = vst.msk [vmem:[%s1657 + $0x150] sm:$0xff] %vm3152, %v2954
    %3244 = vst.msk [vmem:[%s1657 + $0x158] sm:$0xff] %vm3152, %v2955
    %3245 = vst.msk [vmem:[%s1657 + $0x160] sm:$0xff] %vm3152, %v2956
    %3246 = vst.msk [vmem:[%s1657 + $0x168] sm:$0xff] %vm3152, %v2957
    %3247 = vst.msk [vmem:[%s1657 + $0x170] sm:$0xff] %vm3152, %v2958
    %3248 = vst.msk [vmem:[%s1657 + $0x178] sm:$0xff] %vm3152, %v2959
    // Predicated region
    $region22: #{tpu_custom_call.1} parent=1 // pred_check
      _
    $region23: #{tpu_custom_call.1} parent=1 // pred_check_branch
      %3250 = sbr.rel (0) target = $region25
    $region24: #{tpu_custom_call.1} parent=1 // pred_region
      %3252 = vsyncadd [#allocation3], 0
      %s3253 = sshll.u32 [#allocation2], 4
      %s3254 = int_to_ptr.vmem [resolvable:$true] %s3253
      %s3255 = sshll.u32 %s5, 4
      %s3256 = int_to_ptr.hbm [resolvable:$true] %s3255
      %3261 = dma.vmem_to_hbm [thread:$0]  %s3254, 12288, %s3256, [#allocation3], 128, 128, 8
    $region25: #{tpu_custom_call.1} parent=1 // pred_fallthru
      _
    // Predicated region
    $region26: #{tpu_custom_call.1} parent=1 // pred_check
      _
    $region27: #{tpu_custom_call.1} parent=1 // pred_check_branch
      %3263 = sbr.rel (0) target = $region29
    $region28: #{tpu_custom_call.1} parent=1 // pred_region
      %3265 = dma.done [#allocation3], 12288
    $region29: #{tpu_custom_call.1} parent=1 // pred_fallthru
      _
    %3266 = vsyncpa [#allocation3], 1

</llo_original>
